<compile_context>
chip_gen: v7x
topology: tpu7x:2x2x1
jax: 0.10.0
libtpu: 0.0.40
codegen_flags: <defaults>
</compile_context>

<pallas_src>
import functools
import math

import jax
import jax.numpy as jnp
from jax.experimental import pallas as pl
from jax.experimental.pallas import tpu as pltpu

# ---------------- model hyper-parameters ------------------------------------
B_GRAPHS  = 8     # graphs per batch (one grid step per graph)
N_NODES   = 64    # nodes per graph
IN_DIM    = 8     # node-label vocabulary (nn.Embedding num_embeddings)
HIDDEN    = 32    # hidden_dim
OUT_DIM   = 32    # out_dim (== hidden_dim in the SBM configs)
N_HEADS   = 4
N_CLASSES = 6
CLS_PAD   = 8     # class dim padded for lane-aligned stores
POS_DIM   = 8     # pos_enc_dim
N_LAYERS  = 2     # 'L'
LN_EPS    = 1e-5  # PyTorch nn.LayerNorm default eps
ATTN_EPS  = 1e-6  # denominator eps from the reference layer

assert OUT_DIM == HIDDEN  # residual h + attn_out assumes this (as in the config)


# ------------------------- fused Pallas kernel ------------------------------
def gt_fused_kernel(x_ref, adj_ref, w_in_ref, misc_ref,
                    wqkvo_ref, wff1_ref, wff2_ref, vecs_ref,
                    wr0_ref, wr1_ref, wr2_ref, out_ref,
                    *, num_heads, n_layers):
    D = HIDDEN
    dh = D // num_heads
    scale = 1.0 / math.sqrt(dh)

    x = x_ref[0]            # (N, IN_DIM + POS_DIM)  f32  [onehot | pos_enc]
    adj = adj_ref[0]        # (N, N)  f32  adj[dst, src]
    misc = misc_ref[...]    # (4, HIDDEN) f32: b_pe, readout b0/b1/b2 (padded)

    # embedding(h) + PE(pos_enc) fused into a single matmul (bf16 weights)
    h = jnp.dot(x.astype(jnp.bfloat16), w_in_ref[...],
                preferred_element_type=jnp.float32) + misc[0:1, :]

    # static per-head channel masks, full lane width -> no sub-(8,128) slices
    ch = jax.lax.broadcasted_iota(jnp.int32, (1, D), 1)
    head_masks = [((ch >= hd * dh) & (ch < (hd + 1) * dh)).astype(jnp.float32)
                  for hd in range(num_heads)]

    def layer_norm(v, gamma, beta):
        mu = jnp.mean(v, axis=-1, keepdims=True)
        var = jnp.mean((v - mu) ** 2, axis=-1, keepdims=True)
        return (v - mu) * jax.lax.rsqrt(var + LN_EPS) * gamma + beta

    for l in range(n_layers):                       # static unroll (L small)
        vecs = vecs_ref[l]                          # (10, 2D) f32
        bq, bk, bv = vecs[0:1, :D], vecs[1:2, :D], vecs[2:3, :D]
        bo, b1, b2 = vecs[3:4, :D], vecs[4:5, :], vecs[5:6, :D]
        g1, be1 = vecs[6:7, :D], vecs[7:8, :D]
        g2, be2 = vecs[8:9, :D], vecs[9:10, :D]

        hb = h.astype(jnp.bfloat16)
        Q = jnp.dot(hb, wqkvo_ref[l, 0], preferred_element_type=jnp.float32) + bq
        K = jnp.dot(hb, wqkvo_ref[l, 1], preferred_element_type=jnp.float32) + bk
        V = jnp.dot(hb, wqkvo_ref[l, 2], preferred_element_type=jnp.float32) + bv

        # masked multi-head attention; heads separated via channel masks so all
        # matmuls / elementwise ops stay lane-dense (no slicing, no concat).
        attn = jnp.zeros_like(h)
        for mask in head_masks:
            s = jax.lax.dot_general(Q * mask, K, (((1,), (1,)), ((), ())),
                                    preferred_element_type=jnp.float32) * scale
            e = jnp.exp(jnp.clip(s, -5.0, 5.0)) * adj          # mask non-edges
            wv = jnp.dot(e, V, preferred_element_type=jnp.float32)
            z = jnp.sum(e, axis=-1, keepdims=True)
            attn = attn + wv * pl.reciprocal(z + ATTN_EPS, approx=True) * mask

        # O-projection + residual + LayerNorm1
        ho = jnp.dot(attn.astype(jnp.bfloat16), wqkvo_ref[l, 3],
                     preferred_element_type=jnp.float32) + bo
        h1 = layer_norm(h + ho, g1, be1)

        # FFN (Linear -> ReLU -> Linear) + residual + LayerNorm2
        f = jnp.dot(h1.astype(jnp.bfloat16), wff1_ref[l],
                    preferred_element_type=jnp.float32) + b1
        f = jnp.maximum(f, 0.0)
        f = jnp.dot(f.astype(jnp.bfloat16), wff2_ref[l],
                    preferred_element_type=jnp.float32) + b2
        h = layer_norm(h1 + f, g2, be2)

    # MLP readout (L=2): Linear->ReLU->Linear->ReLU->Linear (f32, tiny weights)
    y = jnp.dot(h, wr0_ref[...], preferred_element_type=jnp.float32) \
        + misc[1:2, :HIDDEN // 2]
    y = jnp.maximum(y, 0.0)
    y = jnp.dot(y, wr1_ref[...], preferred_element_type=jnp.float32) \
        + misc[2:3, :HIDDEN // 4]
    y = jnp.maximum(y, 0.0)
    out_ref[0] = jnp.dot(y, wr2_ref[...], preferred_element_type=jnp.float32) \
        + misc[3:4, :CLS_PAD]


# ------------------------- wrapper -------------------------------------------
def graph_transformer_forward(params, node_ids, adj, pos_enc):
    B, N = node_ids.shape
    onehot = (node_ids[..., None] == jnp.arange(IN_DIM)[None, None, :]).astype(jnp.float32)
    x_in = jnp.concatenate([onehot, pos_enc], axis=-1)          # (B, N, IN+POS)

    kernel = functools.partial(gt_fused_kernel,
                               num_heads=N_HEADS, n_layers=N_LAYERS)
    out = pl.pallas_call(
        kernel,
        out_shape=jax.ShapeDtypeStruct((B, N, CLS_PAD), jnp.float32),
        grid=(B,),
        in_specs=[
            pl.BlockSpec((1, N, IN_DIM + POS_DIM), lambda b: (b, 0, 0)),
            pl.BlockSpec((1, N, N), lambda b: (b, 0, 0)),
            pl.BlockSpec((IN_DIM + POS_DIM, HIDDEN), lambda b: (0, 0)),
            pl.BlockSpec((4, HIDDEN), lambda b: (0, 0)),
            pl.BlockSpec((N_LAYERS, 4, HIDDEN, HIDDEN), lambda b: (0, 0, 0, 0)),
            pl.BlockSpec((N_LAYERS, HIDDEN, 2 * HIDDEN), lambda b: (0, 0, 0)),
            pl.BlockSpec((N_LAYERS, 2 * HIDDEN, HIDDEN), lambda b: (0, 0, 0)),
            pl.BlockSpec((N_LAYERS, 10, 2 * HIDDEN), lambda b: (0, 0, 0)),
            pl.BlockSpec((HIDDEN, HIDDEN // 2), lambda b: (0, 0)),
            pl.BlockSpec((HIDDEN // 2, HIDDEN // 4), lambda b: (0, 0)),
            pl.BlockSpec((HIDDEN // 4, CLS_PAD), lambda b: (0, 0)),
        ],
        out_specs=pl.BlockSpec((1, N, CLS_PAD), lambda b: (b, 0, 0)),
        compiler_params=pltpu.CompilerParams(dimension_semantics=("parallel",)),
    )(x_in, adj, params["w_in"], params["misc"],
      params["wqkvo"], params["wff1"], params["wff2"], params["vecs"],
      params["wr0"], params["wr1"], params["wr2"])
    return out[..., :N_CLASSES]                                 # drop class pad


# ------------------------- deterministic parameter init ----------------------
def init_params(key):
    def lin(k, fan_in, fan_out):
        k1, k2 = jax.random.split(k)
        bound = 1.0 / math.sqrt(fan_in)
        w = jax.random.uniform(k1, (fan_in, fan_out), jnp.float32, -bound, bound)
        b = jax.random.uniform(k2, (fan_out,), jnp.float32, -bound, bound)
        return w, b

    def pad_to(v, n):
        return jnp.pad(v, (0, n - v.shape[0]))

    keys = jax.random.split(key, 3 + N_LAYERS)
    emb = jax.random.normal(keys[0], (IN_DIM, HIDDEN), jnp.float32)
    w_pe, b_pe = lin(keys[1], POS_DIM, HIDDEN)

    wqkvo, wff1, wff2, vecs = [], [], [], []
    for l in range(N_LAYERS):
        lk = jax.random.split(keys[2 + l], 6)
        wq, bq = lin(lk[0], HIDDEN, HIDDEN)
        wk, bk = lin(lk[1], HIDDEN, HIDDEN)
        wv, bv = lin(lk[2], HIDDEN, HIDDEN)
        wo, bo = lin(lk[3], HIDDEN, OUT_DIM)
        w1, b1 = lin(lk[4], OUT_DIM, OUT_DIM * 2)
        w2, b2 = lin(lk[5], OUT_DIM * 2, OUT_DIM)
        wqkvo.append(jnp.stack([wq, wk, wv, wo], axis=0))
        wff1.append(w1)
        wff2.append(w2)
        W = 2 * OUT_DIM
        vecs.append(jnp.stack(
            [pad_to(bq, W), pad_to(bk, W), pad_to(bv, W), pad_to(bo, W),
             b1, pad_to(b2, W),
             pad_to(jnp.ones((OUT_DIM,), jnp.float32), W),   # ln1 gamma
             pad_to(jnp.zeros((OUT_DIM,), jnp.float32), W),  # ln1 beta
             pad_to(jnp.ones((OUT_DIM,), jnp.float32), W),   # ln2 gamma
             pad_to(jnp.zeros((OUT_DIM,), jnp.float32), W)], # ln2 beta
            axis=0))

    rk = jax.random.split(keys[2 + N_LAYERS], 3)
    wr0, br0 = lin(rk[0], OUT_DIM, OUT_DIM // 2)
    wr1, br1 = lin(rk[1], OUT_DIM // 2, OUT_DIM // 4)
    wr2, br2 = lin(rk[2], OUT_DIM // 4, N_CLASSES)
    wr2 = jnp.pad(wr2, ((0, 0), (0, CLS_PAD - N_CLASSES)))     # pad classes 6->8
    br2 = pad_to(br2, CLS_PAD)

    misc = jnp.stack([b_pe,
                      pad_to(br0, HIDDEN),
                      pad_to(br1, HIDDEN),
                      pad_to(br2, HIDDEN)], axis=0)            # (4, HIDDEN)

    return dict(
        w_in=jnp.concatenate([emb, w_pe], axis=0).astype(jnp.bfloat16),
        misc=misc,
        wqkvo=jnp.stack(wqkvo, axis=0).astype(jnp.bfloat16),   # (L, 4, D, D)
        wff1=jnp.stack(wff1, axis=0).astype(jnp.bfloat16),     # (L, D, 2D)
        wff2=jnp.stack(wff2, axis=0).astype(jnp.bfloat16),     # (L, 2D, D)
        vecs=jnp.stack(vecs, axis=0),                          # (L, 10, 2D) f32
        wr0=wr0, wr1=wr1, wr2=wr2)


# ------------------------- main ----------------------------------------------
if __name__ == "__main__":
    key = jax.random.PRNGKey(0)
    kp, kn, ka, kpe = jax.random.split(key, 4)

    params = init_params(kp)
    node_ids = jax.random.randint(kn, (B_GRAPHS, N_NODES), 0, IN_DIM, dtype=jnp.int32)
    # random directed adjacency, plus self-loops so every node has an in-edge
    adj = (jax.random.uniform(ka, (B_GRAPHS, N_NODES, N_NODES)) < 0.15).astype(jnp.float32)
    adj = jnp.maximum(adj, jnp.eye(N_NODES, dtype=jnp.float32)[None])
    pos_enc = jax.random.normal(kpe, (B_GRAPHS, N_NODES, POS_DIM), jnp.float32)

    logits = graph_transformer_forward(params, node_ids, adj, pos_enc)
    logits = jax.block_until_ready(logits)
    assert logits.shape == (B_GRAPHS, N_NODES, N_CLASSES)
    assert bool(jnp.all(jnp.isfinite(logits)))
    print("KERNEL_OK")
</pallas_src>

<mosaic_0001>
module attributes {stable_mosaic.version = 11 : i64} {
  func.func @gt_fused_kernel(%arg0: i32, %arg1: memref<1x64x16xf32, #tpu.memory_space<vmem>>, %arg2: memref<1x64x64xf32, #tpu.memory_space<vmem>>, %arg3: memref<16x32xbf16, #tpu.memory_space<vmem>>, %arg4: memref<4x32xf32, #tpu.memory_space<vmem>>, %arg5: memref<2x4x32x32xbf16, #tpu.memory_space<vmem>>, %arg6: memref<2x32x64xbf16, #tpu.memory_space<vmem>>, %arg7: memref<2x64x32xbf16, #tpu.memory_space<vmem>>, %arg8: memref<2x10x64xf32, #tpu.memory_space<vmem>>, %arg9: memref<32x16xf32, #tpu.memory_space<vmem>>, %arg10: memref<16x8xf32, #tpu.memory_space<vmem>>, %arg11: memref<8x8xf32, #tpu.memory_space<vmem>>, %arg12: memref<1x64x8xf32, #tpu.memory_space<vmem>>) attributes {dimension_semantics = [#tpu.dimension_semantics<parallel>], iteration_bounds = array<i64: 8>, scalar_prefetch = 0 : i64, scratch_operands = 0 : i64, tpu.core_type = #tpu.core_type<tc>, window_params = [{transform_indices = @transform_0, window_bounds = array<i64: 1, 64, 16>}, {transform_indices = @transform_1, window_bounds = array<i64: 1, 64, 64>}, {pipeline_mode = #tpu.pipeline_mode<synchronous>, transform_indices = @transform_2, window_bounds = array<i64: 16, 32>}, {pipeline_mode = #tpu.pipeline_mode<synchronous>, transform_indices = @transform_3, window_bounds = array<i64: 4, 32>}, {pipeline_mode = #tpu.pipeline_mode<synchronous>, transform_indices = @transform_4, window_bounds = array<i64: 2, 4, 32, 32>}, {pipeline_mode = #tpu.pipeline_mode<synchronous>, transform_indices = @transform_5, window_bounds = array<i64: 2, 32, 64>}, {pipeline_mode = #tpu.pipeline_mode<synchronous>, transform_indices = @transform_6, window_bounds = array<i64: 2, 64, 32>}, {pipeline_mode = #tpu.pipeline_mode<synchronous>, transform_indices = @transform_7, window_bounds = array<i64: 2, 10, 64>}, {pipeline_mode = #tpu.pipeline_mode<synchronous>, transform_indices = @transform_8, window_bounds = array<i64: 32, 16>}, {pipeline_mode = #tpu.pipeline_mode<synchronous>, transform_indices = @transform_9, window_bounds = array<i64: 16, 8>}, {pipeline_mode = #tpu.pipeline_mode<synchronous>, transform_indices = @transform_10, window_bounds = array<i64: 8, 8>}, {transform_indices = @transform_11, window_bounds = array<i64: 1, 64, 8>}]} {
    %c0 = arith.constant 0 : index
    %c0_0 = arith.constant 0 : index
    %c0_1 = arith.constant 0 : index
    %0 = vector.load %arg1[%c0, %c0_0, %c0_1] : memref<1x64x16xf32, #tpu.memory_space<vmem>>, vector<1x64x16xf32>
    %1 = vector.shape_cast %0 : vector<1x64x16xf32> to vector<64x16xf32>
    %c0_2 = arith.constant 0 : index
    %c0_3 = arith.constant 0 : index
    %c0_4 = arith.constant 0 : index
    %2 = vector.load %arg2[%c0_2, %c0_3, %c0_4] : memref<1x64x64xf32, #tpu.memory_space<vmem>>, vector<1x64x64xf32>
    %3 = vector.shape_cast %2 : vector<1x64x64xf32> to vector<64x64xf32>
    %c0_5 = arith.constant 0 : index
    %c0_6 = arith.constant 0 : index
    %4 = vector.load %arg4[%c0_5, %c0_6] : memref<4x32xf32, #tpu.memory_space<vmem>>, vector<4x32xf32>
    %5 = arith.truncf %1 : vector<64x16xf32> to vector<64x16xbf16>
    %c0_7 = arith.constant 0 : index
    %c0_8 = arith.constant 0 : index
    %6 = vector.load %arg3[%c0_7, %c0_8] : memref<16x32xbf16, #tpu.memory_space<vmem>>, vector<16x32xbf16>
    %cst = arith.constant dense<0.000000e+00> : vector<64x32xf32>
    %7 = tpu.matmul %5, %6, %cst {dimension_numbers = #tpu.dot_dimension_numbers<[1], [0], [0], [1], [0, 0, 1, 1], [], []>} : vector<64x16xbf16>, vector<16x32xbf16>, vector<64x32xf32> -> vector<64x32xf32>
    %8 = vector.extract_strided_slice %4 {offsets = [0, 0], sizes = [1, 32], strides = [1, 1]} : vector<4x32xf32> to vector<1x32xf32>
    %9 = vector.broadcast %8 : vector<1x32xf32> to vector<64x32xf32>
    %10 = arith.addf %7, %9 : vector<64x32xf32>
    %11 = tpu.iota {dimensions = array<i32: 1>} : vector<1x32xi32>
    %c0_i32 = arith.constant 0 : i32
    %12 = vector.broadcast %c0_i32 : i32 to vector<1x32xi32>
    %13 = arith.cmpi sge, %11, %12 : vector<1x32xi32>
    %c8_i32 = arith.constant 8 : i32
    %14 = vector.broadcast %c8_i32 : i32 to vector<1x32xi32>
    %15 = arith.cmpi slt, %11, %14 : vector<1x32xi32>
    %16 = arith.andi %13, %15 : vector<1x32xi1>
    %17 = arith.extui %16 : vector<1x32xi1> to vector<1x32xi32>
    %18 = arith.sitofp %17 : vector<1x32xi32> to vector<1x32xf32>
    %c8_i32_9 = arith.constant 8 : i32
    %19 = vector.broadcast %c8_i32_9 : i32 to vector<1x32xi32>
    %20 = arith.cmpi sge, %11, %19 : vector<1x32xi32>
    %c16_i32 = arith.constant 16 : i32
    %21 = vector.broadcast %c16_i32 : i32 to vector<1x32xi32>
    %22 = arith.cmpi slt, %11, %21 : vector<1x32xi32>
    %23 = arith.andi %20, %22 : vector<1x32xi1>
    %24 = arith.extui %23 : vector<1x32xi1> to vector<1x32xi32>
    %25 = arith.sitofp %24 : vector<1x32xi32> to vector<1x32xf32>
    %c16_i32_10 = arith.constant 16 : i32
    %26 = vector.broadcast %c16_i32_10 : i32 to vector<1x32xi32>
    %27 = arith.cmpi sge, %11, %26 : vector<1x32xi32>
    %c24_i32 = arith.constant 24 : i32
    %28 = vector.broadcast %c24_i32 : i32 to vector<1x32xi32>
    %29 = arith.cmpi slt, %11, %28 : vector<1x32xi32>
    %30 = arith.andi %27, %29 : vector<1x32xi1>
    %31 = arith.extui %30 : vector<1x32xi1> to vector<1x32xi32>
    %32 = arith.sitofp %31 : vector<1x32xi32> to vector<1x32xf32>
    %c24_i32_11 = arith.constant 24 : i32
    %33 = vector.broadcast %c24_i32_11 : i32 to vector<1x32xi32>
    %34 = arith.cmpi sge, %11, %33 : vector<1x32xi32>
    %c32_i32 = arith.constant 32 : i32
    %35 = vector.broadcast %c32_i32 : i32 to vector<1x32xi32>
    %36 = arith.cmpi slt, %11, %35 : vector<1x32xi32>
    %37 = arith.andi %34, %36 : vector<1x32xi1>
    %38 = arith.extui %37 : vector<1x32xi1> to vector<1x32xi32>
    %39 = arith.sitofp %38 : vector<1x32xi32> to vector<1x32xf32>
    %c0_12 = arith.constant 0 : index
    %c0_13 = arith.constant 0 : index
    %c0_14 = arith.constant 0 : index
    %40 = vector.load %arg8[%c0_12, %c0_13, %c0_14] : memref<2x10x64xf32, #tpu.memory_space<vmem>>, vector<1x10x64xf32>
    %41 = vector.shape_cast %40 : vector<1x10x64xf32> to vector<10x64xf32>
    %42 = vector.extract_strided_slice %41 {offsets = [0, 0], sizes = [1, 32], strides = [1, 1]} : vector<10x64xf32> to vector<1x32xf32>
    %43 = vector.extract_strided_slice %41 {offsets = [1, 0], sizes = [1, 32], strides = [1, 1]} : vector<10x64xf32> to vector<1x32xf32>
    %44 = vector.extract_strided_slice %41 {offsets = [2, 0], sizes = [1, 32], strides = [1, 1]} : vector<10x64xf32> to vector<1x32xf32>
    %45 = vector.extract_strided_slice %41 {offsets = [3, 0], sizes = [1, 32], strides = [1, 1]} : vector<10x64xf32> to vector<1x32xf32>
    %46 = vector.extract_strided_slice %41 {offsets = [4, 0], sizes = [1, 64], strides = [1, 1]} : vector<10x64xf32> to vector<1x64xf32>
    %47 = vector.extract_strided_slice %41 {offsets = [5, 0], sizes = [1, 32], strides = [1, 1]} : vector<10x64xf32> to vector<1x32xf32>
    %48 = vector.extract_strided_slice %41 {offsets = [6, 0], sizes = [1, 32], strides = [1, 1]} : vector<10x64xf32> to vector<1x32xf32>
    %49 = vector.extract_strided_slice %41 {offsets = [7, 0], sizes = [1, 32], strides = [1, 1]} : vector<10x64xf32> to vector<1x32xf32>
    %50 = vector.extract_strided_slice %41 {offsets = [8, 0], sizes = [1, 32], strides = [1, 1]} : vector<10x64xf32> to vector<1x32xf32>
    %51 = vector.extract_strided_slice %41 {offsets = [9, 0], sizes = [1, 32], strides = [1, 1]} : vector<10x64xf32> to vector<1x32xf32>
    %52 = arith.truncf %10 : vector<64x32xf32> to vector<64x32xbf16>
    %c0_15 = arith.constant 0 : index
    %c0_16 = arith.constant 0 : index
    %c0_17 = arith.constant 0 : index
    %c0_18 = arith.constant 0 : index
    %53 = vector.load %arg5[%c0_15, %c0_16, %c0_17, %c0_18] : memref<2x4x32x32xbf16, #tpu.memory_space<vmem>>, vector<1x1x32x32xbf16>
    %54 = vector.shape_cast %53 : vector<1x1x32x32xbf16> to vector<32x32xbf16>
    %cst_19 = arith.constant dense<0.000000e+00> : vector<64x32xf32>
    %55 = tpu.matmul %52, %54, %cst_19 {dimension_numbers = #tpu.dot_dimension_numbers<[1], [0], [0], [1], [0, 0, 1, 1], [], []>} : vector<64x32xbf16>, vector<32x32xbf16>, vector<64x32xf32> -> vector<64x32xf32>
    %56 = vector.broadcast %42 : vector<1x32xf32> to vector<64x32xf32>
    %57 = arith.addf %55, %56 : vector<64x32xf32>
    %c0_20 = arith.constant 0 : index
    %c1 = arith.constant 1 : index
    %c0_21 = arith.constant 0 : index
    %c0_22 = arith.constant 0 : index
    %58 = vector.load %arg5[%c0_20, %c1, %c0_21, %c0_22] : memref<2x4x32x32xbf16, #tpu.memory_space<vmem>>, vector<1x1x32x32xbf16>
    %59 = vector.shape_cast %58 : vector<1x1x32x32xbf16> to vector<32x32xbf16>
    %cst_23 = arith.constant dense<0.000000e+00> : vector<64x32xf32>
    %60 = tpu.matmul %52, %59, %cst_23 {dimension_numbers = #tpu.dot_dimension_numbers<[1], [0], [0], [1], [0, 0, 1, 1], [], []>} : vector<64x32xbf16>, vector<32x32xbf16>, vector<64x32xf32> -> vector<64x32xf32>
    %61 = vector.broadcast %43 : vector<1x32xf32> to vector<64x32xf32>
    %62 = arith.addf %60, %61 : vector<64x32xf32>
    %c0_24 = arith.constant 0 : index
    %c2 = arith.constant 2 : index
    %c0_25 = arith.constant 0 : index
    %c0_26 = arith.constant 0 : index
    %63 = vector.load %arg5[%c0_24, %c2, %c0_25, %c0_26] : memref<2x4x32x32xbf16, #tpu.memory_space<vmem>>, vector<1x1x32x32xbf16>
    %64 = vector.shape_cast %63 : vector<1x1x32x32xbf16> to vector<32x32xbf16>
    %cst_27 = arith.constant dense<0.000000e+00> : vector<64x32xf32>
    %65 = tpu.matmul %52, %64, %cst_27 {dimension_numbers = #tpu.dot_dimension_numbers<[1], [0], [0], [1], [0, 0, 1, 1], [], []>} : vector<64x32xbf16>, vector<32x32xbf16>, vector<64x32xf32> -> vector<64x32xf32>
    %66 = vector.broadcast %44 : vector<1x32xf32> to vector<64x32xf32>
    %67 = arith.addf %65, %66 : vector<64x32xf32>
    %cst_28 = arith.constant 0.000000e+00 : f32
    %68 = vector.broadcast %cst_28 : f32 to vector<64x32xf32>
    %69 = vector.broadcast %18 : vector<1x32xf32> to vector<64x32xf32>
    %70 = arith.mulf %57, %69 : vector<64x32xf32>
    %cst_29 = arith.constant dense<0.000000e+00> : vector<64x64xf32>
    %71 = tpu.matmul %70, %62, %cst_29 {dimension_numbers = #tpu.dot_dimension_numbers<[1], [1], [0], [0], [0, 0, 1, 0], [], []>} : vector<64x32xf32>, vector<64x32xf32>, vector<64x64xf32> -> vector<64x64xf32>
    %cst_30 = arith.constant 0.353553385 : f32
    %72 = vector.broadcast %cst_30 : f32 to vector<64x64xf32>
    %73 = arith.mulf %71, %72 : vector<64x64xf32>
    %cst_31 = arith.constant -5.000000e+00 : f32
    %cst_32 = arith.constant 5.000000e+00 : f32
    %74 = vector.broadcast %cst_31 : f32 to vector<64x64xf32>
    %75 = arith.maximumf %74, %73 : vector<64x64xf32>
    %76 = vector.broadcast %cst_32 : f32 to vector<64x64xf32>
    %77 = arith.minimumf %76, %75 : vector<64x64xf32>
    %78 = math.exp %77 : vector<64x64xf32>
    %79 = arith.mulf %78, %3 : vector<64x64xf32>
    %cst_33 = arith.constant dense<0.000000e+00> : vector<64x32xf32>
    %80 = tpu.matmul %79, %67, %cst_33 {dimension_numbers = #tpu.dot_dimension_numbers<[1], [0], [0], [1], [0, 0, 1, 1], [], []>} : vector<64x64xf32>, vector<64x32xf32>, vector<64x32xf32> -> vector<64x32xf32>
    %cst_34 = arith.constant dense<0.000000e+00> : vector<64xf32>
    %81 = vector.multi_reduction <add>, %79, %cst_34 [1] : vector<64x64xf32> to vector<64xf32>
    %82 = vector.shape_cast %81 : vector<64xf32> to vector<64x1xf32>
    %cst_35 = arith.constant 9.99999997E-7 : f32
    %83 = vector.broadcast %cst_35 : f32 to vector<64x1xf32>
    %84 = arith.addf %82, %83 : vector<64x1xf32>
    %85 = tpu.reciprocal %84 {approx = true} : vector<64x1xf32> -> vector<64x1xf32>
    %86 = vector.broadcast %85 : vector<64x1xf32> to vector<64x32xf32>
    %87 = arith.mulf %80, %86 : vector<64x32xf32>
    %88 = vector.broadcast %18 : vector<1x32xf32> to vector<64x32xf32>
    %89 = arith.mulf %87, %88 : vector<64x32xf32>
    %90 = arith.addf %68, %89 : vector<64x32xf32>
    %91 = vector.broadcast %25 : vector<1x32xf32> to vector<64x32xf32>
    %92 = arith.mulf %57, %91 : vector<64x32xf32>
    %cst_36 = arith.constant dense<0.000000e+00> : vector<64x64xf32>
    %93 = tpu.matmul %92, %62, %cst_36 {dimension_numbers = #tpu.dot_dimension_numbers<[1], [1], [0], [0], [0, 0, 1, 0], [], []>} : vector<64x32xf32>, vector<64x32xf32>, vector<64x64xf32> -> vector<64x64xf32>
    %cst_37 = arith.constant 0.353553385 : f32
    %94 = vector.broadcast %cst_37 : f32 to vector<64x64xf32>
    %95 = arith.mulf %93, %94 : vector<64x64xf32>
    %cst_38 = arith.constant -5.000000e+00 : f32
    %cst_39 = arith.constant 5.000000e+00 : f32
    %96 = vector.broadcast %cst_38 : f32 to vector<64x64xf32>
    %97 = arith.maximumf %96, %95 : vector<64x64xf32>
    %98 = vector.broadcast %cst_39 : f32 to vector<64x64xf32>
    %99 = arith.minimumf %98, %97 : vector<64x64xf32>
    %100 = math.exp %99 : vector<64x64xf32>
    %101 = arith.mulf %100, %3 : vector<64x64xf32>
    %cst_40 = arith.constant dense<0.000000e+00> : vector<64x32xf32>
    %102 = tpu.matmul %101, %67, %cst_40 {dimension_numbers = #tpu.dot_dimension_numbers<[1], [0], [0], [1], [0, 0, 1, 1], [], []>} : vector<64x64xf32>, vector<64x32xf32>, vector<64x32xf32> -> vector<64x32xf32>
    %cst_41 = arith.constant dense<0.000000e+00> : vector<64xf32>
    %103 = vector.multi_reduction <add>, %101, %cst_41 [1] : vector<64x64xf32> to vector<64xf32>
    %104 = vector.shape_cast %103 : vector<64xf32> to vector<64x1xf32>
    %cst_42 = arith.constant 9.99999997E-7 : f32
    %105 = vector.broadcast %cst_42 : f32 to vector<64x1xf32>
    %106 = arith.addf %104, %105 : vector<64x1xf32>
    %107 = tpu.reciprocal %106 {approx = true} : vector<64x1xf32> -> vector<64x1xf32>
    %108 = vector.broadcast %107 : vector<64x1xf32> to vector<64x32xf32>
    %109 = arith.mulf %102, %108 : vector<64x32xf32>
    %110 = vector.broadcast %25 : vector<1x32xf32> to vector<64x32xf32>
    %111 = arith.mulf %109, %110 : vector<64x32xf32>
    %112 = arith.addf %90, %111 : vector<64x32xf32>
    %113 = vector.broadcast %32 : vector<1x32xf32> to vector<64x32xf32>
    %114 = arith.mulf %57, %113 : vector<64x32xf32>
    %cst_43 = arith.constant dense<0.000000e+00> : vector<64x64xf32>
    %115 = tpu.matmul %114, %62, %cst_43 {dimension_numbers = #tpu.dot_dimension_numbers<[1], [1], [0], [0], [0, 0, 1, 0], [], []>} : vector<64x32xf32>, vector<64x32xf32>, vector<64x64xf32> -> vector<64x64xf32>
    %cst_44 = arith.constant 0.353553385 : f32
    %116 = vector.broadcast %cst_44 : f32 to vector<64x64xf32>
    %117 = arith.mulf %115, %116 : vector<64x64xf32>
    %cst_45 = arith.constant -5.000000e+00 : f32
    %cst_46 = arith.constant 5.000000e+00 : f32
    %118 = vector.broadcast %cst_45 : f32 to vector<64x64xf32>
    %119 = arith.maximumf %118, %117 : vector<64x64xf32>
    %120 = vector.broadcast %cst_46 : f32 to vector<64x64xf32>
    %121 = arith.minimumf %120, %119 : vector<64x64xf32>
    %122 = math.exp %121 : vector<64x64xf32>
    %123 = arith.mulf %122, %3 : vector<64x64xf32>
    %cst_47 = arith.constant dense<0.000000e+00> : vector<64x32xf32>
    %124 = tpu.matmul %123, %67, %cst_47 {dimension_numbers = #tpu.dot_dimension_numbers<[1], [0], [0], [1], [0, 0, 1, 1], [], []>} : vector<64x64xf32>, vector<64x32xf32>, vector<64x32xf32> -> vector<64x32xf32>
    %cst_48 = arith.constant dense<0.000000e+00> : vector<64xf32>
    %125 = vector.multi_reduction <add>, %123, %cst_48 [1] : vector<64x64xf32> to vector<64xf32>
    %126 = vector.shape_cast %125 : vector<64xf32> to vector<64x1xf32>
    %cst_49 = arith.constant 9.99999997E-7 : f32
    %127 = vector.broadcast %cst_49 : f32 to vector<64x1xf32>
    %128 = arith.addf %126, %127 : vector<64x1xf32>
    %129 = tpu.reciprocal %128 {approx = true} : vector<64x1xf32> -> vector<64x1xf32>
    %130 = vector.broadcast %129 : vector<64x1xf32> to vector<64x32xf32>
    %131 = arith.mulf %124, %130 : vector<64x32xf32>
    %132 = vector.broadcast %32 : vector<1x32xf32> to vector<64x32xf32>
    %133 = arith.mulf %131, %132 : vector<64x32xf32>
    %134 = arith.addf %112, %133 : vector<64x32xf32>
    %135 = vector.broadcast %39 : vector<1x32xf32> to vector<64x32xf32>
    %136 = arith.mulf %57, %135 : vector<64x32xf32>
    %cst_50 = arith.constant dense<0.000000e+00> : vector<64x64xf32>
    %137 = tpu.matmul %136, %62, %cst_50 {dimension_numbers = #tpu.dot_dimension_numbers<[1], [1], [0], [0], [0, 0, 1, 0], [], []>} : vector<64x32xf32>, vector<64x32xf32>, vector<64x64xf32> -> vector<64x64xf32>
    %cst_51 = arith.constant 0.353553385 : f32
    %138 = vector.broadcast %cst_51 : f32 to vector<64x64xf32>
    %139 = arith.mulf %137, %138 : vector<64x64xf32>
    %cst_52 = arith.constant -5.000000e+00 : f32
    %cst_53 = arith.constant 5.000000e+00 : f32
    %140 = vector.broadcast %cst_52 : f32 to vector<64x64xf32>
    %141 = arith.maximumf %140, %139 : vector<64x64xf32>
    %142 = vector.broadcast %cst_53 : f32 to vector<64x64xf32>
    %143 = arith.minimumf %142, %141 : vector<64x64xf32>
    %144 = math.exp %143 : vector<64x64xf32>
    %145 = arith.mulf %144, %3 : vector<64x64xf32>
    %cst_54 = arith.constant dense<0.000000e+00> : vector<64x32xf32>
    %146 = tpu.matmul %145, %67, %cst_54 {dimension_numbers = #tpu.dot_dimension_numbers<[1], [0], [0], [1], [0, 0, 1, 1], [], []>} : vector<64x64xf32>, vector<64x32xf32>, vector<64x32xf32> -> vector<64x32xf32>
    %cst_55 = arith.constant dense<0.000000e+00> : vector<64xf32>
    %147 = vector.multi_reduction <add>, %145, %cst_55 [1] : vector<64x64xf32> to vector<64xf32>
    %148 = vector.shape_cast %147 : vector<64xf32> to vector<64x1xf32>
    %cst_56 = arith.constant 9.99999997E-7 : f32
    %149 = vector.broadcast %cst_56 : f32 to vector<64x1xf32>
    %150 = arith.addf %148, %149 : vector<64x1xf32>
    %151 = tpu.reciprocal %150 {approx = true} : vector<64x1xf32> -> vector<64x1xf32>
    %152 = vector.broadcast %151 : vector<64x1xf32> to vector<64x32xf32>
    %153 = arith.mulf %146, %152 : vector<64x32xf32>
    %154 = vector.broadcast %39 : vector<1x32xf32> to vector<64x32xf32>
    %155 = arith.mulf %153, %154 : vector<64x32xf32>
    %156 = arith.addf %134, %155 : vector<64x32xf32>
    %157 = arith.truncf %156 : vector<64x32xf32> to vector<64x32xbf16>
    %c0_57 = arith.constant 0 : index
    %c3 = arith.constant 3 : index
    %c0_58 = arith.constant 0 : index
    %c0_59 = arith.constant 0 : index
    %158 = vector.load %arg5[%c0_57, %c3, %c0_58, %c0_59] : memref<2x4x32x32xbf16, #tpu.memory_space<vmem>>, vector<1x1x32x32xbf16>
    %159 = vector.shape_cast %158 : vector<1x1x32x32xbf16> to vector<32x32xbf16>
    %cst_60 = arith.constant dense<0.000000e+00> : vector<64x32xf32>
    %160 = tpu.matmul %157, %159, %cst_60 {dimension_numbers = #tpu.dot_dimension_numbers<[1], [0], [0], [1], [0, 0, 1, 1], [], []>} : vector<64x32xbf16>, vector<32x32xbf16>, vector<64x32xf32> -> vector<64x32xf32>
    %161 = vector.broadcast %45 : vector<1x32xf32> to vector<64x32xf32>
    %162 = arith.addf %160, %161 : vector<64x32xf32>
    %163 = arith.addf %10, %162 : vector<64x32xf32>
    %cst_61 = arith.constant dense<0.000000e+00> : vector<64xf32>
    %164 = vector.multi_reduction <add>, %163, %cst_61 [1] : vector<64x32xf32> to vector<64xf32>
    %165 = vector.shape_cast %164 : vector<64xf32> to vector<64x1xf32>
    %cst_62 = arith.constant 3.200000e+01 : f32
    %166 = vector.broadcast %cst_62 : f32 to vector<64x1xf32>
    %167 = arith.divf %165, %166 : vector<64x1xf32>
    %168 = vector.broadcast %167 : vector<64x1xf32> to vector<64x32xf32>
    %169 = arith.subf %163, %168 : vector<64x32xf32>
    %170 = arith.mulf %169, %169 : vector<64x32xf32>
    %cst_63 = arith.constant dense<0.000000e+00> : vector<64xf32>
    %171 = vector.multi_reduction <add>, %170, %cst_63 [1] : vector<64x32xf32> to vector<64xf32>
    %172 = vector.shape_cast %171 : vector<64xf32> to vector<64x1xf32>
    %cst_64 = arith.constant 3.200000e+01 : f32
    %173 = vector.broadcast %cst_64 : f32 to vector<64x1xf32>
    %174 = arith.divf %172, %173 : vector<64x1xf32>
    %175 = vector.broadcast %167 : vector<64x1xf32> to vector<64x32xf32>
    %176 = arith.subf %163, %175 : vector<64x32xf32>
    %cst_65 = arith.constant 9.99999974E-6 : f32
    %177 = vector.broadcast %cst_65 : f32 to vector<64x1xf32>
    %178 = arith.addf %174, %177 : vector<64x1xf32>
    %179 = math.rsqrt %178 : vector<64x1xf32>
    %180 = vector.broadcast %179 : vector<64x1xf32> to vector<64x32xf32>
    %181 = arith.mulf %176, %180 : vector<64x32xf32>
    %182 = vector.broadcast %48 : vector<1x32xf32> to vector<64x32xf32>
    %183 = arith.mulf %181, %182 : vector<64x32xf32>
    %184 = vector.broadcast %49 : vector<1x32xf32> to vector<64x32xf32>
    %185 = arith.addf %183, %184 : vector<64x32xf32>
    %186 = arith.truncf %185 : vector<64x32xf32> to vector<64x32xbf16>
    %c0_66 = arith.constant 0 : index
    %c0_67 = arith.constant 0 : index
    %c0_68 = arith.constant 0 : index
    %187 = vector.load %arg6[%c0_66, %c0_67, %c0_68] : memref<2x32x64xbf16, #tpu.memory_space<vmem>>, vector<1x32x64xbf16>
    %188 = vector.shape_cast %187 : vector<1x32x64xbf16> to vector<32x64xbf16>
    %cst_69 = arith.constant dense<0.000000e+00> : vector<64x64xf32>
    %189 = tpu.matmul %186, %188, %cst_69 {dimension_numbers = #tpu.dot_dimension_numbers<[1], [0], [0], [1], [0, 0, 1, 1], [], []>} : vector<64x32xbf16>, vector<32x64xbf16>, vector<64x64xf32> -> vector<64x64xf32>
    %190 = vector.broadcast %46 : vector<1x64xf32> to vector<64x64xf32>
    %191 = arith.addf %189, %190 : vector<64x64xf32>
    %cst_70 = arith.constant 0.000000e+00 : f32
    %192 = vector.broadcast %cst_70 : f32 to vector<64x64xf32>
    %193 = arith.maximumf %191, %192 : vector<64x64xf32>
    %194 = arith.truncf %193 : vector<64x64xf32> to vector<64x64xbf16>
    %c0_71 = arith.constant 0 : index
    %c0_72 = arith.constant 0 : index
    %c0_73 = arith.constant 0 : index
    %195 = vector.load %arg7[%c0_71, %c0_72, %c0_73] : memref<2x64x32xbf16, #tpu.memory_space<vmem>>, vector<1x64x32xbf16>
    %196 = vector.shape_cast %195 : vector<1x64x32xbf16> to vector<64x32xbf16>
    %cst_74 = arith.constant dense<0.000000e+00> : vector<64x32xf32>
    %197 = tpu.matmul %194, %196, %cst_74 {dimension_numbers = #tpu.dot_dimension_numbers<[1], [0], [0], [1], [0, 0, 1, 1], [], []>} : vector<64x64xbf16>, vector<64x32xbf16>, vector<64x32xf32> -> vector<64x32xf32>
    %198 = vector.broadcast %47 : vector<1x32xf32> to vector<64x32xf32>
    %199 = arith.addf %197, %198 : vector<64x32xf32>
    %200 = arith.addf %185, %199 : vector<64x32xf32>
    %cst_75 = arith.constant dense<0.000000e+00> : vector<64xf32>
    %201 = vector.multi_reduction <add>, %200, %cst_75 [1] : vector<64x32xf32> to vector<64xf32>
    %202 = vector.shape_cast %201 : vector<64xf32> to vector<64x1xf32>
    %cst_76 = arith.constant 3.200000e+01 : f32
    %203 = vector.broadcast %cst_76 : f32 to vector<64x1xf32>
    %204 = arith.divf %202, %203 : vector<64x1xf32>
    %205 = vector.broadcast %204 : vector<64x1xf32> to vector<64x32xf32>
    %206 = arith.subf %200, %205 : vector<64x32xf32>
    %207 = arith.mulf %206, %206 : vector<64x32xf32>
    %cst_77 = arith.constant dense<0.000000e+00> : vector<64xf32>
    %208 = vector.multi_reduction <add>, %207, %cst_77 [1] : vector<64x32xf32> to vector<64xf32>
    %209 = vector.shape_cast %208 : vector<64xf32> to vector<64x1xf32>
    %cst_78 = arith.constant 3.200000e+01 : f32
    %210 = vector.broadcast %cst_78 : f32 to vector<64x1xf32>
    %211 = arith.divf %209, %210 : vector<64x1xf32>
    %212 = vector.broadcast %204 : vector<64x1xf32> to vector<64x32xf32>
    %213 = arith.subf %200, %212 : vector<64x32xf32>
    %cst_79 = arith.constant 9.99999974E-6 : f32
    %214 = vector.broadcast %cst_79 : f32 to vector<64x1xf32>
    %215 = arith.addf %211, %214 : vector<64x1xf32>
    %216 = math.rsqrt %215 : vector<64x1xf32>
    %217 = vector.broadcast %216 : vector<64x1xf32> to vector<64x32xf32>
    %218 = arith.mulf %213, %217 : vector<64x32xf32>
    %219 = vector.broadcast %50 : vector<1x32xf32> to vector<64x32xf32>
    %220 = arith.mulf %218, %219 : vector<64x32xf32>
    %221 = vector.broadcast %51 : vector<1x32xf32> to vector<64x32xf32>
    %222 = arith.addf %220, %221 : vector<64x32xf32>
    %c1_80 = arith.constant 1 : index
    %c0_81 = arith.constant 0 : index
    %c0_82 = arith.constant 0 : index
    %223 = vector.load %arg8[%c1_80, %c0_81, %c0_82] : memref<2x10x64xf32, #tpu.memory_space<vmem>>, vector<1x10x64xf32>
    %224 = vector.shape_cast %223 : vector<1x10x64xf32> to vector<10x64xf32>
    %225 = vector.extract_strided_slice %224 {offsets = [0, 0], sizes = [1, 32], strides = [1, 1]} : vector<10x64xf32> to vector<1x32xf32>
    %226 = vector.extract_strided_slice %224 {offsets = [1, 0], sizes = [1, 32], strides = [1, 1]} : vector<10x64xf32> to vector<1x32xf32>
    %227 = vector.extract_strided_slice %224 {offsets = [2, 0], sizes = [1, 32], strides = [1, 1]} : vector<10x64xf32> to vector<1x32xf32>
    %228 = vector.extract_strided_slice %224 {offsets = [3, 0], sizes = [1, 32], strides = [1, 1]} : vector<10x64xf32> to vector<1x32xf32>
    %229 = vector.extract_strided_slice %224 {offsets = [4, 0], sizes = [1, 64], strides = [1, 1]} : vector<10x64xf32> to vector<1x64xf32>
    %230 = vector.extract_strided_slice %224 {offsets = [5, 0], sizes = [1, 32], strides = [1, 1]} : vector<10x64xf32> to vector<1x32xf32>
    %231 = vector.extract_strided_slice %224 {offsets = [6, 0], sizes = [1, 32], strides = [1, 1]} : vector<10x64xf32> to vector<1x32xf32>
    %232 = vector.extract_strided_slice %224 {offsets = [7, 0], sizes = [1, 32], strides = [1, 1]} : vector<10x64xf32> to vector<1x32xf32>
    %233 = vector.extract_strided_slice %224 {offsets = [8, 0], sizes = [1, 32], strides = [1, 1]} : vector<10x64xf32> to vector<1x32xf32>
    %234 = vector.extract_strided_slice %224 {offsets = [9, 0], sizes = [1, 32], strides = [1, 1]} : vector<10x64xf32> to vector<1x32xf32>
    %235 = arith.truncf %222 : vector<64x32xf32> to vector<64x32xbf16>
    %c1_83 = arith.constant 1 : index
    %c0_84 = arith.constant 0 : index
    %c0_85 = arith.constant 0 : index
    %c0_86 = arith.constant 0 : index
    %236 = vector.load %arg5[%c1_83, %c0_84, %c0_85, %c0_86] : memref<2x4x32x32xbf16, #tpu.memory_space<vmem>>, vector<1x1x32x32xbf16>
    %237 = vector.shape_cast %236 : vector<1x1x32x32xbf16> to vector<32x32xbf16>
    %cst_87 = arith.constant dense<0.000000e+00> : vector<64x32xf32>
    %238 = tpu.matmul %235, %237, %cst_87 {dimension_numbers = #tpu.dot_dimension_numbers<[1], [0], [0], [1], [0, 0, 1, 1], [], []>} : vector<64x32xbf16>, vector<32x32xbf16>, vector<64x32xf32> -> vector<64x32xf32>
    %239 = vector.broadcast %225 : vector<1x32xf32> to vector<64x32xf32>
    %240 = arith.addf %238, %239 : vector<64x32xf32>
    %c1_88 = arith.constant 1 : index
    %c1_89 = arith.constant 1 : index
    %c0_90 = arith.constant 0 : index
    %c0_91 = arith.constant 0 : index
    %241 = vector.load %arg5[%c1_88, %c1_89, %c0_90, %c0_91] : memref<2x4x32x32xbf16, #tpu.memory_space<vmem>>, vector<1x1x32x32xbf16>
    %242 = vector.shape_cast %241 : vector<1x1x32x32xbf16> to vector<32x32xbf16>
    %cst_92 = arith.constant dense<0.000000e+00> : vector<64x32xf32>
    %243 = tpu.matmul %235, %242, %cst_92 {dimension_numbers = #tpu.dot_dimension_numbers<[1], [0], [0], [1], [0, 0, 1, 1], [], []>} : vector<64x32xbf16>, vector<32x32xbf16>, vector<64x32xf32> -> vector<64x32xf32>
    %244 = vector.broadcast %226 : vector<1x32xf32> to vector<64x32xf32>
    %245 = arith.addf %243, %244 : vector<64x32xf32>
    %c1_93 = arith.constant 1 : index
    %c2_94 = arith.constant 2 : index
    %c0_95 = arith.constant 0 : index
    %c0_96 = arith.constant 0 : index
    %246 = vector.load %arg5[%c1_93, %c2_94, %c0_95, %c0_96] : memref<2x4x32x32xbf16, #tpu.memory_space<vmem>>, vector<1x1x32x32xbf16>
    %247 = vector.shape_cast %246 : vector<1x1x32x32xbf16> to vector<32x32xbf16>
    %cst_97 = arith.constant dense<0.000000e+00> : vector<64x32xf32>
    %248 = tpu.matmul %235, %247, %cst_97 {dimension_numbers = #tpu.dot_dimension_numbers<[1], [0], [0], [1], [0, 0, 1, 1], [], []>} : vector<64x32xbf16>, vector<32x32xbf16>, vector<64x32xf32> -> vector<64x32xf32>
    %249 = vector.broadcast %227 : vector<1x32xf32> to vector<64x32xf32>
    %250 = arith.addf %248, %249 : vector<64x32xf32>
    %cst_98 = arith.constant 0.000000e+00 : f32
    %251 = vector.broadcast %cst_98 : f32 to vector<64x32xf32>
    %252 = vector.broadcast %18 : vector<1x32xf32> to vector<64x32xf32>
    %253 = arith.mulf %240, %252 : vector<64x32xf32>
    %cst_99 = arith.constant dense<0.000000e+00> : vector<64x64xf32>
    %254 = tpu.matmul %253, %245, %cst_99 {dimension_numbers = #tpu.dot_dimension_numbers<[1], [1], [0], [0], [0, 0, 1, 0], [], []>} : vector<64x32xf32>, vector<64x32xf32>, vector<64x64xf32> -> vector<64x64xf32>
    %cst_100 = arith.constant 0.353553385 : f32
    %255 = vector.broadcast %cst_100 : f32 to vector<64x64xf32>
    %256 = arith.mulf %254, %255 : vector<64x64xf32>
    %cst_101 = arith.constant -5.000000e+00 : f32
    %cst_102 = arith.constant 5.000000e+00 : f32
    %257 = vector.broadcast %cst_101 : f32 to vector<64x64xf32>
    %258 = arith.maximumf %257, %256 : vector<64x64xf32>
    %259 = vector.broadcast %cst_102 : f32 to vector<64x64xf32>
    %260 = arith.minimumf %259, %258 : vector<64x64xf32>
    %261 = math.exp %260 : vector<64x64xf32>
    %262 = arith.mulf %261, %3 : vector<64x64xf32>
    %cst_103 = arith.constant dense<0.000000e+00> : vector<64x32xf32>
    %263 = tpu.matmul %262, %250, %cst_103 {dimension_numbers = #tpu.dot_dimension_numbers<[1], [0], [0], [1], [0, 0, 1, 1], [], []>} : vector<64x64xf32>, vector<64x32xf32>, vector<64x32xf32> -> vector<64x32xf32>
    %cst_104 = arith.constant dense<0.000000e+00> : vector<64xf32>
    %264 = vector.multi_reduction <add>, %262, %cst_104 [1] : vector<64x64xf32> to vector<64xf32>
    %265 = vector.shape_cast %264 : vector<64xf32> to vector<64x1xf32>
    %cst_105 = arith.constant 9.99999997E-7 : f32
    %266 = vector.broadcast %cst_105 : f32 to vector<64x1xf32>
    %267 = arith.addf %265, %266 : vector<64x1xf32>
    %268 = tpu.reciprocal %267 {approx = true} : vector<64x1xf32> -> vector<64x1xf32>
    %269 = vector.broadcast %268 : vector<64x1xf32> to vector<64x32xf32>
    %270 = arith.mulf %263, %269 : vector<64x32xf32>
    %271 = vector.broadcast %18 : vector<1x32xf32> to vector<64x32xf32>
    %272 = arith.mulf %270, %271 : vector<64x32xf32>
    %273 = arith.addf %251, %272 : vector<64x32xf32>
    %274 = vector.broadcast %25 : vector<1x32xf32> to vector<64x32xf32>
    %275 = arith.mulf %240, %274 : vector<64x32xf32>
    %cst_106 = arith.constant dense<0.000000e+00> : vector<64x64xf32>
    %276 = tpu.matmul %275, %245, %cst_106 {dimension_numbers = #tpu.dot_dimension_numbers<[1], [1], [0], [0], [0, 0, 1, 0], [], []>} : vector<64x32xf32>, vector<64x32xf32>, vector<64x64xf32> -> vector<64x64xf32>
    %cst_107 = arith.constant 0.353553385 : f32
    %277 = vector.broadcast %cst_107 : f32 to vector<64x64xf32>
    %278 = arith.mulf %276, %277 : vector<64x64xf32>
    %cst_108 = arith.constant -5.000000e+00 : f32
    %cst_109 = arith.constant 5.000000e+00 : f32
    %279 = vector.broadcast %cst_108 : f32 to vector<64x64xf32>
    %280 = arith.maximumf %279, %278 : vector<64x64xf32>
    %281 = vector.broadcast %cst_109 : f32 to vector<64x64xf32>
    %282 = arith.minimumf %281, %280 : vector<64x64xf32>
    %283 = math.exp %282 : vector<64x64xf32>
    %284 = arith.mulf %283, %3 : vector<64x64xf32>
    %cst_110 = arith.constant dense<0.000000e+00> : vector<64x32xf32>
    %285 = tpu.matmul %284, %250, %cst_110 {dimension_numbers = #tpu.dot_dimension_numbers<[1], [0], [0], [1], [0, 0, 1, 1], [], []>} : vector<64x64xf32>, vector<64x32xf32>, vector<64x32xf32> -> vector<64x32xf32>
    %cst_111 = arith.constant dense<0.000000e+00> : vector<64xf32>
    %286 = vector.multi_reduction <add>, %284, %cst_111 [1] : vector<64x64xf32> to vector<64xf32>
    %287 = vector.shape_cast %286 : vector<64xf32> to vector<64x1xf32>
    %cst_112 = arith.constant 9.99999997E-7 : f32
    %288 = vector.broadcast %cst_112 : f32 to vector<64x1xf32>
    %289 = arith.addf %287, %288 : vector<64x1xf32>
    %290 = tpu.reciprocal %289 {approx = true} : vector<64x1xf32> -> vector<64x1xf32>
    %291 = vector.broadcast %290 : vector<64x1xf32> to vector<64x32xf32>
    %292 = arith.mulf %285, %291 : vector<64x32xf32>
    %293 = vector.broadcast %25 : vector<1x32xf32> to vector<64x32xf32>
    %294 = arith.mulf %292, %293 : vector<64x32xf32>
    %295 = arith.addf %273, %294 : vector<64x32xf32>
    %296 = vector.broadcast %32 : vector<1x32xf32> to vector<64x32xf32>
    %297 = arith.mulf %240, %296 : vector<64x32xf32>
    %cst_113 = arith.constant dense<0.000000e+00> : vector<64x64xf32>
    %298 = tpu.matmul %297, %245, %cst_113 {dimension_numbers = #tpu.dot_dimension_numbers<[1], [1], [0], [0], [0, 0, 1, 0], [], []>} : vector<64x32xf32>, vector<64x32xf32>, vector<64x64xf32> -> vector<64x64xf32>
    %cst_114 = arith.constant 0.353553385 : f32
    %299 = vector.broadcast %cst_114 : f32 to vector<64x64xf32>
    %300 = arith.mulf %298, %299 : vector<64x64xf32>
    %cst_115 = arith.constant -5.000000e+00 : f32
    %cst_116 = arith.constant 5.000000e+00 : f32
    %301 = vector.broadcast %cst_115 : f32 to vector<64x64xf32>
    %302 = arith.maximumf %301, %300 : vector<64x64xf32>
    %303 = vector.broadcast %cst_116 : f32 to vector<64x64xf32>
    %304 = arith.minimumf %303, %302 : vector<64x64xf32>
    %305 = math.exp %304 : vector<64x64xf32>
    %306 = arith.mulf %305, %3 : vector<64x64xf32>
    %cst_117 = arith.constant dense<0.000000e+00> : vector<64x32xf32>
    %307 = tpu.matmul %306, %250, %cst_117 {dimension_numbers = #tpu.dot_dimension_numbers<[1], [0], [0], [1], [0, 0, 1, 1], [], []>} : vector<64x64xf32>, vector<64x32xf32>, vector<64x32xf32> -> vector<64x32xf32>
    %cst_118 = arith.constant dense<0.000000e+00> : vector<64xf32>
    %308 = vector.multi_reduction <add>, %306, %cst_118 [1] : vector<64x64xf32> to vector<64xf32>
    %309 = vector.shape_cast %308 : vector<64xf32> to vector<64x1xf32>
    %cst_119 = arith.constant 9.99999997E-7 : f32
    %310 = vector.broadcast %cst_119 : f32 to vector<64x1xf32>
    %311 = arith.addf %309, %310 : vector<64x1xf32>
    %312 = tpu.reciprocal %311 {approx = true} : vector<64x1xf32> -> vector<64x1xf32>
    %313 = vector.broadcast %312 : vector<64x1xf32> to vector<64x32xf32>
    %314 = arith.mulf %307, %313 : vector<64x32xf32>
    %315 = vector.broadcast %32 : vector<1x32xf32> to vector<64x32xf32>
    %316 = arith.mulf %314, %315 : vector<64x32xf32>
    %317 = arith.addf %295, %316 : vector<64x32xf32>
    %318 = vector.broadcast %39 : vector<1x32xf32> to vector<64x32xf32>
    %319 = arith.mulf %240, %318 : vector<64x32xf32>
    %cst_120 = arith.constant dense<0.000000e+00> : vector<64x64xf32>
    %320 = tpu.matmul %319, %245, %cst_120 {dimension_numbers = #tpu.dot_dimension_numbers<[1], [1], [0], [0], [0, 0, 1, 0], [], []>} : vector<64x32xf32>, vector<64x32xf32>, vector<64x64xf32> -> vector<64x64xf32>
    %cst_121 = arith.constant 0.353553385 : f32
    %321 = vector.broadcast %cst_121 : f32 to vector<64x64xf32>
    %322 = arith.mulf %320, %321 : vector<64x64xf32>
    %cst_122 = arith.constant -5.000000e+00 : f32
    %cst_123 = arith.constant 5.000000e+00 : f32
    %323 = vector.broadcast %cst_122 : f32 to vector<64x64xf32>
    %324 = arith.maximumf %323, %322 : vector<64x64xf32>
    %325 = vector.broadcast %cst_123 : f32 to vector<64x64xf32>
    %326 = arith.minimumf %325, %324 : vector<64x64xf32>
    %327 = math.exp %326 : vector<64x64xf32>
    %328 = arith.mulf %327, %3 : vector<64x64xf32>
    %cst_124 = arith.constant dense<0.000000e+00> : vector<64x32xf32>
    %329 = tpu.matmul %328, %250, %cst_124 {dimension_numbers = #tpu.dot_dimension_numbers<[1], [0], [0], [1], [0, 0, 1, 1], [], []>} : vector<64x64xf32>, vector<64x32xf32>, vector<64x32xf32> -> vector<64x32xf32>
    %cst_125 = arith.constant dense<0.000000e+00> : vector<64xf32>
    %330 = vector.multi_reduction <add>, %328, %cst_125 [1] : vector<64x64xf32> to vector<64xf32>
    %331 = vector.shape_cast %330 : vector<64xf32> to vector<64x1xf32>
    %cst_126 = arith.constant 9.99999997E-7 : f32
    %332 = vector.broadcast %cst_126 : f32 to vector<64x1xf32>
    %333 = arith.addf %331, %332 : vector<64x1xf32>
    %334 = tpu.reciprocal %333 {approx = true} : vector<64x1xf32> -> vector<64x1xf32>
    %335 = vector.broadcast %334 : vector<64x1xf32> to vector<64x32xf32>
    %336 = arith.mulf %329, %335 : vector<64x32xf32>
    %337 = vector.broadcast %39 : vector<1x32xf32> to vector<64x32xf32>
    %338 = arith.mulf %336, %337 : vector<64x32xf32>
    %339 = arith.addf %317, %338 : vector<64x32xf32>
    %340 = arith.truncf %339 : vector<64x32xf32> to vector<64x32xbf16>
    %c1_127 = arith.constant 1 : index
    %c3_128 = arith.constant 3 : index
    %c0_129 = arith.constant 0 : index
    %c0_130 = arith.constant 0 : index
    %341 = vector.load %arg5[%c1_127, %c3_128, %c0_129, %c0_130] : memref<2x4x32x32xbf16, #tpu.memory_space<vmem>>, vector<1x1x32x32xbf16>
    %342 = vector.shape_cast %341 : vector<1x1x32x32xbf16> to vector<32x32xbf16>
    %cst_131 = arith.constant dense<0.000000e+00> : vector<64x32xf32>
    %343 = tpu.matmul %340, %342, %cst_131 {dimension_numbers = #tpu.dot_dimension_numbers<[1], [0], [0], [1], [0, 0, 1, 1], [], []>} : vector<64x32xbf16>, vector<32x32xbf16>, vector<64x32xf32> -> vector<64x32xf32>
    %344 = vector.broadcast %228 : vector<1x32xf32> to vector<64x32xf32>
    %345 = arith.addf %343, %344 : vector<64x32xf32>
    %346 = arith.addf %222, %345 : vector<64x32xf32>
    %cst_132 = arith.constant dense<0.000000e+00> : vector<64xf32>
    %347 = vector.multi_reduction <add>, %346, %cst_132 [1] : vector<64x32xf32> to vector<64xf32>
    %348 = vector.shape_cast %347 : vector<64xf32> to vector<64x1xf32>
    %cst_133 = arith.constant 3.200000e+01 : f32
    %349 = vector.broadcast %cst_133 : f32 to vector<64x1xf32>
    %350 = arith.divf %348, %349 : vector<64x1xf32>
    %351 = vector.broadcast %350 : vector<64x1xf32> to vector<64x32xf32>
    %352 = arith.subf %346, %351 : vector<64x32xf32>
    %353 = arith.mulf %352, %352 : vector<64x32xf32>
    %cst_134 = arith.constant dense<0.000000e+00> : vector<64xf32>
    %354 = vector.multi_reduction <add>, %353, %cst_134 [1] : vector<64x32xf32> to vector<64xf32>
    %355 = vector.shape_cast %354 : vector<64xf32> to vector<64x1xf32>
    %cst_135 = arith.constant 3.200000e+01 : f32
    %356 = vector.broadcast %cst_135 : f32 to vector<64x1xf32>
    %357 = arith.divf %355, %356 : vector<64x1xf32>
    %358 = vector.broadcast %350 : vector<64x1xf32> to vector<64x32xf32>
    %359 = arith.subf %346, %358 : vector<64x32xf32>
    %cst_136 = arith.constant 9.99999974E-6 : f32
    %360 = vector.broadcast %cst_136 : f32 to vector<64x1xf32>
    %361 = arith.addf %357, %360 : vector<64x1xf32>
    %362 = math.rsqrt %361 : vector<64x1xf32>
    %363 = vector.broadcast %362 : vector<64x1xf32> to vector<64x32xf32>
    %364 = arith.mulf %359, %363 : vector<64x32xf32>
    %365 = vector.broadcast %231 : vector<1x32xf32> to vector<64x32xf32>
    %366 = arith.mulf %364, %365 : vector<64x32xf32>
    %367 = vector.broadcast %232 : vector<1x32xf32> to vector<64x32xf32>
    %368 = arith.addf %366, %367 : vector<64x32xf32>
    %369 = arith.truncf %368 : vector<64x32xf32> to vector<64x32xbf16>
    %c1_137 = arith.constant 1 : index
    %c0_138 = arith.constant 0 : index
    %c0_139 = arith.constant 0 : index
    %370 = vector.load %arg6[%c1_137, %c0_138, %c0_139] : memref<2x32x64xbf16, #tpu.memory_space<vmem>>, vector<1x32x64xbf16>
    %371 = vector.shape_cast %370 : vector<1x32x64xbf16> to vector<32x64xbf16>
    %cst_140 = arith.constant dense<0.000000e+00> : vector<64x64xf32>
    %372 = tpu.matmul %369, %371, %cst_140 {dimension_numbers = #tpu.dot_dimension_numbers<[1], [0], [0], [1], [0, 0, 1, 1], [], []>} : vector<64x32xbf16>, vector<32x64xbf16>, vector<64x64xf32> -> vector<64x64xf32>
    %373 = vector.broadcast %229 : vector<1x64xf32> to vector<64x64xf32>
    %374 = arith.addf %372, %373 : vector<64x64xf32>
    %cst_141 = arith.constant 0.000000e+00 : f32
    %375 = vector.broadcast %cst_141 : f32 to vector<64x64xf32>
    %376 = arith.maximumf %374, %375 : vector<64x64xf32>
    %377 = arith.truncf %376 : vector<64x64xf32> to vector<64x64xbf16>
    %c1_142 = arith.constant 1 : index
    %c0_143 = arith.constant 0 : index
    %c0_144 = arith.constant 0 : index
    %378 = vector.load %arg7[%c1_142, %c0_143, %c0_144] : memref<2x64x32xbf16, #tpu.memory_space<vmem>>, vector<1x64x32xbf16>
    %379 = vector.shape_cast %378 : vector<1x64x32xbf16> to vector<64x32xbf16>
    %cst_145 = arith.constant dense<0.000000e+00> : vector<64x32xf32>
    %380 = tpu.matmul %377, %379, %cst_145 {dimension_numbers = #tpu.dot_dimension_numbers<[1], [0], [0], [1], [0, 0, 1, 1], [], []>} : vector<64x64xbf16>, vector<64x32xbf16>, vector<64x32xf32> -> vector<64x32xf32>
    %381 = vector.broadcast %230 : vector<1x32xf32> to vector<64x32xf32>
    %382 = arith.addf %380, %381 : vector<64x32xf32>
    %383 = arith.addf %368, %382 : vector<64x32xf32>
    %cst_146 = arith.constant dense<0.000000e+00> : vector<64xf32>
    %384 = vector.multi_reduction <add>, %383, %cst_146 [1] : vector<64x32xf32> to vector<64xf32>
    %385 = vector.shape_cast %384 : vector<64xf32> to vector<64x1xf32>
    %cst_147 = arith.constant 3.200000e+01 : f32
    %386 = vector.broadcast %cst_147 : f32 to vector<64x1xf32>
    %387 = arith.divf %385, %386 : vector<64x1xf32>
    %388 = vector.broadcast %387 : vector<64x1xf32> to vector<64x32xf32>
    %389 = arith.subf %383, %388 : vector<64x32xf32>
    %390 = arith.mulf %389, %389 : vector<64x32xf32>
    %cst_148 = arith.constant dense<0.000000e+00> : vector<64xf32>
    %391 = vector.multi_reduction <add>, %390, %cst_148 [1] : vector<64x32xf32> to vector<64xf32>
    %392 = vector.shape_cast %391 : vector<64xf32> to vector<64x1xf32>
    %cst_149 = arith.constant 3.200000e+01 : f32
    %393 = vector.broadcast %cst_149 : f32 to vector<64x1xf32>
    %394 = arith.divf %392, %393 : vector<64x1xf32>
    %395 = vector.broadcast %387 : vector<64x1xf32> to vector<64x32xf32>
    %396 = arith.subf %383, %395 : vector<64x32xf32>
    %cst_150 = arith.constant 9.99999974E-6 : f32
    %397 = vector.broadcast %cst_150 : f32 to vector<64x1xf32>
    %398 = arith.addf %394, %397 : vector<64x1xf32>
    %399 = math.rsqrt %398 : vector<64x1xf32>
    %400 = vector.broadcast %399 : vector<64x1xf32> to vector<64x32xf32>
    %401 = arith.mulf %396, %400 : vector<64x32xf32>
    %402 = vector.broadcast %233 : vector<1x32xf32> to vector<64x32xf32>
    %403 = arith.mulf %401, %402 : vector<64x32xf32>
    %404 = vector.broadcast %234 : vector<1x32xf32> to vector<64x32xf32>
    %405 = arith.addf %403, %404 : vector<64x32xf32>
    %c0_151 = arith.constant 0 : index
    %c0_152 = arith.constant 0 : index
    %406 = vector.load %arg9[%c0_151, %c0_152] : memref<32x16xf32, #tpu.memory_space<vmem>>, vector<32x16xf32>
    %cst_153 = arith.constant dense<0.000000e+00> : vector<64x16xf32>
    %407 = tpu.matmul %405, %406, %cst_153 {dimension_numbers = #tpu.dot_dimension_numbers<[1], [0], [0], [1], [0, 0, 1, 1], [], []>} : vector<64x32xf32>, vector<32x16xf32>, vector<64x16xf32> -> vector<64x16xf32>
    %408 = vector.extract_strided_slice %4 {offsets = [1, 0], sizes = [1, 16], strides = [1, 1]} : vector<4x32xf32> to vector<1x16xf32>
    %409 = vector.broadcast %408 : vector<1x16xf32> to vector<64x16xf32>
    %410 = arith.addf %407, %409 : vector<64x16xf32>
    %cst_154 = arith.constant 0.000000e+00 : f32
    %411 = vector.broadcast %cst_154 : f32 to vector<64x16xf32>
    %412 = arith.maximumf %410, %411 : vector<64x16xf32>
    %c0_155 = arith.constant 0 : index
    %c0_156 = arith.constant 0 : index
    %413 = vector.load %arg10[%c0_155, %c0_156] : memref<16x8xf32, #tpu.memory_space<vmem>>, vector<16x8xf32>
    %cst_157 = arith.constant dense<0.000000e+00> : vector<64x8xf32>
    %414 = tpu.matmul %412, %413, %cst_157 {dimension_numbers = #tpu.dot_dimension_numbers<[1], [0], [0], [1], [0, 0, 1, 1], [], []>} : vector<64x16xf32>, vector<16x8xf32>, vector<64x8xf32> -> vector<64x8xf32>
    %415 = vector.extract_strided_slice %4 {offsets = [2, 0], sizes = [1, 8], strides = [1, 1]} : vector<4x32xf32> to vector<1x8xf32>
    %416 = vector.broadcast %415 : vector<1x8xf32> to vector<64x8xf32>
    %417 = arith.addf %414, %416 : vector<64x8xf32>
    %cst_158 = arith.constant 0.000000e+00 : f32
    %418 = vector.broadcast %cst_158 : f32 to vector<64x8xf32>
    %419 = arith.maximumf %417, %418 : vector<64x8xf32>
    %c0_159 = arith.constant 0 : index
    %c0_160 = arith.constant 0 : index
    %420 = vector.load %arg11[%c0_159, %c0_160] : memref<8x8xf32, #tpu.memory_space<vmem>>, vector<8x8xf32>
    %cst_161 = arith.constant dense<0.000000e+00> : vector<64x8xf32>
    %421 = tpu.matmul %419, %420, %cst_161 {dimension_numbers = #tpu.dot_dimension_numbers<[1], [0], [0], [1], [0, 0, 1, 1], [], []>} : vector<64x8xf32>, vector<8x8xf32>, vector<64x8xf32> -> vector<64x8xf32>
    %422 = vector.extract_strided_slice %4 {offsets = [3, 0], sizes = [1, 8], strides = [1, 1]} : vector<4x32xf32> to vector<1x8xf32>
    %423 = vector.broadcast %422 : vector<1x8xf32> to vector<64x8xf32>
    %424 = arith.addf %421, %423 : vector<64x8xf32>
    %c0_162 = arith.constant 0 : index
    %c0_163 = arith.constant 0 : index
    %c0_164 = arith.constant 0 : index
    %425 = vector.load %arg12[%c0_162, %c0_163, %c0_164] : memref<1x64x8xf32, #tpu.memory_space<vmem>>, vector<1x64x8xf32>
    %426 = vector.shape_cast %425 : vector<1x64x8xf32> to vector<64x8xf32>
    %427 = vector.shape_cast %424 : vector<64x8xf32> to vector<1x64x8xf32>
    tpu.vector_store %arg12[%c0_162, %c0_163, %c0_164], %427 {strides = array<i32>} : memref<1x64x8xf32, #tpu.memory_space<vmem>>, vector<1x64x8xf32>,
    return
  }
  func.func @transform_0(%arg0: i32) -> (i32, i32, i32) {
    %c0_i32 = arith.constant 0 : i32
    %c0_i32_0 = arith.constant 0 : i32
    %c0_i32_1 = arith.constant 0 : i32
    return %arg0, %c0_i32, %c0_i32_0 : i32, i32, i32
  }
  func.func @transform_1(%arg0: i32) -> (i32, i32, i32) {
    %c0_i32 = arith.constant 0 : i32
    %c0_i32_0 = arith.constant 0 : i32
    %c0_i32_1 = arith.constant 0 : i32
    return %arg0, %c0_i32, %c0_i32_0 : i32, i32, i32
  }
  func.func @transform_2(%arg0: i32) -> (i32, i32) {
    %c0_i32 = arith.constant 0 : i32
    %c0_i32_0 = arith.constant 0 : i32
    %c0_i32_1 = arith.constant 0 : i32
    return %c0_i32, %c0_i32_0 : i32, i32
  }
  func.func @transform_3(%arg0: i32) -> (i32, i32) {
    %c0_i32 = arith.constant 0 : i32
    %c0_i32_0 = arith.constant 0 : i32
    %c0_i32_1 = arith.constant 0 : i32
    return %c0_i32, %c0_i32_0 : i32, i32
  }
  func.func @transform_4(%arg0: i32) -> (i32, i32, i32, i32) {
    %c0_i32 = arith.constant 0 : i32
    %c0_i32_0 = arith.constant 0 : i32
    %c0_i32_1 = arith.constant 0 : i32
    %c0_i32_2 = arith.constant 0 : i32
    %c0_i32_3 = arith.constant 0 : i32
    return %c0_i32, %c0_i32_0, %c0_i32_1, %c0_i32_2 : i32, i32, i32, i32
  }
  func.func @transform_5(%arg0: i32) -> (i32, i32, i32) {
    %c0_i32 = arith.constant 0 : i32
    %c0_i32_0 = arith.constant 0 : i32
    %c0_i32_1 = arith.constant 0 : i32
    %c0_i32_2 = arith.constant 0 : i32
    return %c0_i32, %c0_i32_0, %c0_i32_1 : i32, i32, i32
  }
  func.func @transform_6(%arg0: i32) -> (i32, i32, i32) {
    %c0_i32 = arith.constant 0 : i32
    %c0_i32_0 = arith.constant 0 : i32
    %c0_i32_1 = arith.constant 0 : i32
    %c0_i32_2 = arith.constant 0 : i32
    return %c0_i32, %c0_i32_0, %c0_i32_1 : i32, i32, i32
  }
  func.func @transform_7(%arg0: i32) -> (i32, i32, i32) {
    %c0_i32 = arith.constant 0 : i32
    %c0_i32_0 = arith.constant 0 : i32
    %c0_i32_1 = arith.constant 0 : i32
    %c0_i32_2 = arith.constant 0 : i32
    return %c0_i32, %c0_i32_0, %c0_i32_1 : i32, i32, i32
  }
  func.func @transform_8(%arg0: i32) -> (i32, i32) {
    %c0_i32 = arith.constant 0 : i32
    %c0_i32_0 = arith.constant 0 : i32
    %c0_i32_1 = arith.constant 0 : i32
    return %c0_i32, %c0_i32_0 : i32, i32
  }
  func.func @transform_9(%arg0: i32) -> (i32, i32) {
    %c0_i32 = arith.constant 0 : i32
    %c0_i32_0 = arith.constant 0 : i32
    %c0_i32_1 = arith.constant 0 : i32
    return %c0_i32, %c0_i32_0 : i32, i32
  }
  func.func @transform_10(%arg0: i32) -> (i32, i32) {
    %c0_i32 = arith.constant 0 : i32
    %c0_i32_0 = arith.constant 0 : i32
    %c0_i32_1 = arith.constant 0 : i32
    return %c0_i32, %c0_i32_0 : i32, i32
  }
  func.func @transform_11(%arg0: i32) -> (i32, i32, i32) {
    %c0_i32 = arith.constant 0 : i32
    %c0_i32_0 = arith.constant 0 : i32
    %c0_i32_1 = arith.constant 0 : i32
    return %arg0, %c0_i32, %c0_i32_0 : i32, i32, i32
  }
}

</mosaic_0001>

<llo_original>
// kernel: tpu_custom_call.1
$region0: #{tpu_custom_call.1}
  #allocation0 [shape = 'u32[]', space=smem, size = 0x4, offset = 0x4, fixed_abs, tag = 'smem constant byte address 0x4 - core index']
  #allocation1 [shape = 'u32[144,128]{1,0:T(1,128)}', space=vmem, size = 0x12000, scoped, tag = 'internal scratch']
  %s0 = inlined_call_operand.vmem [shape: f32[8,64,16], index: 0, kind: input, shape index: {}]
  %s1 = inlined_call_operand.vmem [shape: f32[8,64,64], index: 1, kind: input, shape index: {}]
  %s2 = inlined_call_operand.vmem [shape: bf16[16,32], index: 2, kind: input, shape index: {}]
  %s3 = inlined_call_operand.vmem [shape: f32[4,32], index: 3, kind: input, shape index: {}]
  %s4 = inlined_call_operand.vmem [shape: bf16[2,4,32,32], index: 4, kind: input, shape index: {}]
  %s5 = inlined_call_operand.vmem [shape: bf16[2,32,64], index: 5, kind: input, shape index: {}]
  %s6 = inlined_call_operand.vmem [shape: bf16[2,64,32], index: 6, kind: input, shape index: {}]
  %s7 = inlined_call_operand.vmem [shape: f32[2,10,64], index: 7, kind: input, shape index: {}]
  %s8 = inlined_call_operand.vmem [shape: f32[32,16], index: 8, kind: input, shape index: {}]
  %s9 = inlined_call_operand.vmem [shape: f32[16,8], index: 9, kind: input, shape index: {}]
  %s10 = inlined_call_operand.vmem [shape: f32[8,8], index: 10, kind: input, shape index: {}]
  %s11 = inlined_call_operand.vmem [shape: f32[8,64,8], index: 11, kind: output, shape index: {}]
  %s12 = sld [smem:[#allocation0]]
  $region77: #{tpu_custom_call.1} parent=0
    _
  %s14 = ssub.s32 1, %s12
  %s15 = scalar_select 0, %s14, %s12
  loop: start=0, step=1, limit=10
  $region2: #{tpu_custom_call.1} parent=0 // loop_pre_header
    _
  $region3: #{tpu_custom_call.1} parent=0 // loop_header
    %s17 = sphi 0, %s21
    %p18 = scmp.ge.s32.totalorder %s17, 10
    %s27 = sphi 0, %s29
    %s30 = sphi 0, %s27
    %s31 = sphi 0, %s30
    %s47 = sphi 0, %s31
    %s53 = sphi 0, %s55
    %s56 = sphi 0, %s53
    %s57 = sphi 0, %s56
    %s73 = sphi 0, %s57
    %s77 = sphi 0, %s77
    %s79 = sphi 0, %s77
    %s80 = sphi 0, %s79
    %s94 = sphi 0, %s80
    %s98 = sphi 0, %s98
    %s100 = sphi 0, %s98
    %s101 = sphi 0, %s100
    %s115 = sphi 0, %s101
    %s119 = sphi 0, %s119
    %s121 = sphi 0, %s119
    %s122 = sphi 0, %s121
    %s136 = sphi 0, %s122
    %s140 = sphi 0, %s140
    %s142 = sphi 0, %s140
    %s143 = sphi 0, %s142
    %s157 = sphi 0, %s143
    %s161 = sphi 0, %s161
    %s163 = sphi 0, %s161
    %s164 = sphi 0, %s163
    %s178 = sphi 0, %s164
    %s182 = sphi 0, %s182
    %s184 = sphi 0, %s182
    %s185 = sphi 0, %s184
    %s199 = sphi 0, %s185
    %s203 = sphi 0, %s203
    %s205 = sphi 0, %s203
    %s206 = sphi 0, %s205
    %s220 = sphi 0, %s206
    %s224 = sphi 0, %s224
    %s226 = sphi 0, %s224
    %s227 = sphi 0, %s226
    %s241 = sphi 0, %s227
    %s245 = sphi 0, %s245
    %s247 = sphi 0, %s245
    %s248 = sphi 0, %s247
    %s262 = sphi 0, %s248
    %s268 = sphi 0, %s270
    %s271 = sphi 0, %s268
    %s272 = sphi 0, %s271
    %s288 = sphi 0, %s272
  $region4: #{tpu_custom_call.1} parent=0 // loop_header_branch
    %20 = sbr.rel (%p18) target = $region8
  $region5: #{tpu_custom_call.1} parent=0 // loop_body
    %s22 = ssub.s32 %s17, 1
    %s23 = ssub.s32 %s17, 2
    %s24 = sadd.s32 %s17, 1
    %s25 = ssub.s32 %s17, %s24
    %p26 = scmp.eq.s32.totalorder %s25, 0
    %s28 = sadd.s32 %s27, 1
    %s29 = scalar_select %p26, %s27, %s28
    %p32 = pneg %p26
    %p33 = scmp.eq.s32.totalorder %s17, 7
    %p34 = por %p32, %p33
    %p35 = scmp.ne.s32.totalorder %s27, %s30
    %p36 = scmp.eq.s32.totalorder %s17, 0
    %p37 = por %p35, %p36
    %p38 = scmp.ne.s32.totalorder %s27, %s30
    %p39 = scmp.eq.s32.totalorder %s22, 7
    %p40 = por %p38, %p39
    %p41 = scmp.ne.s32.totalorder %s30, %s31
    %p42 = scmp.eq.s32.totalorder %s22, 0
    %p43 = por %p41, %p42
    %p44 = scmp.ne.s32.totalorder %s30, %s31
    %p45 = scmp.eq.s32.totalorder %s23, 7
    %p46 = por %p44, %p45
    %p48 = scmp.ne.s32.totalorder %s31, %s47
    %p49 = scmp.eq.s32.totalorder %s23, 0
    %p50 = por %p48, %p49
    %s51 = ssub.s32 %s17, %s24
    %p52 = scmp.eq.s32.totalorder %s51, 0
    %s54 = sadd.s32 %s53, 1
    %s55 = scalar_select %p52, %s53, %s54
    %p58 = pneg %p52
    %p59 = scmp.eq.s32.totalorder %s17, 7
    %p60 = por %p58, %p59
    %p61 = scmp.ne.s32.totalorder %s53, %s56
    %p62 = scmp.eq.s32.totalorder %s17, 0
    %p63 = por %p61, %p62
    %p64 = scmp.ne.s32.totalorder %s53, %s56
    %p65 = scmp.eq.s32.totalorder %s22, 7
    %p66 = por %p64, %p65
    %p67 = scmp.ne.s32.totalorder %s56, %s57
    %p68 = scmp.eq.s32.totalorder %s22, 0
    %p69 = por %p67, %p68
    %p70 = scmp.ne.s32.totalorder %s56, %s57
    %p71 = scmp.eq.s32.totalorder %s23, 7
    %p72 = por %p70, %p71
    %p74 = scmp.ne.s32.totalorder %s57, %s73
    %p75 = scmp.eq.s32.totalorder %s23, 0
    %p76 = por %p74, %p75
    %s78 = sadd.s32 %s77, 1
    %p81 = scmp.eq.s32.totalorder %s17, 7
    %p82 = scmp.ne.s32.totalorder %s77, %s79
    %p83 = scmp.eq.s32.totalorder %s17, 0
    %p84 = por %p82, %p83
    %p85 = scmp.ne.s32.totalorder %s77, %s79
    %p86 = scmp.eq.s32.totalorder %s22, 7
    %p87 = por %p85, %p86
    %p88 = scmp.ne.s32.totalorder %s79, %s80
    %p89 = scmp.eq.s32.totalorder %s22, 0
    %p90 = por %p88, %p89
    %p91 = scmp.ne.s32.totalorder %s79, %s80
    %p92 = scmp.eq.s32.totalorder %s23, 7
    %p93 = por %p91, %p92
    %p95 = scmp.ne.s32.totalorder %s80, %s94
    %p96 = scmp.eq.s32.totalorder %s23, 0
    %p97 = por %p95, %p96
    %s99 = sadd.s32 %s98, 1
    %p102 = scmp.eq.s32.totalorder %s17, 7
    %p103 = scmp.ne.s32.totalorder %s98, %s100
    %p104 = scmp.eq.s32.totalorder %s17, 0
    %p105 = por %p103, %p104
    %p106 = scmp.ne.s32.totalorder %s98, %s100
    %p107 = scmp.eq.s32.totalorder %s22, 7
    %p108 = por %p106, %p107
    %p109 = scmp.ne.s32.totalorder %s100, %s101
    %p110 = scmp.eq.s32.totalorder %s22, 0
    %p111 = por %p109, %p110
    %p112 = scmp.ne.s32.totalorder %s100, %s101
    %p113 = scmp.eq.s32.totalorder %s23, 7
    %p114 = por %p112, %p113
    %p116 = scmp.ne.s32.totalorder %s101, %s115
    %p117 = scmp.eq.s32.totalorder %s23, 0
    %p118 = por %p116, %p117
    %s120 = sadd.s32 %s119, 1
    %p123 = scmp.eq.s32.totalorder %s17, 7
    %p124 = scmp.ne.s32.totalorder %s119, %s121
    %p125 = scmp.eq.s32.totalorder %s17, 0
    %p126 = por %p124, %p125
    %p127 = scmp.ne.s32.totalorder %s119, %s121
    %p128 = scmp.eq.s32.totalorder %s22, 7
    %p129 = por %p127, %p128
    %p130 = scmp.ne.s32.totalorder %s121, %s122
    %p131 = scmp.eq.s32.totalorder %s22, 0
    %p132 = por %p130, %p131
    %p133 = scmp.ne.s32.totalorder %s121, %s122
    %p134 = scmp.eq.s32.totalorder %s23, 7
    %p135 = por %p133, %p134
    %p137 = scmp.ne.s32.totalorder %s122, %s136
    %p138 = scmp.eq.s32.totalorder %s23, 0
    %p139 = por %p137, %p138
    %s141 = sadd.s32 %s140, 1
    %p144 = scmp.eq.s32.totalorder %s17, 7
    %p145 = scmp.ne.s32.totalorder %s140, %s142
    %p146 = scmp.eq.s32.totalorder %s17, 0
    %p147 = por %p145, %p146
    %p148 = scmp.ne.s32.totalorder %s140, %s142
    %p149 = scmp.eq.s32.totalorder %s22, 7
    %p150 = por %p148, %p149
    %p151 = scmp.ne.s32.totalorder %s142, %s143
    %p152 = scmp.eq.s32.totalorder %s22, 0
    %p153 = por %p151, %p152
    %p154 = scmp.ne.s32.totalorder %s142, %s143
    %p155 = scmp.eq.s32.totalorder %s23, 7
    %p156 = por %p154, %p155
    %p158 = scmp.ne.s32.totalorder %s143, %s157
    %p159 = scmp.eq.s32.totalorder %s23, 0
    %p160 = por %p158, %p159
    %s162 = sadd.s32 %s161, 1
    %p165 = scmp.eq.s32.totalorder %s17, 7
    %p166 = scmp.ne.s32.totalorder %s161, %s163
    %p167 = scmp.eq.s32.totalorder %s17, 0
    %p168 = por %p166, %p167
    %p169 = scmp.ne.s32.totalorder %s161, %s163
    %p170 = scmp.eq.s32.totalorder %s22, 7
    %p171 = por %p169, %p170
    %p172 = scmp.ne.s32.totalorder %s163, %s164
    %p173 = scmp.eq.s32.totalorder %s22, 0
    %p174 = por %p172, %p173
    %p175 = scmp.ne.s32.totalorder %s163, %s164
    %p176 = scmp.eq.s32.totalorder %s23, 7
    %p177 = por %p175, %p176
    %p179 = scmp.ne.s32.totalorder %s164, %s178
    %p180 = scmp.eq.s32.totalorder %s23, 0
    %p181 = por %p179, %p180
    %s183 = sadd.s32 %s182, 1
    %p186 = scmp.eq.s32.totalorder %s17, 7
    %p187 = scmp.ne.s32.totalorder %s182, %s184
    %p188 = scmp.eq.s32.totalorder %s17, 0
    %p189 = por %p187, %p188
    %p190 = scmp.ne.s32.totalorder %s182, %s184
    %p191 = scmp.eq.s32.totalorder %s22, 7
    %p192 = por %p190, %p191
    %p193 = scmp.ne.s32.totalorder %s184, %s185
    %p194 = scmp.eq.s32.totalorder %s22, 0
    %p195 = por %p193, %p194
    %p196 = scmp.ne.s32.totalorder %s184, %s185
    %p197 = scmp.eq.s32.totalorder %s23, 7
    %p198 = por %p196, %p197
    %p200 = scmp.ne.s32.totalorder %s185, %s199
    %p201 = scmp.eq.s32.totalorder %s23, 0
    %p202 = por %p200, %p201
    %s204 = sadd.s32 %s203, 1
    %p207 = scmp.eq.s32.totalorder %s17, 7
    %p208 = scmp.ne.s32.totalorder %s203, %s205
    %p209 = scmp.eq.s32.totalorder %s17, 0
    %p210 = por %p208, %p209
    %p211 = scmp.ne.s32.totalorder %s203, %s205
    %p212 = scmp.eq.s32.totalorder %s22, 7
    %p213 = por %p211, %p212
    %p214 = scmp.ne.s32.totalorder %s205, %s206
    %p215 = scmp.eq.s32.totalorder %s22, 0
    %p216 = por %p214, %p215
    %p217 = scmp.ne.s32.totalorder %s205, %s206
    %p218 = scmp.eq.s32.totalorder %s23, 7
    %p219 = por %p217, %p218
    %p221 = scmp.ne.s32.totalorder %s206, %s220
    %p222 = scmp.eq.s32.totalorder %s23, 0
    %p223 = por %p221, %p222
    %s225 = sadd.s32 %s224, 1
    %p228 = scmp.eq.s32.totalorder %s17, 7
    %p229 = scmp.ne.s32.totalorder %s224, %s226
    %p230 = scmp.eq.s32.totalorder %s17, 0
    %p231 = por %p229, %p230
    %p232 = scmp.ne.s32.totalorder %s224, %s226
    %p233 = scmp.eq.s32.totalorder %s22, 7
    %p234 = por %p232, %p233
    %p235 = scmp.ne.s32.totalorder %s226, %s227
    %p236 = scmp.eq.s32.totalorder %s22, 0
    %p237 = por %p235, %p236
    %p238 = scmp.ne.s32.totalorder %s226, %s227
    %p239 = scmp.eq.s32.totalorder %s23, 7
    %p240 = por %p238, %p239
    %p242 = scmp.ne.s32.totalorder %s227, %s241
    %p243 = scmp.eq.s32.totalorder %s23, 0
    %p244 = por %p242, %p243
    %s246 = sadd.s32 %s245, 1
    %p249 = scmp.eq.s32.totalorder %s17, 7
    %p250 = scmp.ne.s32.totalorder %s245, %s247
    %p251 = scmp.eq.s32.totalorder %s17, 0
    %p252 = por %p250, %p251
    %p253 = scmp.ne.s32.totalorder %s245, %s247
    %p254 = scmp.eq.s32.totalorder %s22, 7
    %p255 = por %p253, %p254
    %p256 = scmp.ne.s32.totalorder %s247, %s248
    %p257 = scmp.eq.s32.totalorder %s22, 0
    %p258 = por %p256, %p257
    %p259 = scmp.ne.s32.totalorder %s247, %s248
    %p260 = scmp.eq.s32.totalorder %s23, 7
    %p261 = por %p259, %p260
    %p263 = scmp.ne.s32.totalorder %s248, %s262
    %p264 = scmp.eq.s32.totalorder %s23, 0
    %p265 = por %p263, %p264
    %s266 = ssub.s32 %s17, %s24
    %p267 = scmp.eq.s32.totalorder %s266, 0
    %s269 = sadd.s32 %s268, 1
    %s270 = scalar_select %p267, %s268, %s269
    %p273 = pneg %p267
    %p274 = scmp.eq.s32.totalorder %s17, 7
    %p275 = por %p273, %p274
    %p276 = scmp.ne.s32.totalorder %s268, %s271
    %p277 = scmp.eq.s32.totalorder %s17, 0
    %p278 = por %p276, %p277
    %p279 = scmp.ne.s32.totalorder %s268, %s271
    %p280 = scmp.eq.s32.totalorder %s22, 7
    %p281 = por %p279, %p280
    %p282 = scmp.ne.s32.totalorder %s271, %s272
    %p283 = scmp.eq.s32.totalorder %s22, 0
    %p284 = por %p282, %p283
    %p285 = scmp.ne.s32.totalorder %s271, %s272
    %p286 = scmp.eq.s32.totalorder %s23, 7
    %p287 = por %p285, %p286
    %p289 = scmp.ne.s32.totalorder %s272, %s288
    %p290 = scmp.eq.s32.totalorder %s23, 0
    %p291 = por %p289, %p290
    %p292 = scmp.le.s32.totalorder 1, %s17
    %p293 = scmp.lt.s32.totalorder %s17, 9
    %p294 = pnand %p292, %p293
    %p295 = pneg %p294
    // Predicated region
    $region9: #{tpu_custom_call.1} parent=5 // pred_check
      _
    $region10: #{tpu_custom_call.1} parent=5 // pred_check_branch
      %297 = sbr.rel (%p294) target = $region12
    $region11: #{tpu_custom_call.1} parent=5 // pred_region
      %s298 = ssub.s32 %s17, 1
      // Predicated region
      $region13: #{tpu_custom_call.1} parent=11 // pred_check
        %p299 = pneg %p90
      $region14: #{tpu_custom_call.1} parent=11 // pred_check_branch
        %301 = sbr.rel (%p299) target = $region16
      $region15: #{tpu_custom_call.1} parent=11 // pred_region
        _
      $region16: #{tpu_custom_call.1} parent=11 // pred_fallthru
        _
      // Predicated region
      $region17: #{tpu_custom_call.1} parent=11 // pred_check
        %p302 = pneg %p111
      $region18: #{tpu_custom_call.1} parent=11 // pred_check_branch
        %304 = sbr.rel (%p302) target = $region20
      $region19: #{tpu_custom_call.1} parent=11 // pred_region
        _
      $region20: #{tpu_custom_call.1} parent=11 // pred_fallthru
        _
      // Predicated region
      $region21: #{tpu_custom_call.1} parent=11 // pred_check
        %p305 = pneg %p132
      $region22: #{tpu_custom_call.1} parent=11 // pred_check_branch
        %307 = sbr.rel (%p305) target = $region24
      $region23: #{tpu_custom_call.1} parent=11 // pred_region
        _
      $region24: #{tpu_custom_call.1} parent=11 // pred_fallthru
        _
      // Predicated region
      $region25: #{tpu_custom_call.1} parent=11 // pred_check
        %p308 = pneg %p153
      $region26: #{tpu_custom_call.1} parent=11 // pred_check_branch
        %310 = sbr.rel (%p308) target = $region28
      $region27: #{tpu_custom_call.1} parent=11 // pred_region
        _
      $region28: #{tpu_custom_call.1} parent=11 // pred_fallthru
        _
      // Predicated region
      $region29: #{tpu_custom_call.1} parent=11 // pred_check
        %p311 = pneg %p174
      $region30: #{tpu_custom_call.1} parent=11 // pred_check_branch
        %313 = sbr.rel (%p311) target = $region32
      $region31: #{tpu_custom_call.1} parent=11 // pred_region
        _
      $region32: #{tpu_custom_call.1} parent=11 // pred_fallthru
        _
      // Predicated region
      $region33: #{tpu_custom_call.1} parent=11 // pred_check
        %p314 = pneg %p195
      $region34: #{tpu_custom_call.1} parent=11 // pred_check_branch
        %316 = sbr.rel (%p314) target = $region36
      $region35: #{tpu_custom_call.1} parent=11 // pred_region
        _
      $region36: #{tpu_custom_call.1} parent=11 // pred_fallthru
        _
      // Predicated region
      $region37: #{tpu_custom_call.1} parent=11 // pred_check
        %p317 = pneg %p216
      $region38: #{tpu_custom_call.1} parent=11 // pred_check_branch
        %319 = sbr.rel (%p317) target = $region40
      $region39: #{tpu_custom_call.1} parent=11 // pred_region
        _
      $region40: #{tpu_custom_call.1} parent=11 // pred_fallthru
        _
      // Predicated region
      $region41: #{tpu_custom_call.1} parent=11 // pred_check
        %p320 = pneg %p237
      $region42: #{tpu_custom_call.1} parent=11 // pred_check_branch
        %322 = sbr.rel (%p320) target = $region44
      $region43: #{tpu_custom_call.1} parent=11 // pred_region
        _
      $region44: #{tpu_custom_call.1} parent=11 // pred_fallthru
        _
      // Predicated region
      $region45: #{tpu_custom_call.1} parent=11 // pred_check
        %p323 = pneg %p258
      $region46: #{tpu_custom_call.1} parent=11 // pred_check_branch
        %325 = sbr.rel (%p323) target = $region48
      $region47: #{tpu_custom_call.1} parent=11 // pred_region
        _
      $region48: #{tpu_custom_call.1} parent=11 // pred_fallthru
        _
    $region12: #{tpu_custom_call.1} parent=5 // pred_fallthru
      _
    %p326 = scmp.lt.s32.totalorder %s17, 8
    // Predicated region
    $region49: #{tpu_custom_call.1} parent=5 // pred_check
      %p327 = pneg %p326
    $region50: #{tpu_custom_call.1} parent=5 // pred_check_branch
      %329 = sbr.rel (%p327) target = $region52
    $region51: #{tpu_custom_call.1} parent=5 // pred_region
      // Predicated region
      $region53: #{tpu_custom_call.1} parent=51 // pred_check
        %p330 = pneg %p37
      $region54: #{tpu_custom_call.1} parent=51 // pred_check_branch
        %332 = sbr.rel (%p330) target = $region56
      $region55: #{tpu_custom_call.1} parent=51 // pred_region
        %p333 = scmp.lt.s32.totalorder %s17, 7
        %s334 = scalar_select %p333, %s17, 7
        %s335 = smul.addr %s334, 8
        %s336 = smul.addr %s335, 8
        %s337 = scalar_lea.vmem %s0, %s336
      $region56: #{tpu_custom_call.1} parent=51 // pred_fallthru
        _
      // Predicated region
      $region57: #{tpu_custom_call.1} parent=51 // pred_check
        %p338 = pneg %p63
      $region58: #{tpu_custom_call.1} parent=51 // pred_check_branch
        %340 = sbr.rel (%p338) target = $region60
      $region59: #{tpu_custom_call.1} parent=51 // pred_region
        %p341 = scmp.lt.s32.totalorder %s17, 7
        %s342 = scalar_select %p341, %s17, 7
        %s343 = smul.addr %s342, 8
        %s344 = smul.addr %s343, 8
        %s345 = scalar_lea.vmem %s1, %s344
      $region60: #{tpu_custom_call.1} parent=51 // pred_fallthru
        _
    $region52: #{tpu_custom_call.1} parent=5 // pred_fallthru
      _
    %p346 = scmp.le.s32.totalorder 1, %s17
    %p347 = scmp.lt.s32.totalorder %s17, 9
    %p348 = pnand %p346, %p347
    %p349 = pneg %p348
    // Predicated region
    $region61: #{tpu_custom_call.1} parent=5 // pred_check
      _
    $region62: #{tpu_custom_call.1} parent=5 // pred_check_branch
      %351 = sbr.rel (%p348) target = $region64
    $region63: #{tpu_custom_call.1} parent=5 // pred_region
      %s352 = ssub.s32 %s17, 1
      %p353 = scmp.lt.s32.totalorder %s22, 7
      %s354 = scalar_select %p353, %s22, 7
      %s355 = smul.addr %s354, 8
      %s356 = smul.addr %s355, 8
      %s357 = scalar_lea.vmem %s0, %s356
      %p358 = pneg %p43
      %p359 = pneg %p40
      %p360 = scmp.lt.s32.totalorder %s22, 7
      %s361 = scalar_select %p360, %s22, 7
      %s362 = smul.addr %s361, 8
      %s363 = smul.addr %s362, 8
      %s364 = scalar_lea.vmem %s1, %s363
      %p365 = pneg %p69
      %p366 = pneg %p66
      %p367 = pneg %p90
      %p368 = pneg %p87
      %p369 = pneg %p111
      %p370 = pneg %p108
      %p371 = pneg %p132
      %p372 = pneg %p129
      %p373 = pneg %p153
      %p374 = pneg %p150
      %p375 = pneg %p174
      %p376 = pneg %p171
      %p377 = pneg %p195
      %p378 = pneg %p192
      %p379 = pneg %p216
      %p380 = pneg %p213
      %p381 = pneg %p237
      %p382 = pneg %p234
      %p383 = pneg %p258
      %p384 = pneg %p255
      %p385 = pneg %p284
      %p386 = pneg %p281
      %p387 = scmp.lt.s32.totalorder %s22, 7
      %s388 = scalar_select %p387, %s22, 7
      %s389 = smul.addr %s388, 8
      %s390 = smul.addr %s389, 8
      %s391 = scalar_lea.vmem %s11, %s390
      %p392 = scmp.lt.s32.totalorder %s22, 7
      %s393 = scalar_select %p392, %s22, 7
      %s394 = smul.addr %s393, 8
      %s395 = smul.addr %s394, 8
      %s396 = scalar_lea.vmem %s0, %s395
      %p397 = scmp.lt.s32.totalorder %s22, 7
      %s398 = scalar_select %p397, %s22, 7
      %s399 = smul.addr %s398, 8
      %s400 = smul.addr %s399, 8
      %s401 = scalar_lea.vmem %s1, %s400
      %p402 = scmp.lt.s32.totalorder %s22, 7
      %s403 = scalar_select %p402, %s22, 7
      %s404 = smul.addr %s403, 8
      %s405 = smul.addr %s404, 8
      %s406 = scalar_lea.vmem %s11, %s405
      %v408 = vld [vmem:[%s396] sm:$0xff]
      %v409 = vld [vmem:[%s396 + $0x8] sm:$0xff]
      %v410 = vld [vmem:[%s396 + $0x10] sm:$0xff]
      %v411 = vld [vmem:[%s396 + $0x18] sm:$0xff]
      %v412 = vld [vmem:[%s396 + $0x20] sm:$0xff]
      %v413 = vld [vmem:[%s396 + $0x28] sm:$0xff]
      %v414 = vld [vmem:[%s396 + $0x30] sm:$0xff]
      %v415 = vld [vmem:[%s396 + $0x38] sm:$0xff]
      %v416 = vld [vmem:[%s401] sm:$0xff]
      %v417 = vld [vmem:[%s401 + $0x8] sm:$0xff]
      %v418 = vld [vmem:[%s401 + $0x10] sm:$0xff]
      %v419 = vld [vmem:[%s401 + $0x18] sm:$0xff]
      %v420 = vld [vmem:[%s401 + $0x20] sm:$0xff]
      %v421 = vld [vmem:[%s401 + $0x28] sm:$0xff]
      %v422 = vld [vmem:[%s401 + $0x30] sm:$0xff]
      %v423 = vld [vmem:[%s401 + $0x38] sm:$0xff]
      %v424 = vld [vmem:[%s3] sm:$0xf]
      %v425 = vpack.c.bf16 %v409, %v408
      %v426 = vpack.c.bf16 %v411, %v410
      %v427 = vpack.c.bf16 %v413, %v412
      %v428 = vpack.c.bf16 %v415, %v414
      %v429 = vld [vmem:[%s2] sm:$0xf]
      %v430 = vld [vmem:[%s2 + $0x4] sm:$0xf]
      %v431 = vlaneseq
      %v432 = vshrl.u32 %v431, 7
      %v433 = vsub.s32 0, %v432
      %v434 = vrot.slane %v424, %v433
      %v437 = vunpack.c.l.b16 %v429
      %v438 = vunpack.c.l.b16 %v430
      %v439 = vpack.c.b16 %v438, %v437
      %vm441 = vcmask 130048
      %v443 = vsel %vm441, %v425, 0
      %v446 = vsel %vm441, %v426, 0
      %v449 = vsel %vm441, %v427, 0
      %v452 = vsel %vm441, %v428, 0
      %454 = vmatprep.subr.bf16.mxu0 0
      %455 = vmatpush1.bf16.msra.mxu0 %v439
      %456 = vmatprep.subr.bf16.mxu0 0
      %457 = vmatpush1.bf16.msra.mxu0 0
      %458 = vmatprep.subr.bf16.mxu0 0
      %459 = vmatpush1.bf16.msra.mxu0 0
      %460 = vmatprep.subr.bf16.mxu0 0
      %461 = vmatpush1.bf16.msra.mxu0 0
      %462 = vmatprep.subr.bf16.mxu0 0
      %463 = vmatpush1.bf16.msra.mxu0 0
      %464 = vmatprep.subr.bf16.mxu0 0
      %465 = vmatpush1.bf16.msra.mxu0 0
      %466 = vmatprep.subr.bf16.mxu0 0
      %467 = vmatpush1.bf16.msra.mxu0 0
      %468 = vmatprep.subr.bf16.mxu0 0
      %469 = vmatpush1.bf16.msra.mxu0 0
      %470 = vmatprep.subr.bf16.mxu0 0
      %471 = vmatpush1.bf16.msra.mxu0 0
      %472 = vmatprep.subr.bf16.mxu0 0
      %473 = vmatpush1.bf16.msra.mxu0 0
      %474 = vmatprep.subr.bf16.mxu0 0
      %475 = vmatpush1.bf16.msra.mxu0 0
      %476 = vmatprep.subr.bf16.mxu0 0
      %477 = vmatpush1.bf16.msra.mxu0 0
      %478 = vmatprep.subr.bf16.mxu0 0
      %479 = vmatpush1.bf16.msra.mxu0 0
      %480 = vmatprep.subr.bf16.mxu0 0
      %481 = vmatpush1.bf16.msra.mxu0 0
      %482 = vmatprep.subr.bf16.mxu0 0
      %483 = vmatpush1.bf16.msra.mxu0 0
      %484 = vmatprep.subr.bf16.mxu0 0
      %485 = vmatpush1.bf16.msra.mxu0 0
      %486 = vmatprep.mubr.bf16.mxu0 0
      %487 = vmatmul.mubr.bf16.gmra.mrb[0].mxu0 %v443
      %v488 = vpop.f32.mrb[0].mxu0
      %v489 = vadd.f32 %v434, %v488
      %v490 = vpop.f32.mrb[0].mxu0
      %v491 = vpop.f32.mrb[0].mxu0
      %v492 = vadd.f32 %v434, %v491
      %v493 = vpop.f32.mrb[0].mxu0
      %494 = vmatprep.mubr.bf16.mxu0 0
      %495 = vmatmul.mubr.bf16.gmra.mrb[0].mxu0 %v446
      %v496 = vpop.f32.mrb[0].mxu0
      %v497 = vadd.f32 %v434, %v496
      %v498 = vpop.f32.mrb[0].mxu0
      %v499 = vpop.f32.mrb[0].mxu0
      %v500 = vadd.f32 %v434, %v499
      %v501 = vpop.f32.mrb[0].mxu0
      %502 = vmatprep.mubr.bf16.mxu0 0
      %503 = vmatmul.mubr.bf16.gmra.mrb[0].mxu0 %v449
      %v504 = vpop.f32.mrb[0].mxu0
      %v505 = vadd.f32 %v434, %v504
      %v506 = vpop.f32.mrb[0].mxu0
      %v507 = vpop.f32.mrb[0].mxu0
      %v508 = vadd.f32 %v434, %v507
      %v509 = vpop.f32.mrb[0].mxu0
      %510 = vmatprep.mubr.bf16.mxu0 0
      %511 = vmatmul.mubr.bf16.gmra.mrb[0].mxu0 %v452
      %v512 = vpop.f32.mrb[0].mxu0
      %v513 = vadd.f32 %v434, %v512
      %v514 = vpop.f32.mrb[0].mxu0
      %v515 = vpop.f32.mrb[0].mxu0
      %v516 = vadd.f32 %v434, %v515
      %v517 = vpop.f32.mrb[0].mxu0
      %518 = vdwg.mxu0
      %v519 = vlaneseq
      %v520 = vand.u32 %v519, 127
      %vm521 = vcmp.ge.s32.totalorder %v520, 0
      %vm522 = vcmp.lt.s32.totalorder %v520, 8
      %vm523 = vmand %vm521, %vm522
      %v524 = vsel %vm523, 1, 0
      %v525 = vcvt.s32.f32 %v524
      %vm526 = vcmp.ge.s32.totalorder %v520, 8
      %vm527 = vcmp.lt.s32.totalorder %v520, 16
      %vm528 = vmand %vm526, %vm527
      %v529 = vsel %vm528, 1, 0
      %v530 = vcvt.s32.f32 %v529
      %vm531 = vcmp.ge.s32.totalorder %v520, 16
      %vm532 = vcmp.lt.s32.totalorder %v520, 24
      %vm533 = vmand %vm531, %vm532
      %v534 = vsel %vm533, 1, 0
      %v535 = vcvt.s32.f32 %v534
      %vm536 = vcmp.ge.s32.totalorder %v520, 24
      %vm537 = vcmp.lt.s32.totalorder %v520, 32
      %vm538 = vmand %vm536, %vm537
      %v539 = vsel %vm538, 1, 0
      %v540 = vcvt.s32.f32 %v539
      %v541 = vld [vmem:[%s7] sm:$0xff]
      %v542 = vld [vmem:[%s7 + $0x8] sm:$0x3]
      %v543 = vpack.c.bf16 %v492, %v489
      %v544 = vpack.c.bf16 %v500, %v497
      %v545 = vpack.c.bf16 %v508, %v505
      %v546 = vpack.c.bf16 %v516, %v513
      %v547 = vld [vmem:[%s4] sm:$0xf]
      %v548 = vld [vmem:[%s4 + $0x4] sm:$0xf]
      %v549 = vld [vmem:[%s4 + $0x8] sm:$0xf]
      %v550 = vld [vmem:[%s4 + $0xc] sm:$0xf]
      %v551 = vlaneseq
      %v552 = vshrl.u32 %v551, 7
      %v553 = vsub.s32 0, %v552
      %v554 = vrot.slane %v541, %v553
      %v559 = vunpack.c.l.b16 %v547
      %v560 = vunpack.c.l.b16 %v548
      %v561 = vunpack.c.l.b16 %v549
      %v562 = vunpack.c.l.b16 %v550
      %v563 = vpack.c.b16 %v560, %v559
      %v564 = vpack.c.b16 %v562, %v561
      %vm567 = vcmask 261120
      %v569 = vsel %vm567, %v543, 0
      %v572 = vsel %vm567, %v544, 0
      %v575 = vsel %vm567, %v545, 0
      %v578 = vsel %vm567, %v546, 0
      %580 = vmatprep.subr.bf16.mxu0 0
      %581 = vmatpush1.bf16.msra.mxu0 %v563
      %582 = vmatprep.subr.bf16.mxu0 0
      %583 = vmatpush1.bf16.msra.mxu0 %v564
      %584 = vmatprep.subr.bf16.mxu0 0
      %585 = vmatpush1.bf16.msra.mxu0 0
      %586 = vmatprep.subr.bf16.mxu0 0
      %587 = vmatpush1.bf16.msra.mxu0 0
      %588 = vmatprep.subr.bf16.mxu0 0
      %589 = vmatpush1.bf16.msra.mxu0 0
      %590 = vmatprep.subr.bf16.mxu0 0
      %591 = vmatpush1.bf16.msra.mxu0 0
      %592 = vmatprep.subr.bf16.mxu0 0
      %593 = vmatpush1.bf16.msra.mxu0 0
      %594 = vmatprep.subr.bf16.mxu0 0
      %595 = vmatpush1.bf16.msra.mxu0 0
      %596 = vmatprep.subr.bf16.mxu0 0
      %597 = vmatpush1.bf16.msra.mxu0 0
      %598 = vmatprep.subr.bf16.mxu0 0
      %599 = vmatpush1.bf16.msra.mxu0 0
      %600 = vmatprep.subr.bf16.mxu0 0
      %601 = vmatpush1.bf16.msra.mxu0 0
      %602 = vmatprep.subr.bf16.mxu0 0
      %603 = vmatpush1.bf16.msra.mxu0 0
      %604 = vmatprep.subr.bf16.mxu0 0
      %605 = vmatpush1.bf16.msra.mxu0 0
      %606 = vmatprep.subr.bf16.mxu0 0
      %607 = vmatpush1.bf16.msra.mxu0 0
      %608 = vmatprep.subr.bf16.mxu0 0
      %609 = vmatpush1.bf16.msra.mxu0 0
      %610 = vmatprep.subr.bf16.mxu0 0
      %611 = vmatpush1.bf16.msra.mxu0 0
      %612 = vmatprep.mubr.bf16.mxu0 0
      %613 = vmatmul.mubr.bf16.gmra.mrb[0].mxu0 %v569
      %v614 = vpop.f32.mrb[0].mxu0
      %v615 = vadd.f32 %v554, %v614
      %v616 = vpop.f32.mrb[0].mxu0
      %v617 = vpop.f32.mrb[0].mxu0
      %v618 = vadd.f32 %v554, %v617
      %v619 = vpop.f32.mrb[0].mxu0
      %620 = vmatprep.mubr.bf16.mxu0 0
      %621 = vmatmul.mubr.bf16.gmra.mrb[0].mxu0 %v572
      %v622 = vpop.f32.mrb[0].mxu0
      %v623 = vadd.f32 %v554, %v622
      %v624 = vpop.f32.mrb[0].mxu0
      %v625 = vpop.f32.mrb[0].mxu0
      %v626 = vadd.f32 %v554, %v625
      %v627 = vpop.f32.mrb[0].mxu0
      %628 = vmatprep.mubr.bf16.mxu0 0
      %629 = vmatmul.mubr.bf16.gmra.mrb[0].mxu0 %v575
      %v630 = vpop.f32.mrb[0].mxu0
      %v631 = vadd.f32 %v554, %v630
      %v632 = vpop.f32.mrb[0].mxu0
      %v633 = vpop.f32.mrb[0].mxu0
      %v634 = vadd.f32 %v554, %v633
      %v635 = vpop.f32.mrb[0].mxu0
      %636 = vmatprep.mubr.bf16.mxu0 0
      %637 = vmatmul.mubr.bf16.gmra.mrb[0].mxu0 %v578
      %v638 = vpop.f32.mrb[0].mxu0
      %v639 = vadd.f32 %v554, %v638
      %v640 = vpop.f32.mrb[0].mxu0
      %v641 = vpop.f32.mrb[0].mxu0
      %v642 = vadd.f32 %v554, %v641
      %v643 = vpop.f32.mrb[0].mxu0
      %644 = vdwg.mxu0
      %s645 = scalar_lea.vmem %s4, 16
      %v646 = vld [vmem:[%s645] sm:$0xf]
      %v647 = vld [vmem:[%s645 + $0x4] sm:$0xf]
      %v648 = vld [vmem:[%s645 + $0x8] sm:$0xf]
      %v649 = vld [vmem:[%s645 + $0xc] sm:$0xf]
      %v650 = vlaneseq
      %v651 = vshrl.u32 %v650, 7
      %v652 = vsub.s32 1, %v651
      %v653 = vrot.slane %v541, %v652
      %v658 = vunpack.c.l.b16 %v646
      %v659 = vunpack.c.l.b16 %v647
      %v660 = vunpack.c.l.b16 %v648
      %v661 = vunpack.c.l.b16 %v649
      %v662 = vpack.c.b16 %v659, %v658
      %v663 = vpack.c.b16 %v661, %v660
      %666 = vmatprep.subr.bf16.mxu0 0
      %667 = vmatpush1.bf16.msra.mxu0 %v662
      %668 = vmatprep.subr.bf16.mxu0 0
      %669 = vmatpush1.bf16.msra.mxu0 %v663
      %670 = vmatprep.subr.bf16.mxu0 0
      %671 = vmatpush1.bf16.msra.mxu0 0
      %672 = vmatprep.subr.bf16.mxu0 0
      %673 = vmatpush1.bf16.msra.mxu0 0
      %674 = vmatprep.subr.bf16.mxu0 0
      %675 = vmatpush1.bf16.msra.mxu0 0
      %676 = vmatprep.subr.bf16.mxu0 0
      %677 = vmatpush1.bf16.msra.mxu0 0
      %678 = vmatprep.subr.bf16.mxu0 0
      %679 = vmatpush1.bf16.msra.mxu0 0
      %680 = vmatprep.subr.bf16.mxu0 0
      %681 = vmatpush1.bf16.msra.mxu0 0
      %682 = vmatprep.subr.bf16.mxu0 0
      %683 = vmatpush1.bf16.msra.mxu0 0
      %684 = vmatprep.subr.bf16.mxu0 0
      %685 = vmatpush1.bf16.msra.mxu0 0
      %686 = vmatprep.subr.bf16.mxu0 0
      %687 = vmatpush1.bf16.msra.mxu0 0
      %688 = vmatprep.subr.bf16.mxu0 0
      %689 = vmatpush1.bf16.msra.mxu0 0
      %690 = vmatprep.subr.bf16.mxu0 0
      %691 = vmatpush1.bf16.msra.mxu0 0
      %692 = vmatprep.subr.bf16.mxu0 0
      %693 = vmatpush1.bf16.msra.mxu0 0
      %694 = vmatprep.subr.bf16.mxu0 0
      %695 = vmatpush1.bf16.msra.mxu0 0
      %696 = vmatprep.subr.bf16.mxu0 0
      %697 = vmatpush1.bf16.msra.mxu0 0
      %698 = vmatprep.mubr.bf16.mxu0 0
      %699 = vmatmul.mubr.bf16.gmra.mrb[0].mxu0 %v569
      %v700 = vpop.f32.mrb[0].mxu0
      %v701 = vadd.f32 %v653, %v700
      %v702 = vpop.f32.mrb[0].mxu0
      %v703 = vpop.f32.mrb[0].mxu0
      %v704 = vadd.f32 %v653, %v703
      %v705 = vpop.f32.mrb[0].mxu0
      %706 = vmatprep.mubr.bf16.mxu0 0
      %707 = vmatmul.mubr.bf16.gmra.mrb[0].mxu0 %v572
      %v708 = vpop.f32.mrb[0].mxu0
      %v709 = vadd.f32 %v653, %v708
      %v710 = vpop.f32.mrb[0].mxu0
      %v711 = vpop.f32.mrb[0].mxu0
      %v712 = vadd.f32 %v653, %v711
      %v713 = vpop.f32.mrb[0].mxu0
      %714 = vmatprep.mubr.bf16.mxu0 0
      %715 = vmatmul.mubr.bf16.gmra.mrb[0].mxu0 %v575
      %v716 = vpop.f32.mrb[0].mxu0
      %v717 = vadd.f32 %v653, %v716
      %v718 = vpop.f32.mrb[0].mxu0
      %v719 = vpop.f32.mrb[0].mxu0
      %v720 = vadd.f32 %v653, %v719
      %v721 = vpop.f32.mrb[0].mxu0
      %722 = vmatprep.mubr.bf16.mxu0 0
      %723 = vmatmul.mubr.bf16.gmra.mrb[0].mxu0 %v578
      %v724 = vpop.f32.mrb[0].mxu0
      %v725 = vadd.f32 %v653, %v724
      %v726 = vpop.f32.mrb[0].mxu0
      %v727 = vpop.f32.mrb[0].mxu0
      %v728 = vadd.f32 %v653, %v727
      %v729 = vpop.f32.mrb[0].mxu0
      %730 = vdwg.mxu0
      %s731 = scalar_lea.vmem %s4, 32
      %v732 = vld [vmem:[%s731] sm:$0xf]
      %v733 = vld [vmem:[%s731 + $0x4] sm:$0xf]
      %v734 = vld [vmem:[%s731 + $0x8] sm:$0xf]
      %v735 = vld [vmem:[%s731 + $0xc] sm:$0xf]
      %v736 = vlaneseq
      %v737 = vshrl.u32 %v736, 7
      %v738 = vsub.s32 2, %v737
      %v739 = vrot.slane %v541, %v738
      %v744 = vunpack.c.l.b16 %v732
      %v745 = vunpack.c.l.b16 %v733
      %v746 = vunpack.c.l.b16 %v734
      %v747 = vunpack.c.l.b16 %v735
      %v748 = vpack.c.b16 %v745, %v744
      %v749 = vpack.c.b16 %v747, %v746
      %752 = vmatprep.subr.bf16.mxu0 0
      %753 = vmatpush1.bf16.msra.mxu0 %v748
      %754 = vmatprep.subr.bf16.mxu0 0
      %755 = vmatpush1.bf16.msra.mxu0 %v749
      %756 = vmatprep.subr.bf16.mxu0 0
      %757 = vmatpush1.bf16.msra.mxu0 0
      %758 = vmatprep.subr.bf16.mxu0 0
      %759 = vmatpush1.bf16.msra.mxu0 0
      %760 = vmatprep.subr.bf16.mxu0 0
      %761 = vmatpush1.bf16.msra.mxu0 0
      %762 = vmatprep.subr.bf16.mxu0 0
      %763 = vmatpush1.bf16.msra.mxu0 0
      %764 = vmatprep.subr.bf16.mxu0 0
      %765 = vmatpush1.bf16.msra.mxu0 0
      %766 = vmatprep.subr.bf16.mxu0 0
      %767 = vmatpush1.bf16.msra.mxu0 0
      %768 = vmatprep.subr.bf16.mxu0 0
      %769 = vmatpush1.bf16.msra.mxu0 0
      %770 = vmatprep.subr.bf16.mxu0 0
      %771 = vmatpush1.bf16.msra.mxu0 0
      %772 = vmatprep.subr.bf16.mxu0 0
      %773 = vmatpush1.bf16.msra.mxu0 0
      %774 = vmatprep.subr.bf16.mxu0 0
      %775 = vmatpush1.bf16.msra.mxu0 0
      %776 = vmatprep.subr.bf16.mxu0 0
      %777 = vmatpush1.bf16.msra.mxu0 0
      %778 = vmatprep.subr.bf16.mxu0 0
      %779 = vmatpush1.bf16.msra.mxu0 0
      %780 = vmatprep.subr.bf16.mxu0 0
      %781 = vmatpush1.bf16.msra.mxu0 0
      %782 = vmatprep.subr.bf16.mxu0 0
      %783 = vmatpush1.bf16.msra.mxu0 0
      %784 = vmatprep.mubr.bf16.mxu0 0
      %785 = vmatmul.mubr.bf16.gmra.mrb[0].mxu0 %v569
      %v786 = vpop.f32.mrb[0].mxu0
      %v787 = vadd.f32 %v739, %v786
      %v788 = vpop.f32.mrb[0].mxu0
      %v789 = vpop.f32.mrb[0].mxu0
      %v790 = vadd.f32 %v739, %v789
      %v791 = vpop.f32.mrb[0].mxu0
      %792 = vmatprep.mubr.bf16.mxu0 0
      %793 = vmatmul.mubr.bf16.gmra.mrb[0].mxu0 %v572
      %v794 = vpop.f32.mrb[0].mxu0
      %v795 = vadd.f32 %v739, %v794
      %v796 = vpop.f32.mrb[0].mxu0
      %v797 = vpop.f32.mrb[0].mxu0
      %v798 = vadd.f32 %v739, %v797
      %v799 = vpop.f32.mrb[0].mxu0
      %800 = vmatprep.mubr.bf16.mxu0 0
      %801 = vmatmul.mubr.bf16.gmra.mrb[0].mxu0 %v575
      %v802 = vpop.f32.mrb[0].mxu0
      %v803 = vadd.f32 %v739, %v802
      %v804 = vpop.f32.mrb[0].mxu0
      %v805 = vpop.f32.mrb[0].mxu0
      %v806 = vadd.f32 %v739, %v805
      %v807 = vpop.f32.mrb[0].mxu0
      %808 = vmatprep.mubr.bf16.mxu0 0
      %809 = vmatmul.mubr.bf16.gmra.mrb[0].mxu0 %v578
      %v810 = vpop.f32.mrb[0].mxu0
      %v811 = vadd.f32 %v739, %v810
      %v812 = vpop.f32.mrb[0].mxu0
      %v813 = vpop.f32.mrb[0].mxu0
      %v814 = vadd.f32 %v739, %v813
      %v815 = vpop.f32.mrb[0].mxu0
      %816 = vdwg.mxu0
      %v817 = vmul.f32 %v615, %v525
      %v818 = vmul.f32 %v618, %v525
      %v819 = vmul.f32 %v623, %v525
      %v820 = vmul.f32 %v626, %v525
      %v821 = vmul.f32 %v631, %v525
      %v822 = vmul.f32 %v634, %v525
      %v823 = vmul.f32 %v639, %v525
      %v824 = vmul.f32 %v642, %v525
      %v826 = vsel %vm567, %v817, 0
      %v829 = vsel %vm567, %v818, 0
      %v832 = vsel %vm567, %v819, 0
      %v835 = vsel %vm567, %v820, 0
      %v838 = vsel %vm567, %v821, 0
      %v841 = vsel %vm567, %v822, 0
      %v844 = vsel %vm567, %v823, 0
      %v847 = vsel %vm567, %v824, 0
      %v850 = vsel %vm567, %v701, 0
      %v853 = vsel %vm567, %v704, 0
      %v856 = vsel %vm567, %v709, 0
      %v859 = vsel %vm567, %v712, 0
      %v862 = vsel %vm567, %v717, 0
      %v865 = vsel %vm567, %v720, 0
      %v868 = vsel %vm567, %v725, 0
      %v871 = vsel %vm567, %v728, 0
      %873 = vmatprep.subr.mxu0 0.0
      %874 = vmatpush1.xpose.msra.mxu0 %v850
      %875 = vmatprep.subr.mxu0 0.0
      %876 = vmatpush1.xpose.msra.mxu0 %v853
      %877 = vmatprep.subr.mxu0 0.0
      %878 = vmatpush1.xpose.msra.mxu0 %v856
      %879 = vmatprep.subr.mxu0 0.0
      %880 = vmatpush1.xpose.msra.mxu0 %v859
      %881 = vmatprep.subr.mxu0 0.0
      %882 = vmatpush1.xpose.msra.mxu0 %v862
      %883 = vmatprep.subr.mxu0 0.0
      %884 = vmatpush1.xpose.msra.mxu0 %v865
      %885 = vmatprep.subr.mxu0 0.0
      %886 = vmatpush1.xpose.msra.mxu0 %v868
      %887 = vmatprep.subr.mxu0 0.0
      %888 = vmatpush1.xpose.msra.mxu0 %v871
      %889 = vmatprep.subr.mxu0 0.0
      %890 = vmatpush1.xpose.msra.mxu0 0.0
      %891 = vmatprep.subr.mxu0 0.0
      %892 = vmatpush1.xpose.msra.mxu0 0.0
      %893 = vmatprep.subr.mxu0 0.0
      %894 = vmatpush1.xpose.msra.mxu0 0.0
      %895 = vmatprep.subr.mxu0 0.0
      %896 = vmatpush1.xpose.msra.mxu0 0.0
      %897 = vmatprep.subr.mxu0 0.0
      %898 = vmatpush1.xpose.msra.mxu0 0.0
      %899 = vmatprep.subr.mxu0 0.0
      %900 = vmatpush1.xpose.msra.mxu0 0.0
      %901 = vmatprep.subr.mxu0 0.0
      %902 = vmatpush1.xpose.msra.mxu0 0.0
      %903 = vmatprep.subr.mxu0 0.0
      %904 = vmatpush1.xpose.msra.mxu0 0.0
      %905 = vmatprep.subr.mxu0 0.0
      %906 = vmatpush1.xpose.msra.mxu0 0.0
      %907 = vmatprep.subr.mxu0 0.0
      %908 = vmatpush1.xpose.msra.mxu0 0.0
      %909 = vmatprep.subr.mxu0 0.0
      %910 = vmatpush1.xpose.msra.mxu0 0.0
      %911 = vmatprep.subr.mxu0 0.0
      %912 = vmatpush1.xpose.msra.mxu0 0.0
      %913 = vmatprep.subr.mxu0 0.0
      %914 = vmatpush1.xpose.msra.mxu0 0.0
      %915 = vmatprep.subr.mxu0 0.0
      %916 = vmatpush1.xpose.msra.mxu0 0.0
      %917 = vmatprep.subr.mxu0 0.0
      %918 = vmatpush1.xpose.msra.mxu0 0.0
      %919 = vmatprep.subr.mxu0 0.0
      %920 = vmatpush1.xpose.msra.mxu0 0.0
      %921 = vmatprep.subr.mxu0 0.0
      %922 = vmatpush1.xpose.msra.mxu0 0.0
      %923 = vmatprep.subr.mxu0 0.0
      %924 = vmatpush1.xpose.msra.mxu0 0.0
      %925 = vmatprep.subr.mxu0 0.0
      %926 = vmatpush1.xpose.msra.mxu0 0.0
      %927 = vmatprep.subr.mxu0 0.0
      %928 = vmatpush1.xpose.msra.mxu0 0.0
      %929 = vmatprep.subr.mxu0 0.0
      %930 = vmatpush1.xpose.msra.mxu0 0.0
      %931 = vmatprep.subr.mxu0 0.0
      %932 = vmatpush1.xpose.msra.mxu0 0.0
      %933 = vmatprep.subr.mxu0 0.0
      %934 = vmatpush1.xpose.msra.mxu0 0.0
      %935 = vmatprep.subr.mxu0 0.0
      %936 = vmatpush1.xpose.msra.mxu0 0.0
      %937 = vmatprep.mubr.f32.mxu0 0.0
      %938 = vmatmul.mubr.f32.gmra.mrb[0].mxu0 %v826
      %v939 = vpop.f32.mrb[0].mxu0
      %v940 = vadd.f32 0.0, %v939
      %v941 = vpop.f32.mrb[0].mxu0
      %942 = vmatprep.mubr.f32.mxu0 0.0
      %943 = vmatmul.mubr.f32.gmra.mrb[0].mxu0 %v829
      %v944 = vpop.f32.mrb[0].mxu0
      %v945 = vadd.f32 0.0, %v944
      %v946 = vpop.f32.mrb[0].mxu0
      %947 = vmatprep.mubr.f32.mxu0 0.0
      %948 = vmatmul.mubr.f32.gmra.mrb[0].mxu0 %v832
      %v949 = vpop.f32.mrb[0].mxu0
      %v950 = vadd.f32 0.0, %v949
      %v951 = vpop.f32.mrb[0].mxu0
      %952 = vmatprep.mubr.f32.mxu0 0.0
      %953 = vmatmul.mubr.f32.gmra.mrb[0].mxu0 %v835
      %v954 = vpop.f32.mrb[0].mxu0
      %v955 = vadd.f32 0.0, %v954
      %v956 = vpop.f32.mrb[0].mxu0
      %957 = vmatprep.mubr.f32.mxu0 0.0
      %958 = vmatmul.mubr.f32.gmra.mrb[0].mxu0 %v838
      %v959 = vpop.f32.mrb[0].mxu0
      %v960 = vadd.f32 0.0, %v959
      %v961 = vpop.f32.mrb[0].mxu0
      %962 = vmatprep.mubr.f32.mxu0 0.0
      %963 = vmatmul.mubr.f32.gmra.mrb[0].mxu0 %v841
      %v964 = vpop.f32.mrb[0].mxu0
      %v965 = vadd.f32 0.0, %v964
      %v966 = vpop.f32.mrb[0].mxu0
      %967 = vmatprep.mubr.f32.mxu0 0.0
      %968 = vmatmul.mubr.f32.gmra.mrb[0].mxu0 %v844
      %v969 = vpop.f32.mrb[0].mxu0
      %v970 = vadd.f32 0.0, %v969
      %v971 = vpop.f32.mrb[0].mxu0
      %972 = vmatprep.mubr.f32.mxu0 0.0
      %973 = vmatmul.mubr.f32.gmra.mrb[0].mxu0 %v847
      %v974 = vpop.f32.mrb[0].mxu0
      %v975 = vadd.f32 0.0, %v974
      %v976 = vpop.f32.mrb[0].mxu0
      %977 = vdwg.mxu0
      %v978 = vmul.f32 %v940, 0.35355338
      %v979 = vmul.f32 %v945, 0.35355338
      %v980 = vmul.f32 %v950, 0.35355338
      %v981 = vmul.f32 %v955, 0.35355338
      %v982 = vmul.f32 %v960, 0.35355338
      %v983 = vmul.f32 %v965, 0.35355338
      %v984 = vmul.f32 %v970, 0.35355338
      %v985 = vmul.f32 %v975, 0.35355338
      %v986 = vmax.f32 %v978, -5.0
      %v987 = vmax.f32 %v979, -5.0
      %v988 = vmax.f32 %v980, -5.0
      %v989 = vmax.f32 %v981, -5.0
      %v990 = vmax.f32 %v982, -5.0
      %v991 = vmax.f32 %v983, -5.0
      %v992 = vmax.f32 %v984, -5.0
      %v993 = vmax.f32 %v985, -5.0
      %v994 = vmin.f32 %v986, 5.0
      %v995 = vmin.f32 %v987, 5.0
      %v996 = vmin.f32 %v988, 5.0
      %v997 = vmin.f32 %v989, 5.0
      %v998 = vmin.f32 %v990, 5.0
      %v999 = vmin.f32 %v991, 5.0
      %v1000 = vmin.f32 %v992, 5.0
      %v1001 = vmin.f32 %v993, 5.0
      %v1002 = vmul.f32 %v994, 1.442695
      %v1003 = vpow.pop %v1002
      %v1004 = vmul.f32 %v995, 1.442695
      %v1005 = vpow.pop %v1004
      %v1006 = vmul.f32 %v996, 1.442695
      %v1007 = vpow.pop %v1006
      %v1008 = vmul.f32 %v997, 1.442695
      %v1009 = vpow.pop %v1008
      %v1010 = vmul.f32 %v998, 1.442695
      %v1011 = vpow.pop %v1010
      %v1012 = vmul.f32 %v999, 1.442695
      %v1013 = vpow.pop %v1012
      %v1014 = vmul.f32 %v1000, 1.442695
      %v1015 = vpow.pop %v1014
      %v1016 = vmul.f32 %v1001, 1.442695
      %v1017 = vpow.pop %v1016
      %v1018 = vmul.f32 %v1003, %v416
      %v1019 = vmul.f32 %v1005, %v417
      %v1020 = vmul.f32 %v1007, %v418
      %v1021 = vmul.f32 %v1009, %v419
      %v1022 = vmul.f32 %v1011, %v420
      %v1023 = vmul.f32 %v1013, %v421
      %v1024 = vmul.f32 %v1015, %v422
      %v1025 = vmul.f32 %v1017, %v423
      %vm1026 = vcmask 523264
      %v1028 = vsel %vm1026, %v1018, 0
      %v1031 = vsel %vm1026, %v1019, 0
      %v1034 = vsel %vm1026, %v1020, 0
      %v1037 = vsel %vm1026, %v1021, 0
      %v1040 = vsel %vm1026, %v1022, 0
      %v1043 = vsel %vm1026, %v1023, 0
      %v1046 = vsel %vm1026, %v1024, 0
      %v1049 = vsel %vm1026, %v1025, 0
      %1051 = vmatprep.subr.mxu0 0.0
      %1052 = vmatpush1.msra.mxu0 %v787
      %1053 = vmatprep.subr.mxu0 0.0
      %1054 = vmatpush1.msra.mxu0 %v790
      %1055 = vmatprep.subr.mxu0 0.0
      %1056 = vmatpush1.msra.mxu0 %v795
      %1057 = vmatprep.subr.mxu0 0.0
      %1058 = vmatpush1.msra.mxu0 %v798
      %1059 = vmatprep.subr.mxu0 0.0
      %1060 = vmatpush1.msra.mxu0 %v803
      %1061 = vmatprep.subr.mxu0 0.0
      %1062 = vmatpush1.msra.mxu0 %v806
      %1063 = vmatprep.subr.mxu0 0.0
      %1064 = vmatpush1.msra.mxu0 %v811
      %1065 = vmatprep.subr.mxu0 0.0
      %1066 = vmatpush1.msra.mxu0 %v814
      %1067 = vmatprep.subr.mxu0 0.0
      %1068 = vmatpush1.msra.mxu0 0.0
      %1069 = vmatprep.subr.mxu0 0.0
      %1070 = vmatpush1.msra.mxu0 0.0
      %1071 = vmatprep.subr.mxu0 0.0
      %1072 = vmatpush1.msra.mxu0 0.0
      %1073 = vmatprep.subr.mxu0 0.0
      %1074 = vmatpush1.msra.mxu0 0.0
      %1075 = vmatprep.subr.mxu0 0.0
      %1076 = vmatpush1.msra.mxu0 0.0
      %1077 = vmatprep.subr.mxu0 0.0
      %1078 = vmatpush1.msra.mxu0 0.0
      %1079 = vmatprep.subr.mxu0 0.0
      %1080 = vmatpush1.msra.mxu0 0.0
      %1081 = vmatprep.subr.mxu0 0.0
      %1082 = vmatpush1.msra.mxu0 0.0
      %1083 = vmatprep.subr.mxu0 0.0
      %1084 = vmatpush1.msra.mxu0 0.0
      %1085 = vmatprep.subr.mxu0 0.0
      %1086 = vmatpush1.msra.mxu0 0.0
      %1087 = vmatprep.subr.mxu0 0.0
      %1088 = vmatpush1.msra.mxu0 0.0
      %1089 = vmatprep.subr.mxu0 0.0
      %1090 = vmatpush1.msra.mxu0 0.0
      %1091 = vmatprep.subr.mxu0 0.0
      %1092 = vmatpush1.msra.mxu0 0.0
      %1093 = vmatprep.subr.mxu0 0.0
      %1094 = vmatpush1.msra.mxu0 0.0
      %1095 = vmatprep.subr.mxu0 0.0
      %1096 = vmatpush1.msra.mxu0 0.0
      %1097 = vmatprep.subr.mxu0 0.0
      %1098 = vmatpush1.msra.mxu0 0.0
      %1099 = vmatprep.subr.mxu0 0.0
      %1100 = vmatpush1.msra.mxu0 0.0
      %1101 = vmatprep.subr.mxu0 0.0
      %1102 = vmatpush1.msra.mxu0 0.0
      %1103 = vmatprep.subr.mxu0 0.0
      %1104 = vmatpush1.msra.mxu0 0.0
      %1105 = vmatprep.subr.mxu0 0.0
      %1106 = vmatpush1.msra.mxu0 0.0
      %1107 = vmatprep.subr.mxu0 0.0
      %1108 = vmatpush1.msra.mxu0 0.0
      %1109 = vmatprep.subr.mxu0 0.0
      %1110 = vmatpush1.msra.mxu0 0.0
      %1111 = vmatprep.subr.mxu0 0.0
      %1112 = vmatpush1.msra.mxu0 0.0
      %1113 = vmatprep.subr.mxu0 0.0
      %1114 = vmatpush1.msra.mxu0 0.0
      %1115 = vmatprep.mubr.f32.mxu0 0.0
      %1116 = vmatmul.mubr.f32.gmra.mrb[0].mxu0 %v1028
      %v1117 = vpop.f32.mrb[0].mxu0
      %v1118 = vadd.f32 0.0, %v1117
      %v1119 = vpop.f32.mrb[0].mxu0
      %1120 = vmatprep.mubr.f32.mxu0 0.0
      %1121 = vmatmul.mubr.f32.gmra.mrb[0].mxu0 %v1031
      %v1122 = vpop.f32.mrb[0].mxu0
      %v1123 = vadd.f32 0.0, %v1122
      %v1124 = vpop.f32.mrb[0].mxu0
      %1125 = vmatprep.mubr.f32.mxu0 0.0
      %1126 = vmatmul.mubr.f32.gmra.mrb[0].mxu0 %v1034
      %v1127 = vpop.f32.mrb[0].mxu0
      %v1128 = vadd.f32 0.0, %v1127
      %v1129 = vpop.f32.mrb[0].mxu0
      %1130 = vmatprep.mubr.f32.mxu0 0.0
      %1131 = vmatmul.mubr.f32.gmra.mrb[0].mxu0 %v1037
      %v1132 = vpop.f32.mrb[0].mxu0
      %v1133 = vadd.f32 0.0, %v1132
      %v1134 = vpop.f32.mrb[0].mxu0
      %1135 = vmatprep.mubr.f32.mxu0 0.0
      %1136 = vmatmul.mubr.f32.gmra.mrb[0].mxu0 %v1040
      %v1137 = vpop.f32.mrb[0].mxu0
      %v1138 = vadd.f32 0.0, %v1137
      %v1139 = vpop.f32.mrb[0].mxu0
      %1140 = vmatprep.mubr.f32.mxu0 0.0
      %1141 = vmatmul.mubr.f32.gmra.mrb[0].mxu0 %v1043
      %v1142 = vpop.f32.mrb[0].mxu0
      %v1143 = vadd.f32 0.0, %v1142
      %v1144 = vpop.f32.mrb[0].mxu0
      %1145 = vmatprep.mubr.f32.mxu0 0.0
      %1146 = vmatmul.mubr.f32.gmra.mrb[0].mxu0 %v1046
      %v1147 = vpop.f32.mrb[0].mxu0
      %v1148 = vadd.f32 0.0, %v1147
      %v1149 = vpop.f32.mrb[0].mxu0
      %1150 = vmatprep.mubr.f32.mxu0 0.0
      %1151 = vmatmul.mubr.f32.gmra.mrb[0].mxu0 %v1049
      %v1152 = vpop.f32.mrb[0].mxu0
      %v1153 = vadd.f32 0.0, %v1152
      %v1154 = vpop.f32.mrb[0].mxu0
      %1155 = vdwg.mxu0
      %v1156 = vsel %vm1026, %v1018, 0.0
      %1157 = vadd.xlane.f32.xlu0 %v1156
      %v1158 = vpop.xlane.xlu0 %1157
      %v1159 = vsel %vm1026, %v1019, 0.0
      %1160 = vadd.xlane.f32.xlu0 %v1159
      %v1161 = vpop.xlane.xlu0 %1160
      %v1162 = vsel %vm1026, %v1020, 0.0
      %1163 = vadd.xlane.f32.xlu0 %v1162
      %v1164 = vpop.xlane.xlu0 %1163
      %v1165 = vsel %vm1026, %v1021, 0.0
      %1166 = vadd.xlane.f32.xlu0 %v1165
      %v1167 = vpop.xlane.xlu0 %1166
      %v1168 = vsel %vm1026, %v1022, 0.0
      %1169 = vadd.xlane.f32.xlu0 %v1168
      %v1170 = vpop.xlane.xlu0 %1169
      %v1171 = vsel %vm1026, %v1023, 0.0
      %1172 = vadd.xlane.f32.xlu0 %v1171
      %v1173 = vpop.xlane.xlu0 %1172
      %v1174 = vsel %vm1026, %v1024, 0.0
      %1175 = vadd.xlane.f32.xlu0 %v1174
      %v1176 = vpop.xlane.xlu0 %1175
      %v1177 = vsel %vm1026, %v1025, 0.0
      %1178 = vadd.xlane.f32.xlu0 %v1177
      %v1179 = vpop.xlane.xlu0 %1178
      %v1180 = vadd.f32 %v1158, 1e-06
      %v1181 = vadd.f32 %v1161, 1e-06
      %v1182 = vadd.f32 %v1164, 1e-06
      %v1183 = vadd.f32 %v1167, 1e-06
      %v1184 = vadd.f32 %v1170, 1e-06
      %v1185 = vadd.f32 %v1173, 1e-06
      %v1186 = vadd.f32 %v1176, 1e-06
      %v1187 = vadd.f32 %v1179, 1e-06
      %v1188 = vrcp.pop %v1180
      %v1189 = vrcp.pop %v1181
      %v1190 = vrcp.pop %v1182
      %v1191 = vrcp.pop %v1183
      %v1192 = vrcp.pop %v1184
      %v1193 = vrcp.pop %v1185
      %v1194 = vrcp.pop %v1186
      %v1195 = vrcp.pop %v1187
      %v1196 = vmul.f32 %v1118, %v1188
      %v1197 = vmul.f32 %v1123, %v1189
      %v1198 = vmul.f32 %v1128, %v1190
      %v1199 = vmul.f32 %v1133, %v1191
      %v1200 = vmul.f32 %v1138, %v1192
      %v1201 = vmul.f32 %v1143, %v1193
      %v1202 = vmul.f32 %v1148, %v1194
      %v1203 = vmul.f32 %v1153, %v1195
      %v1204 = vmul.f32 %v1196, %v525
      %v1205 = vmul.f32 %v1197, %v525
      %v1206 = vmul.f32 %v1198, %v525
      %v1207 = vmul.f32 %v1199, %v525
      %v1208 = vmul.f32 %v1200, %v525
      %v1209 = vmul.f32 %v1201, %v525
      %v1210 = vmul.f32 %v1202, %v525
      %v1211 = vmul.f32 %v1203, %v525
      %v1212 = vadd.f32 %v1204, 0.0
      %v1213 = vadd.f32 %v1205, 0.0
      %v1214 = vadd.f32 %v1206, 0.0
      %v1215 = vadd.f32 %v1207, 0.0
      %v1216 = vadd.f32 %v1208, 0.0
      %v1217 = vadd.f32 %v1209, 0.0
      %v1218 = vadd.f32 %v1210, 0.0
      %v1219 = vadd.f32 %v1211, 0.0
      %v1220 = vmul.f32 %v615, %v530
      %v1221 = vmul.f32 %v618, %v530
      %v1222 = vmul.f32 %v623, %v530
      %v1223 = vmul.f32 %v626, %v530
      %v1224 = vmul.f32 %v631, %v530
      %v1225 = vmul.f32 %v634, %v530
      %v1226 = vmul.f32 %v639, %v530
      %v1227 = vmul.f32 %v642, %v530
      %v1229 = vsel %vm567, %v1220, 0
      %v1232 = vsel %vm567, %v1221, 0
      %v1235 = vsel %vm567, %v1222, 0
      %v1238 = vsel %vm567, %v1223, 0
      %v1241 = vsel %vm567, %v1224, 0
      %v1244 = vsel %vm567, %v1225, 0
      %v1247 = vsel %vm567, %v1226, 0
      %v1250 = vsel %vm567, %v1227, 0
      %1252 = vmatprep.subr.mxu0 0.0
      %1253 = vmatpush1.xpose.msra.mxu0 %v850
      %1254 = vmatprep.subr.mxu0 0.0
      %1255 = vmatpush1.xpose.msra.mxu0 %v853
      %1256 = vmatprep.subr.mxu0 0.0
      %1257 = vmatpush1.xpose.msra.mxu0 %v856
      %1258 = vmatprep.subr.mxu0 0.0
      %1259 = vmatpush1.xpose.msra.mxu0 %v859
      %1260 = vmatprep.subr.mxu0 0.0
      %1261 = vmatpush1.xpose.msra.mxu0 %v862
      %1262 = vmatprep.subr.mxu0 0.0
      %1263 = vmatpush1.xpose.msra.mxu0 %v865
      %1264 = vmatprep.subr.mxu0 0.0
      %1265 = vmatpush1.xpose.msra.mxu0 %v868
      %1266 = vmatprep.subr.mxu0 0.0
      %1267 = vmatpush1.xpose.msra.mxu0 %v871
      %1268 = vmatprep.subr.mxu0 0.0
      %1269 = vmatpush1.xpose.msra.mxu0 0.0
      %1270 = vmatprep.subr.mxu0 0.0
      %1271 = vmatpush1.xpose.msra.mxu0 0.0
      %1272 = vmatprep.subr.mxu0 0.0
      %1273 = vmatpush1.xpose.msra.mxu0 0.0
      %1274 = vmatprep.subr.mxu0 0.0
      %1275 = vmatpush1.xpose.msra.mxu0 0.0
      %1276 = vmatprep.subr.mxu0 0.0
      %1277 = vmatpush1.xpose.msra.mxu0 0.0
      %1278 = vmatprep.subr.mxu0 0.0
      %1279 = vmatpush1.xpose.msra.mxu0 0.0
      %1280 = vmatprep.subr.mxu0 0.0
      %1281 = vmatpush1.xpose.msra.mxu0 0.0
      %1282 = vmatprep.subr.mxu0 0.0
      %1283 = vmatpush1.xpose.msra.mxu0 0.0
      %1284 = vmatprep.subr.mxu0 0.0
      %1285 = vmatpush1.xpose.msra.mxu0 0.0
      %1286 = vmatprep.subr.mxu0 0.0
      %1287 = vmatpush1.xpose.msra.mxu0 0.0
      %1288 = vmatprep.subr.mxu0 0.0
      %1289 = vmatpush1.xpose.msra.mxu0 0.0
      %1290 = vmatprep.subr.mxu0 0.0
      %1291 = vmatpush1.xpose.msra.mxu0 0.0
      %1292 = vmatprep.subr.mxu0 0.0
      %1293 = vmatpush1.xpose.msra.mxu0 0.0
      %1294 = vmatprep.subr.mxu0 0.0
      %1295 = vmatpush1.xpose.msra.mxu0 0.0
      %1296 = vmatprep.subr.mxu0 0.0
      %1297 = vmatpush1.xpose.msra.mxu0 0.0
      %1298 = vmatprep.subr.mxu0 0.0
      %1299 = vmatpush1.xpose.msra.mxu0 0.0
      %1300 = vmatprep.subr.mxu0 0.0
      %1301 = vmatpush1.xpose.msra.mxu0 0.0
      %1302 = vmatprep.subr.mxu0 0.0
      %1303 = vmatpush1.xpose.msra.mxu0 0.0
      %1304 = vmatprep.subr.mxu0 0.0
      %1305 = vmatpush1.xpose.msra.mxu0 0.0
      %1306 = vmatprep.subr.mxu0 0.0
      %1307 = vmatpush1.xpose.msra.mxu0 0.0
      %1308 = vmatprep.subr.mxu0 0.0
      %1309 = vmatpush1.xpose.msra.mxu0 0.0
      %1310 = vmatprep.subr.mxu0 0.0
      %1311 = vmatpush1.xpose.msra.mxu0 0.0
      %1312 = vmatprep.subr.mxu0 0.0
      %1313 = vmatpush1.xpose.msra.mxu0 0.0
      %1314 = vmatprep.subr.mxu0 0.0
      %1315 = vmatpush1.xpose.msra.mxu0 0.0
      %1316 = vmatprep.mubr.f32.mxu0 0.0
      %1317 = vmatmul.mubr.f32.gmra.mrb[0].mxu0 %v1229
      %v1318 = vpop.f32.mrb[0].mxu0
      %v1319 = vadd.f32 0.0, %v1318
      %v1320 = vpop.f32.mrb[0].mxu0
      %1321 = vmatprep.mubr.f32.mxu0 0.0
      %1322 = vmatmul.mubr.f32.gmra.mrb[0].mxu0 %v1232
      %v1323 = vpop.f32.mrb[0].mxu0
      %v1324 = vadd.f32 0.0, %v1323
      %v1325 = vpop.f32.mrb[0].mxu0
      %1326 = vmatprep.mubr.f32.mxu0 0.0
      %1327 = vmatmul.mubr.f32.gmra.mrb[0].mxu0 %v1235
      %v1328 = vpop.f32.mrb[0].mxu0
      %v1329 = vadd.f32 0.0, %v1328
      %v1330 = vpop.f32.mrb[0].mxu0
      %1331 = vmatprep.mubr.f32.mxu0 0.0
      %1332 = vmatmul.mubr.f32.gmra.mrb[0].mxu0 %v1238
      %v1333 = vpop.f32.mrb[0].mxu0
      %v1334 = vadd.f32 0.0, %v1333
      %v1335 = vpop.f32.mrb[0].mxu0
      %1336 = vmatprep.mubr.f32.mxu0 0.0
      %1337 = vmatmul.mubr.f32.gmra.mrb[0].mxu0 %v1241
      %v1338 = vpop.f32.mrb[0].mxu0
      %v1339 = vadd.f32 0.0, %v1338
      %v1340 = vpop.f32.mrb[0].mxu0
      %1341 = vmatprep.mubr.f32.mxu0 0.0
      %1342 = vmatmul.mubr.f32.gmra.mrb[0].mxu0 %v1244
      %v1343 = vpop.f32.mrb[0].mxu0
      %v1344 = vadd.f32 0.0, %v1343
      %v1345 = vpop.f32.mrb[0].mxu0
      %1346 = vmatprep.mubr.f32.mxu0 0.0
      %1347 = vmatmul.mubr.f32.gmra.mrb[0].mxu0 %v1247
      %v1348 = vpop.f32.mrb[0].mxu0
      %v1349 = vadd.f32 0.0, %v1348
      %v1350 = vpop.f32.mrb[0].mxu0
      %1351 = vmatprep.mubr.f32.mxu0 0.0
      %1352 = vmatmul.mubr.f32.gmra.mrb[0].mxu0 %v1250
      %v1353 = vpop.f32.mrb[0].mxu0
      %v1354 = vadd.f32 0.0, %v1353
      %v1355 = vpop.f32.mrb[0].mxu0
      %1356 = vdwg.mxu0
      %v1357 = vmul.f32 %v1319, 0.35355338
      %v1358 = vmul.f32 %v1324, 0.35355338
      %v1359 = vmul.f32 %v1329, 0.35355338
      %v1360 = vmul.f32 %v1334, 0.35355338
      %v1361 = vmul.f32 %v1339, 0.35355338
      %v1362 = vmul.f32 %v1344, 0.35355338
      %v1363 = vmul.f32 %v1349, 0.35355338
      %v1364 = vmul.f32 %v1354, 0.35355338
      %v1365 = vmax.f32 %v1357, -5.0
      %v1366 = vmax.f32 %v1358, -5.0
      %v1367 = vmax.f32 %v1359, -5.0
      %v1368 = vmax.f32 %v1360, -5.0
      %v1369 = vmax.f32 %v1361, -5.0
      %v1370 = vmax.f32 %v1362, -5.0
      %v1371 = vmax.f32 %v1363, -5.0
      %v1372 = vmax.f32 %v1364, -5.0
      %v1373 = vmin.f32 %v1365, 5.0
      %v1374 = vmin.f32 %v1366, 5.0
      %v1375 = vmin.f32 %v1367, 5.0
      %v1376 = vmin.f32 %v1368, 5.0
      %v1377 = vmin.f32 %v1369, 5.0
      %v1378 = vmin.f32 %v1370, 5.0
      %v1379 = vmin.f32 %v1371, 5.0
      %v1380 = vmin.f32 %v1372, 5.0
      %v1381 = vmul.f32 %v1373, 1.442695
      %v1382 = vpow.pop %v1381
      %v1383 = vmul.f32 %v1374, 1.442695
      %v1384 = vpow.pop %v1383
      %v1385 = vmul.f32 %v1375, 1.442695
      %v1386 = vpow.pop %v1385
      %v1387 = vmul.f32 %v1376, 1.442695
      %v1388 = vpow.pop %v1387
      %v1389 = vmul.f32 %v1377, 1.442695
      %v1390 = vpow.pop %v1389
      %v1391 = vmul.f32 %v1378, 1.442695
      %v1392 = vpow.pop %v1391
      %v1393 = vmul.f32 %v1379, 1.442695
      %v1394 = vpow.pop %v1393
      %v1395 = vmul.f32 %v1380, 1.442695
      %v1396 = vpow.pop %v1395
      %v1397 = vmul.f32 %v1382, %v416
      %v1398 = vmul.f32 %v1384, %v417
      %v1399 = vmul.f32 %v1386, %v418
      %v1400 = vmul.f32 %v1388, %v419
      %v1401 = vmul.f32 %v1390, %v420
      %v1402 = vmul.f32 %v1392, %v421
      %v1403 = vmul.f32 %v1394, %v422
      %v1404 = vmul.f32 %v1396, %v423
      %v1406 = vsel %vm1026, %v1397, 0
      %v1409 = vsel %vm1026, %v1398, 0
      %v1412 = vsel %vm1026, %v1399, 0
      %v1415 = vsel %vm1026, %v1400, 0
      %v1418 = vsel %vm1026, %v1401, 0
      %v1421 = vsel %vm1026, %v1402, 0
      %v1424 = vsel %vm1026, %v1403, 0
      %v1427 = vsel %vm1026, %v1404, 0
      %1429 = vmatprep.subr.mxu0 0.0
      %1430 = vmatpush1.msra.mxu0 %v787
      %1431 = vmatprep.subr.mxu0 0.0
      %1432 = vmatpush1.msra.mxu0 %v790
      %1433 = vmatprep.subr.mxu0 0.0
      %1434 = vmatpush1.msra.mxu0 %v795
      %1435 = vmatprep.subr.mxu0 0.0
      %1436 = vmatpush1.msra.mxu0 %v798
      %1437 = vmatprep.subr.mxu0 0.0
      %1438 = vmatpush1.msra.mxu0 %v803
      %1439 = vmatprep.subr.mxu0 0.0
      %1440 = vmatpush1.msra.mxu0 %v806
      %1441 = vmatprep.subr.mxu0 0.0
      %1442 = vmatpush1.msra.mxu0 %v811
      %1443 = vmatprep.subr.mxu0 0.0
      %1444 = vmatpush1.msra.mxu0 %v814
      %1445 = vmatprep.subr.mxu0 0.0
      %1446 = vmatpush1.msra.mxu0 0.0
      %1447 = vmatprep.subr.mxu0 0.0
      %1448 = vmatpush1.msra.mxu0 0.0
      %1449 = vmatprep.subr.mxu0 0.0
      %1450 = vmatpush1.msra.mxu0 0.0
      %1451 = vmatprep.subr.mxu0 0.0
      %1452 = vmatpush1.msra.mxu0 0.0
      %1453 = vmatprep.subr.mxu0 0.0
      %1454 = vmatpush1.msra.mxu0 0.0
      %1455 = vmatprep.subr.mxu0 0.0
      %1456 = vmatpush1.msra.mxu0 0.0
      %1457 = vmatprep.subr.mxu0 0.0
      %1458 = vmatpush1.msra.mxu0 0.0
      %1459 = vmatprep.subr.mxu0 0.0
      %1460 = vmatpush1.msra.mxu0 0.0
      %1461 = vmatprep.subr.mxu0 0.0
      %1462 = vmatpush1.msra.mxu0 0.0
      %1463 = vmatprep.subr.mxu0 0.0
      %1464 = vmatpush1.msra.mxu0 0.0
      %1465 = vmatprep.subr.mxu0 0.0
      %1466 = vmatpush1.msra.mxu0 0.0
      %1467 = vmatprep.subr.mxu0 0.0
      %1468 = vmatpush1.msra.mxu0 0.0
      %1469 = vmatprep.subr.mxu0 0.0
      %1470 = vmatpush1.msra.mxu0 0.0
      %1471 = vmatprep.subr.mxu0 0.0
      %1472 = vmatpush1.msra.mxu0 0.0
      %1473 = vmatprep.subr.mxu0 0.0
      %1474 = vmatpush1.msra.mxu0 0.0
      %1475 = vmatprep.subr.mxu0 0.0
      %1476 = vmatpush1.msra.mxu0 0.0
      %1477 = vmatprep.subr.mxu0 0.0
      %1478 = vmatpush1.msra.mxu0 0.0
      %1479 = vmatprep.subr.mxu0 0.0
      %1480 = vmatpush1.msra.mxu0 0.0
      %1481 = vmatprep.subr.mxu0 0.0
      %1482 = vmatpush1.msra.mxu0 0.0
      %1483 = vmatprep.subr.mxu0 0.0
      %1484 = vmatpush1.msra.mxu0 0.0
      %1485 = vmatprep.subr.mxu0 0.0
      %1486 = vmatpush1.msra.mxu0 0.0
      %1487 = vmatprep.subr.mxu0 0.0
      %1488 = vmatpush1.msra.mxu0 0.0
      %1489 = vmatprep.subr.mxu0 0.0
      %1490 = vmatpush1.msra.mxu0 0.0
      %1491 = vmatprep.subr.mxu0 0.0
      %1492 = vmatpush1.msra.mxu0 0.0
      %1493 = vmatprep.mubr.f32.mxu0 0.0
      %1494 = vmatmul.mubr.f32.gmra.mrb[0].mxu0 %v1406
      %v1495 = vpop.f32.mrb[0].mxu0
      %v1496 = vadd.f32 0.0, %v1495
      %v1497 = vpop.f32.mrb[0].mxu0
      %1498 = vmatprep.mubr.f32.mxu0 0.0
      %1499 = vmatmul.mubr.f32.gmra.mrb[0].mxu0 %v1409
      %v1500 = vpop.f32.mrb[0].mxu0
      %v1501 = vadd.f32 0.0, %v1500
      %v1502 = vpop.f32.mrb[0].mxu0
      %1503 = vmatprep.mubr.f32.mxu0 0.0
      %1504 = vmatmul.mubr.f32.gmra.mrb[0].mxu0 %v1412
      %v1505 = vpop.f32.mrb[0].mxu0
      %v1506 = vadd.f32 0.0, %v1505
      %v1507 = vpop.f32.mrb[0].mxu0
      %1508 = vmatprep.mubr.f32.mxu0 0.0
      %1509 = vmatmul.mubr.f32.gmra.mrb[0].mxu0 %v1415
      %v1510 = vpop.f32.mrb[0].mxu0
      %v1511 = vadd.f32 0.0, %v1510
      %v1512 = vpop.f32.mrb[0].mxu0
      %1513 = vmatprep.mubr.f32.mxu0 0.0
      %1514 = vmatmul.mubr.f32.gmra.mrb[0].mxu0 %v1418
      %v1515 = vpop.f32.mrb[0].mxu0
      %v1516 = vadd.f32 0.0, %v1515
      %v1517 = vpop.f32.mrb[0].mxu0
      %1518 = vmatprep.mubr.f32.mxu0 0.0
      %1519 = vmatmul.mubr.f32.gmra.mrb[0].mxu0 %v1421
      %v1520 = vpop.f32.mrb[0].mxu0
      %v1521 = vadd.f32 0.0, %v1520
      %v1522 = vpop.f32.mrb[0].mxu0
      %1523 = vmatprep.mubr.f32.mxu0 0.0
      %1524 = vmatmul.mubr.f32.gmra.mrb[0].mxu0 %v1424
      %v1525 = vpop.f32.mrb[0].mxu0
      %v1526 = vadd.f32 0.0, %v1525
      %v1527 = vpop.f32.mrb[0].mxu0
      %1528 = vmatprep.mubr.f32.mxu0 0.0
      %1529 = vmatmul.mubr.f32.gmra.mrb[0].mxu0 %v1427
      %v1530 = vpop.f32.mrb[0].mxu0
      %v1531 = vadd.f32 0.0, %v1530
      %v1532 = vpop.f32.mrb[0].mxu0
      %1533 = vdwg.mxu0
      %v1534 = vsel %vm1026, %v1397, 0.0
      %1535 = vadd.xlane.f32.xlu0 %v1534
      %v1536 = vpop.xlane.xlu0 %1535
      %v1537 = vsel %vm1026, %v1398, 0.0
      %1538 = vadd.xlane.f32.xlu0 %v1537
      %v1539 = vpop.xlane.xlu0 %1538
      %v1540 = vsel %vm1026, %v1399, 0.0
      %1541 = vadd.xlane.f32.xlu0 %v1540
      %v1542 = vpop.xlane.xlu0 %1541
      %v1543 = vsel %vm1026, %v1400, 0.0
      %1544 = vadd.xlane.f32.xlu0 %v1543
      %v1545 = vpop.xlane.xlu0 %1544
      %v1546 = vsel %vm1026, %v1401, 0.0
      %1547 = vadd.xlane.f32.xlu0 %v1546
      %v1548 = vpop.xlane.xlu0 %1547
      %v1549 = vsel %vm1026, %v1402, 0.0
      %1550 = vadd.xlane.f32.xlu0 %v1549
      %v1551 = vpop.xlane.xlu0 %1550
      %v1552 = vsel %vm1026, %v1403, 0.0
      %1553 = vadd.xlane.f32.xlu0 %v1552
      %v1554 = vpop.xlane.xlu0 %1553
      %v1555 = vsel %vm1026, %v1404, 0.0
      %1556 = vadd.xlane.f32.xlu0 %v1555
      %v1557 = vpop.xlane.xlu0 %1556
      %v1558 = vadd.f32 %v1536, 1e-06
      %v1559 = vadd.f32 %v1539, 1e-06
      %v1560 = vadd.f32 %v1542, 1e-06
      %v1561 = vadd.f32 %v1545, 1e-06
      %v1562 = vadd.f32 %v1548, 1e-06
      %v1563 = vadd.f32 %v1551, 1e-06
      %v1564 = vadd.f32 %v1554, 1e-06
      %v1565 = vadd.f32 %v1557, 1e-06
      %v1566 = vrcp.pop %v1558
      %v1567 = vrcp.pop %v1559
      %v1568 = vrcp.pop %v1560
      %v1569 = vrcp.pop %v1561
      %v1570 = vrcp.pop %v1562
      %v1571 = vrcp.pop %v1563
      %v1572 = vrcp.pop %v1564
      %v1573 = vrcp.pop %v1565
      %v1574 = vmul.f32 %v1496, %v1566
      %v1575 = vmul.f32 %v1501, %v1567
      %v1576 = vmul.f32 %v1506, %v1568
      %v1577 = vmul.f32 %v1511, %v1569
      %v1578 = vmul.f32 %v1516, %v1570
      %v1579 = vmul.f32 %v1521, %v1571
      %v1580 = vmul.f32 %v1526, %v1572
      %v1581 = vmul.f32 %v1531, %v1573
      %v1582 = vmul.f32 %v1574, %v530
      %v1583 = vmul.f32 %v1575, %v530
      %v1584 = vmul.f32 %v1576, %v530
      %v1585 = vmul.f32 %v1577, %v530
      %v1586 = vmul.f32 %v1578, %v530
      %v1587 = vmul.f32 %v1579, %v530
      %v1588 = vmul.f32 %v1580, %v530
      %v1589 = vmul.f32 %v1581, %v530
      %v1590 = vadd.f32 %v1212, %v1582
      %v1591 = vadd.f32 %v1213, %v1583
      %v1592 = vadd.f32 %v1214, %v1584
      %v1593 = vadd.f32 %v1215, %v1585
      %v1594 = vadd.f32 %v1216, %v1586
      %v1595 = vadd.f32 %v1217, %v1587
      %v1596 = vadd.f32 %v1218, %v1588
      %v1597 = vadd.f32 %v1219, %v1589
      %v1598 = vmul.f32 %v615, %v535
      %v1599 = vmul.f32 %v618, %v535
      %v1600 = vmul.f32 %v623, %v535
      %v1601 = vmul.f32 %v626, %v535
      %v1602 = vmul.f32 %v631, %v535
      %v1603 = vmul.f32 %v634, %v535
      %v1604 = vmul.f32 %v639, %v535
      %v1605 = vmul.f32 %v642, %v535
      %v1607 = vsel %vm567, %v1598, 0
      %v1610 = vsel %vm567, %v1599, 0
      %v1613 = vsel %vm567, %v1600, 0
      %v1616 = vsel %vm567, %v1601, 0
      %v1619 = vsel %vm567, %v1602, 0
      %v1622 = vsel %vm567, %v1603, 0
      %v1625 = vsel %vm567, %v1604, 0
      %v1628 = vsel %vm567, %v1605, 0
      %1630 = vmatprep.subr.mxu0 0.0
      %1631 = vmatpush1.xpose.msra.mxu0 %v850
      %1632 = vmatprep.subr.mxu0 0.0
      %1633 = vmatpush1.xpose.msra.mxu0 %v853
      %1634 = vmatprep.subr.mxu0 0.0
      %1635 = vmatpush1.xpose.msra.mxu0 %v856
      %1636 = vmatprep.subr.mxu0 0.0
      %1637 = vmatpush1.xpose.msra.mxu0 %v859
      %1638 = vmatprep.subr.mxu0 0.0
      %1639 = vmatpush1.xpose.msra.mxu0 %v862
      %1640 = vmatprep.subr.mxu0 0.0
      %1641 = vmatpush1.xpose.msra.mxu0 %v865
      %1642 = vmatprep.subr.mxu0 0.0
      %1643 = vmatpush1.xpose.msra.mxu0 %v868
      %1644 = vmatprep.subr.mxu0 0.0
      %1645 = vmatpush1.xpose.msra.mxu0 %v871
      %1646 = vmatprep.subr.mxu0 0.0
      %1647 = vmatpush1.xpose.msra.mxu0 0.0
      %1648 = vmatprep.subr.mxu0 0.0
      %1649 = vmatpush1.xpose.msra.mxu0 0.0
      %1650 = vmatprep.subr.mxu0 0.0
      %1651 = vmatpush1.xpose.msra.mxu0 0.0
      %1652 = vmatprep.subr.mxu0 0.0
      %1653 = vmatpush1.xpose.msra.mxu0 0.0
      %1654 = vmatprep.subr.mxu0 0.0
      %1655 = vmatpush1.xpose.msra.mxu0 0.0
      %1656 = vmatprep.subr.mxu0 0.0
      %1657 = vmatpush1.xpose.msra.mxu0 0.0
      %1658 = vmatprep.subr.mxu0 0.0
      %1659 = vmatpush1.xpose.msra.mxu0 0.0
      %1660 = vmatprep.subr.mxu0 0.0
      %1661 = vmatpush1.xpose.msra.mxu0 0.0
      %1662 = vmatprep.subr.mxu0 0.0
      %1663 = vmatpush1.xpose.msra.mxu0 0.0
      %1664 = vmatprep.subr.mxu0 0.0
      %1665 = vmatpush1.xpose.msra.mxu0 0.0
      %1666 = vmatprep.subr.mxu0 0.0
      %1667 = vmatpush1.xpose.msra.mxu0 0.0
      %1668 = vmatprep.subr.mxu0 0.0
      %1669 = vmatpush1.xpose.msra.mxu0 0.0
      %1670 = vmatprep.subr.mxu0 0.0
      %1671 = vmatpush1.xpose.msra.mxu0 0.0
      %1672 = vmatprep.subr.mxu0 0.0
      %1673 = vmatpush1.xpose.msra.mxu0 0.0
      %1674 = vmatprep.subr.mxu0 0.0
      %1675 = vmatpush1.xpose.msra.mxu0 0.0
      %1676 = vmatprep.subr.mxu0 0.0
      %1677 = vmatpush1.xpose.msra.mxu0 0.0
      %1678 = vmatprep.subr.mxu0 0.0
      %1679 = vmatpush1.xpose.msra.mxu0 0.0
      %1680 = vmatprep.subr.mxu0 0.0
      %1681 = vmatpush1.xpose.msra.mxu0 0.0
      %1682 = vmatprep.subr.mxu0 0.0
      %1683 = vmatpush1.xpose.msra.mxu0 0.0
      %1684 = vmatprep.subr.mxu0 0.0
      %1685 = vmatpush1.xpose.msra.mxu0 0.0
      %1686 = vmatprep.subr.mxu0 0.0
      %1687 = vmatpush1.xpose.msra.mxu0 0.0
      %1688 = vmatprep.subr.mxu0 0.0
      %1689 = vmatpush1.xpose.msra.mxu0 0.0
      %1690 = vmatprep.subr.mxu0 0.0
      %1691 = vmatpush1.xpose.msra.mxu0 0.0
      %1692 = vmatprep.subr.mxu0 0.0
      %1693 = vmatpush1.xpose.msra.mxu0 0.0
      %1694 = vmatprep.mubr.f32.mxu0 0.0
      %1695 = vmatmul.mubr.f32.gmra.mrb[0].mxu0 %v1607
      %v1696 = vpop.f32.mrb[0].mxu0
      %v1697 = vadd.f32 0.0, %v1696
      %v1698 = vpop.f32.mrb[0].mxu0
      %1699 = vmatprep.mubr.f32.mxu0 0.0
      %1700 = vmatmul.mubr.f32.gmra.mrb[0].mxu0 %v1610
      %v1701 = vpop.f32.mrb[0].mxu0
      %v1702 = vadd.f32 0.0, %v1701
      %v1703 = vpop.f32.mrb[0].mxu0
      %1704 = vmatprep.mubr.f32.mxu0 0.0
      %1705 = vmatmul.mubr.f32.gmra.mrb[0].mxu0 %v1613
      %v1706 = vpop.f32.mrb[0].mxu0
      %v1707 = vadd.f32 0.0, %v1706
      %v1708 = vpop.f32.mrb[0].mxu0
      %1709 = vmatprep.mubr.f32.mxu0 0.0
      %1710 = vmatmul.mubr.f32.gmra.mrb[0].mxu0 %v1616
      %v1711 = vpop.f32.mrb[0].mxu0
      %v1712 = vadd.f32 0.0, %v1711
      %v1713 = vpop.f32.mrb[0].mxu0
      %1714 = vmatprep.mubr.f32.mxu0 0.0
      %1715 = vmatmul.mubr.f32.gmra.mrb[0].mxu0 %v1619
      %v1716 = vpop.f32.mrb[0].mxu0
      %v1717 = vadd.f32 0.0, %v1716
      %v1718 = vpop.f32.mrb[0].mxu0
      %1719 = vmatprep.mubr.f32.mxu0 0.0
      %1720 = vmatmul.mubr.f32.gmra.mrb[0].mxu0 %v1622
      %v1721 = vpop.f32.mrb[0].mxu0
      %v1722 = vadd.f32 0.0, %v1721
      %v1723 = vpop.f32.mrb[0].mxu0
      %1724 = vmatprep.mubr.f32.mxu0 0.0
      %1725 = vmatmul.mubr.f32.gmra.mrb[0].mxu0 %v1625
      %v1726 = vpop.f32.mrb[0].mxu0
      %v1727 = vadd.f32 0.0, %v1726
      %v1728 = vpop.f32.mrb[0].mxu0
      %1729 = vmatprep.mubr.f32.mxu0 0.0
      %1730 = vmatmul.mubr.f32.gmra.mrb[0].mxu0 %v1628
      %v1731 = vpop.f32.mrb[0].mxu0
      %v1732 = vadd.f32 0.0, %v1731
      %v1733 = vpop.f32.mrb[0].mxu0
      %1734 = vdwg.mxu0
      %v1735 = vmul.f32 %v1697, 0.35355338
      %v1736 = vmul.f32 %v1702, 0.35355338
      %v1737 = vmul.f32 %v1707, 0.35355338
      %v1738 = vmul.f32 %v1712, 0.35355338
      %v1739 = vmul.f32 %v1717, 0.35355338
      %v1740 = vmul.f32 %v1722, 0.35355338
      %v1741 = vmul.f32 %v1727, 0.35355338
      %v1742 = vmul.f32 %v1732, 0.35355338
      %v1743 = vmax.f32 %v1735, -5.0
      %v1744 = vmax.f32 %v1736, -5.0
      %v1745 = vmax.f32 %v1737, -5.0
      %v1746 = vmax.f32 %v1738, -5.0
      %v1747 = vmax.f32 %v1739, -5.0
      %v1748 = vmax.f32 %v1740, -5.0
      %v1749 = vmax.f32 %v1741, -5.0
      %v1750 = vmax.f32 %v1742, -5.0
      %v1751 = vmin.f32 %v1743, 5.0
      %v1752 = vmin.f32 %v1744, 5.0
      %v1753 = vmin.f32 %v1745, 5.0
      %v1754 = vmin.f32 %v1746, 5.0
      %v1755 = vmin.f32 %v1747, 5.0
      %v1756 = vmin.f32 %v1748, 5.0
      %v1757 = vmin.f32 %v1749, 5.0
      %v1758 = vmin.f32 %v1750, 5.0
      %v1759 = vmul.f32 %v1751, 1.442695
      %v1760 = vpow.pop %v1759
      %v1761 = vmul.f32 %v1752, 1.442695
      %v1762 = vpow.pop %v1761
      %v1763 = vmul.f32 %v1753, 1.442695
      %v1764 = vpow.pop %v1763
      %v1765 = vmul.f32 %v1754, 1.442695
      %v1766 = vpow.pop %v1765
      %v1767 = vmul.f32 %v1755, 1.442695
      %v1768 = vpow.pop %v1767
      %v1769 = vmul.f32 %v1756, 1.442695
      %v1770 = vpow.pop %v1769
      %v1771 = vmul.f32 %v1757, 1.442695
      %v1772 = vpow.pop %v1771
      %v1773 = vmul.f32 %v1758, 1.442695
      %v1774 = vpow.pop %v1773
      %v1775 = vmul.f32 %v1760, %v416
      %v1776 = vmul.f32 %v1762, %v417
      %v1777 = vmul.f32 %v1764, %v418
      %v1778 = vmul.f32 %v1766, %v419
      %v1779 = vmul.f32 %v1768, %v420
      %v1780 = vmul.f32 %v1770, %v421
      %v1781 = vmul.f32 %v1772, %v422
      %v1782 = vmul.f32 %v1774, %v423
      %v1784 = vsel %vm1026, %v1775, 0
      %v1787 = vsel %vm1026, %v1776, 0
      %v1790 = vsel %vm1026, %v1777, 0
      %v1793 = vsel %vm1026, %v1778, 0
      %v1796 = vsel %vm1026, %v1779, 0
      %v1799 = vsel %vm1026, %v1780, 0
      %v1802 = vsel %vm1026, %v1781, 0
      %v1805 = vsel %vm1026, %v1782, 0
      %1807 = vmatprep.subr.mxu0 0.0
      %1808 = vmatpush1.msra.mxu0 %v787
      %1809 = vmatprep.subr.mxu0 0.0
      %1810 = vmatpush1.msra.mxu0 %v790
      %1811 = vmatprep.subr.mxu0 0.0
      %1812 = vmatpush1.msra.mxu0 %v795
      %1813 = vmatprep.subr.mxu0 0.0
      %1814 = vmatpush1.msra.mxu0 %v798
      %1815 = vmatprep.subr.mxu0 0.0
      %1816 = vmatpush1.msra.mxu0 %v803
      %1817 = vmatprep.subr.mxu0 0.0
      %1818 = vmatpush1.msra.mxu0 %v806
      %1819 = vmatprep.subr.mxu0 0.0
      %1820 = vmatpush1.msra.mxu0 %v811
      %1821 = vmatprep.subr.mxu0 0.0
      %1822 = vmatpush1.msra.mxu0 %v814
      %1823 = vmatprep.subr.mxu0 0.0
      %1824 = vmatpush1.msra.mxu0 0.0
      %1825 = vmatprep.subr.mxu0 0.0
      %1826 = vmatpush1.msra.mxu0 0.0
      %1827 = vmatprep.subr.mxu0 0.0
      %1828 = vmatpush1.msra.mxu0 0.0
      %1829 = vmatprep.subr.mxu0 0.0
      %1830 = vmatpush1.msra.mxu0 0.0
      %1831 = vmatprep.subr.mxu0 0.0
      %1832 = vmatpush1.msra.mxu0 0.0
      %1833 = vmatprep.subr.mxu0 0.0
      %1834 = vmatpush1.msra.mxu0 0.0
      %1835 = vmatprep.subr.mxu0 0.0
      %1836 = vmatpush1.msra.mxu0 0.0
      %1837 = vmatprep.subr.mxu0 0.0
      %1838 = vmatpush1.msra.mxu0 0.0
      %1839 = vmatprep.subr.mxu0 0.0
      %1840 = vmatpush1.msra.mxu0 0.0
      %1841 = vmatprep.subr.mxu0 0.0
      %1842 = vmatpush1.msra.mxu0 0.0
      %1843 = vmatprep.subr.mxu0 0.0
      %1844 = vmatpush1.msra.mxu0 0.0
      %1845 = vmatprep.subr.mxu0 0.0
      %1846 = vmatpush1.msra.mxu0 0.0
      %1847 = vmatprep.subr.mxu0 0.0
      %1848 = vmatpush1.msra.mxu0 0.0
      %1849 = vmatprep.subr.mxu0 0.0
      %1850 = vmatpush1.msra.mxu0 0.0
      %1851 = vmatprep.subr.mxu0 0.0
      %1852 = vmatpush1.msra.mxu0 0.0
      %1853 = vmatprep.subr.mxu0 0.0
      %1854 = vmatpush1.msra.mxu0 0.0
      %1855 = vmatprep.subr.mxu0 0.0
      %1856 = vmatpush1.msra.mxu0 0.0
      %1857 = vmatprep.subr.mxu0 0.0
      %1858 = vmatpush1.msra.mxu0 0.0
      %1859 = vmatprep.subr.mxu0 0.0
      %1860 = vmatpush1.msra.mxu0 0.0
      %1861 = vmatprep.subr.mxu0 0.0
      %1862 = vmatpush1.msra.mxu0 0.0
      %1863 = vmatprep.subr.mxu0 0.0
      %1864 = vmatpush1.msra.mxu0 0.0
      %1865 = vmatprep.subr.mxu0 0.0
      %1866 = vmatpush1.msra.mxu0 0.0
      %1867 = vmatprep.subr.mxu0 0.0
      %1868 = vmatpush1.msra.mxu0 0.0
      %1869 = vmatprep.subr.mxu0 0.0
      %1870 = vmatpush1.msra.mxu0 0.0
      %1871 = vmatprep.mubr.f32.mxu0 0.0
      %1872 = vmatmul.mubr.f32.gmra.mrb[0].mxu0 %v1784
      %v1873 = vpop.f32.mrb[0].mxu0
      %v1874 = vadd.f32 0.0, %v1873
      %v1875 = vpop.f32.mrb[0].mxu0
      %1876 = vmatprep.mubr.f32.mxu0 0.0
      %1877 = vmatmul.mubr.f32.gmra.mrb[0].mxu0 %v1787
      %v1878 = vpop.f32.mrb[0].mxu0
      %v1879 = vadd.f32 0.0, %v1878
      %v1880 = vpop.f32.mrb[0].mxu0
      %1881 = vmatprep.mubr.f32.mxu0 0.0
      %1882 = vmatmul.mubr.f32.gmra.mrb[0].mxu0 %v1790
      %v1883 = vpop.f32.mrb[0].mxu0
      %v1884 = vadd.f32 0.0, %v1883
      %v1885 = vpop.f32.mrb[0].mxu0
      %1886 = vmatprep.mubr.f32.mxu0 0.0
      %1887 = vmatmul.mubr.f32.gmra.mrb[0].mxu0 %v1793
      %v1888 = vpop.f32.mrb[0].mxu0
      %v1889 = vadd.f32 0.0, %v1888
      %v1890 = vpop.f32.mrb[0].mxu0
      %1891 = vmatprep.mubr.f32.mxu0 0.0
      %1892 = vmatmul.mubr.f32.gmra.mrb[0].mxu0 %v1796
      %v1893 = vpop.f32.mrb[0].mxu0
      %v1894 = vadd.f32 0.0, %v1893
      %v1895 = vpop.f32.mrb[0].mxu0
      %1896 = vmatprep.mubr.f32.mxu0 0.0
      %1897 = vmatmul.mubr.f32.gmra.mrb[0].mxu0 %v1799
      %v1898 = vpop.f32.mrb[0].mxu0
      %v1899 = vadd.f32 0.0, %v1898
      %v1900 = vpop.f32.mrb[0].mxu0
      %1901 = vmatprep.mubr.f32.mxu0 0.0
      %1902 = vmatmul.mubr.f32.gmra.mrb[0].mxu0 %v1802
      %v1903 = vpop.f32.mrb[0].mxu0
      %v1904 = vadd.f32 0.0, %v1903
      %v1905 = vpop.f32.mrb[0].mxu0
      %1906 = vmatprep.mubr.f32.mxu0 0.0
      %1907 = vmatmul.mubr.f32.gmra.mrb[0].mxu0 %v1805
      %v1908 = vpop.f32.mrb[0].mxu0
      %v1909 = vadd.f32 0.0, %v1908
      %v1910 = vpop.f32.mrb[0].mxu0
      %1911 = vdwg.mxu0
      %v1912 = vsel %vm1026, %v1775, 0.0
      %1913 = vadd.xlane.f32.xlu0 %v1912
      %v1914 = vpop.xlane.xlu0 %1913
      %v1915 = vsel %vm1026, %v1776, 0.0
      %1916 = vadd.xlane.f32.xlu0 %v1915
      %v1917 = vpop.xlane.xlu0 %1916
      %v1918 = vsel %vm1026, %v1777, 0.0
      %1919 = vadd.xlane.f32.xlu0 %v1918
      %v1920 = vpop.xlane.xlu0 %1919
      %v1921 = vsel %vm1026, %v1778, 0.0
      %1922 = vadd.xlane.f32.xlu0 %v1921
      %v1923 = vpop.xlane.xlu0 %1922
      %v1924 = vsel %vm1026, %v1779, 0.0
      %1925 = vadd.xlane.f32.xlu0 %v1924
      %v1926 = vpop.xlane.xlu0 %1925
      %v1927 = vsel %vm1026, %v1780, 0.0
      %1928 = vadd.xlane.f32.xlu0 %v1927
      %v1929 = vpop.xlane.xlu0 %1928
      %v1930 = vsel %vm1026, %v1781, 0.0
      %1931 = vadd.xlane.f32.xlu0 %v1930
      %v1932 = vpop.xlane.xlu0 %1931
      %v1933 = vsel %vm1026, %v1782, 0.0
      %1934 = vadd.xlane.f32.xlu0 %v1933
      %v1935 = vpop.xlane.xlu0 %1934
      %v1936 = vadd.f32 %v1914, 1e-06
      %v1937 = vadd.f32 %v1917, 1e-06
      %v1938 = vadd.f32 %v1920, 1e-06
      %v1939 = vadd.f32 %v1923, 1e-06
      %v1940 = vadd.f32 %v1926, 1e-06
      %v1941 = vadd.f32 %v1929, 1e-06
      %v1942 = vadd.f32 %v1932, 1e-06
      %v1943 = vadd.f32 %v1935, 1e-06
      %v1944 = vrcp.pop %v1936
      %v1945 = vrcp.pop %v1937
      %v1946 = vrcp.pop %v1938
      %v1947 = vrcp.pop %v1939
      %v1948 = vrcp.pop %v1940
      %v1949 = vrcp.pop %v1941
      %v1950 = vrcp.pop %v1942
      %v1951 = vrcp.pop %v1943
      %v1952 = vmul.f32 %v1874, %v1944
      %v1953 = vmul.f32 %v1879, %v1945
      %v1954 = vmul.f32 %v1884, %v1946
      %v1955 = vmul.f32 %v1889, %v1947
      %v1956 = vmul.f32 %v1894, %v1948
      %v1957 = vmul.f32 %v1899, %v1949
      %v1958 = vmul.f32 %v1904, %v1950
      %v1959 = vmul.f32 %v1909, %v1951
      %v1960 = vmul.f32 %v1952, %v535
      %v1961 = vmul.f32 %v1953, %v535
      %v1962 = vmul.f32 %v1954, %v535
      %v1963 = vmul.f32 %v1955, %v535
      %v1964 = vmul.f32 %v1956, %v535
      %v1965 = vmul.f32 %v1957, %v535
      %v1966 = vmul.f32 %v1958, %v535
      %v1967 = vmul.f32 %v1959, %v535
      %v1968 = vadd.f32 %v1590, %v1960
      %v1969 = vadd.f32 %v1591, %v1961
      %v1970 = vadd.f32 %v1592, %v1962
      %v1971 = vadd.f32 %v1593, %v1963
      %v1972 = vadd.f32 %v1594, %v1964
      %v1973 = vadd.f32 %v1595, %v1965
      %v1974 = vadd.f32 %v1596, %v1966
      %v1975 = vadd.f32 %v1597, %v1967
      %v1976 = vmul.f32 %v615, %v540
      %v1977 = vmul.f32 %v618, %v540
      %v1978 = vmul.f32 %v623, %v540
      %v1979 = vmul.f32 %v626, %v540
      %v1980 = vmul.f32 %v631, %v540
      %v1981 = vmul.f32 %v634, %v540
      %v1982 = vmul.f32 %v639, %v540
      %v1983 = vmul.f32 %v642, %v540
      %v1985 = vsel %vm567, %v1976, 0
      %v1988 = vsel %vm567, %v1977, 0
      %v1991 = vsel %vm567, %v1978, 0
      %v1994 = vsel %vm567, %v1979, 0
      %v1997 = vsel %vm567, %v1980, 0
      %v2000 = vsel %vm567, %v1981, 0
      %v2003 = vsel %vm567, %v1982, 0
      %v2006 = vsel %vm567, %v1983, 0
      %2008 = vmatprep.subr.mxu0 0.0
      %2009 = vmatpush1.xpose.msra.mxu0 %v850
      %2010 = vmatprep.subr.mxu0 0.0
      %2011 = vmatpush1.xpose.msra.mxu0 %v853
      %2012 = vmatprep.subr.mxu0 0.0
      %2013 = vmatpush1.xpose.msra.mxu0 %v856
      %2014 = vmatprep.subr.mxu0 0.0
      %2015 = vmatpush1.xpose.msra.mxu0 %v859
      %2016 = vmatprep.subr.mxu0 0.0
      %2017 = vmatpush1.xpose.msra.mxu0 %v862
      %2018 = vmatprep.subr.mxu0 0.0
      %2019 = vmatpush1.xpose.msra.mxu0 %v865
      %2020 = vmatprep.subr.mxu0 0.0
      %2021 = vmatpush1.xpose.msra.mxu0 %v868
      %2022 = vmatprep.subr.mxu0 0.0
      %2023 = vmatpush1.xpose.msra.mxu0 %v871
      %2024 = vmatprep.subr.mxu0 0.0
      %2025 = vmatpush1.xpose.msra.mxu0 0.0
      %2026 = vmatprep.subr.mxu0 0.0
      %2027 = vmatpush1.xpose.msra.mxu0 0.0
      %2028 = vmatprep.subr.mxu0 0.0
      %2029 = vmatpush1.xpose.msra.mxu0 0.0
      %2030 = vmatprep.subr.mxu0 0.0
      %2031 = vmatpush1.xpose.msra.mxu0 0.0
      %2032 = vmatprep.subr.mxu0 0.0
      %2033 = vmatpush1.xpose.msra.mxu0 0.0
      %2034 = vmatprep.subr.mxu0 0.0
      %2035 = vmatpush1.xpose.msra.mxu0 0.0
      %2036 = vmatprep.subr.mxu0 0.0
      %2037 = vmatpush1.xpose.msra.mxu0 0.0
      %2038 = vmatprep.subr.mxu0 0.0
      %2039 = vmatpush1.xpose.msra.mxu0 0.0
      %2040 = vmatprep.subr.mxu0 0.0
      %2041 = vmatpush1.xpose.msra.mxu0 0.0
      %2042 = vmatprep.subr.mxu0 0.0
      %2043 = vmatpush1.xpose.msra.mxu0 0.0
      %2044 = vmatprep.subr.mxu0 0.0
      %2045 = vmatpush1.xpose.msra.mxu0 0.0
      %2046 = vmatprep.subr.mxu0 0.0
      %2047 = vmatpush1.xpose.msra.mxu0 0.0
      %2048 = vmatprep.subr.mxu0 0.0
      %2049 = vmatpush1.xpose.msra.mxu0 0.0
      %2050 = vmatprep.subr.mxu0 0.0
      %2051 = vmatpush1.xpose.msra.mxu0 0.0
      %2052 = vmatprep.subr.mxu0 0.0
      %2053 = vmatpush1.xpose.msra.mxu0 0.0
      %2054 = vmatprep.subr.mxu0 0.0
      %2055 = vmatpush1.xpose.msra.mxu0 0.0
      %2056 = vmatprep.subr.mxu0 0.0
      %2057 = vmatpush1.xpose.msra.mxu0 0.0
      %2058 = vmatprep.subr.mxu0 0.0
      %2059 = vmatpush1.xpose.msra.mxu0 0.0
      %2060 = vmatprep.subr.mxu0 0.0
      %2061 = vmatpush1.xpose.msra.mxu0 0.0
      %2062 = vmatprep.subr.mxu0 0.0
      %2063 = vmatpush1.xpose.msra.mxu0 0.0
      %2064 = vmatprep.subr.mxu0 0.0
      %2065 = vmatpush1.xpose.msra.mxu0 0.0
      %2066 = vmatprep.subr.mxu0 0.0
      %2067 = vmatpush1.xpose.msra.mxu0 0.0
      %2068 = vmatprep.subr.mxu0 0.0
      %2069 = vmatpush1.xpose.msra.mxu0 0.0
      %2070 = vmatprep.subr.mxu0 0.0
      %2071 = vmatpush1.xpose.msra.mxu0 0.0
      %2072 = vmatprep.mubr.f32.mxu0 0.0
      %2073 = vmatmul.mubr.f32.gmra.mrb[0].mxu0 %v1985
      %v2074 = vpop.f32.mrb[0].mxu0
      %v2075 = vadd.f32 0.0, %v2074
      %v2076 = vpop.f32.mrb[0].mxu0
      %2077 = vmatprep.mubr.f32.mxu0 0.0
      %2078 = vmatmul.mubr.f32.gmra.mrb[0].mxu0 %v1988
      %v2079 = vpop.f32.mrb[0].mxu0
      %v2080 = vadd.f32 0.0, %v2079
      %v2081 = vpop.f32.mrb[0].mxu0
      %2082 = vmatprep.mubr.f32.mxu0 0.0
      %2083 = vmatmul.mubr.f32.gmra.mrb[0].mxu0 %v1991
      %v2084 = vpop.f32.mrb[0].mxu0
      %v2085 = vadd.f32 0.0, %v2084
      %v2086 = vpop.f32.mrb[0].mxu0
      %2087 = vmatprep.mubr.f32.mxu0 0.0
      %2088 = vmatmul.mubr.f32.gmra.mrb[0].mxu0 %v1994
      %v2089 = vpop.f32.mrb[0].mxu0
      %v2090 = vadd.f32 0.0, %v2089
      %v2091 = vpop.f32.mrb[0].mxu0
      %2092 = vmatprep.mubr.f32.mxu0 0.0
      %2093 = vmatmul.mubr.f32.gmra.mrb[0].mxu0 %v1997
      %v2094 = vpop.f32.mrb[0].mxu0
      %v2095 = vadd.f32 0.0, %v2094
      %v2096 = vpop.f32.mrb[0].mxu0
      %2097 = vmatprep.mubr.f32.mxu0 0.0
      %2098 = vmatmul.mubr.f32.gmra.mrb[0].mxu0 %v2000
      %v2099 = vpop.f32.mrb[0].mxu0
      %v2100 = vadd.f32 0.0, %v2099
      %v2101 = vpop.f32.mrb[0].mxu0
      %2102 = vmatprep.mubr.f32.mxu0 0.0
      %2103 = vmatmul.mubr.f32.gmra.mrb[0].mxu0 %v2003
      %v2104 = vpop.f32.mrb[0].mxu0
      %v2105 = vadd.f32 0.0, %v2104
      %v2106 = vpop.f32.mrb[0].mxu0
      %2107 = vmatprep.mubr.f32.mxu0 0.0
      %2108 = vmatmul.mubr.f32.gmra.mrb[0].mxu0 %v2006
      %v2109 = vpop.f32.mrb[0].mxu0
      %v2110 = vadd.f32 0.0, %v2109
      %v2111 = vpop.f32.mrb[0].mxu0
      %2112 = vdwg.mxu0
      %v2113 = vmul.f32 %v2075, 0.35355338
      %v2114 = vmul.f32 %v2080, 0.35355338
      %v2115 = vmul.f32 %v2085, 0.35355338
      %v2116 = vmul.f32 %v2090, 0.35355338
      %v2117 = vmul.f32 %v2095, 0.35355338
      %v2118 = vmul.f32 %v2100, 0.35355338
      %v2119 = vmul.f32 %v2105, 0.35355338
      %v2120 = vmul.f32 %v2110, 0.35355338
      %v2121 = vmax.f32 %v2113, -5.0
      %v2122 = vmax.f32 %v2114, -5.0
      %v2123 = vmax.f32 %v2115, -5.0
      %v2124 = vmax.f32 %v2116, -5.0
      %v2125 = vmax.f32 %v2117, -5.0
      %v2126 = vmax.f32 %v2118, -5.0
      %v2127 = vmax.f32 %v2119, -5.0
      %v2128 = vmax.f32 %v2120, -5.0
      %v2129 = vmin.f32 %v2121, 5.0
      %v2130 = vmin.f32 %v2122, 5.0
      %v2131 = vmin.f32 %v2123, 5.0
      %v2132 = vmin.f32 %v2124, 5.0
      %v2133 = vmin.f32 %v2125, 5.0
      %v2134 = vmin.f32 %v2126, 5.0
      %v2135 = vmin.f32 %v2127, 5.0
      %v2136 = vmin.f32 %v2128, 5.0
      %v2137 = vmul.f32 %v2129, 1.442695
      %v2138 = vpow.pop %v2137
      %v2139 = vmul.f32 %v2130, 1.442695
      %v2140 = vpow.pop %v2139
      %v2141 = vmul.f32 %v2131, 1.442695
      %v2142 = vpow.pop %v2141
      %v2143 = vmul.f32 %v2132, 1.442695
      %v2144 = vpow.pop %v2143
      %v2145 = vmul.f32 %v2133, 1.442695
      %v2146 = vpow.pop %v2145
      %v2147 = vmul.f32 %v2134, 1.442695
      %v2148 = vpow.pop %v2147
      %v2149 = vmul.f32 %v2135, 1.442695
      %v2150 = vpow.pop %v2149
      %v2151 = vmul.f32 %v2136, 1.442695
      %v2152 = vpow.pop %v2151
      %v2153 = vmul.f32 %v2138, %v416
      %v2154 = vmul.f32 %v2140, %v417
      %v2155 = vmul.f32 %v2142, %v418
      %v2156 = vmul.f32 %v2144, %v419
      %v2157 = vmul.f32 %v2146, %v420
      %v2158 = vmul.f32 %v2148, %v421
      %v2159 = vmul.f32 %v2150, %v422
      %v2160 = vmul.f32 %v2152, %v423
      %v2162 = vsel %vm1026, %v2153, 0
      %v2165 = vsel %vm1026, %v2154, 0
      %v2168 = vsel %vm1026, %v2155, 0
      %v2171 = vsel %vm1026, %v2156, 0
      %v2174 = vsel %vm1026, %v2157, 0
      %v2177 = vsel %vm1026, %v2158, 0
      %v2180 = vsel %vm1026, %v2159, 0
      %v2183 = vsel %vm1026, %v2160, 0
      %2185 = vmatprep.subr.mxu0 0.0
      %2186 = vmatpush1.msra.mxu0 %v787
      %2187 = vmatprep.subr.mxu0 0.0
      %2188 = vmatpush1.msra.mxu0 %v790
      %2189 = vmatprep.subr.mxu0 0.0
      %2190 = vmatpush1.msra.mxu0 %v795
      %2191 = vmatprep.subr.mxu0 0.0
      %2192 = vmatpush1.msra.mxu0 %v798
      %2193 = vmatprep.subr.mxu0 0.0
      %2194 = vmatpush1.msra.mxu0 %v803
      %2195 = vmatprep.subr.mxu0 0.0
      %2196 = vmatpush1.msra.mxu0 %v806
      %2197 = vmatprep.subr.mxu0 0.0
      %2198 = vmatpush1.msra.mxu0 %v811
      %2199 = vmatprep.subr.mxu0 0.0
      %2200 = vmatpush1.msra.mxu0 %v814
      %2201 = vmatprep.subr.mxu0 0.0
      %2202 = vmatpush1.msra.mxu0 0.0
      %2203 = vmatprep.subr.mxu0 0.0
      %2204 = vmatpush1.msra.mxu0 0.0
      %2205 = vmatprep.subr.mxu0 0.0
      %2206 = vmatpush1.msra.mxu0 0.0
      %2207 = vmatprep.subr.mxu0 0.0
      %2208 = vmatpush1.msra.mxu0 0.0
      %2209 = vmatprep.subr.mxu0 0.0
      %2210 = vmatpush1.msra.mxu0 0.0
      %2211 = vmatprep.subr.mxu0 0.0
      %2212 = vmatpush1.msra.mxu0 0.0
      %2213 = vmatprep.subr.mxu0 0.0
      %2214 = vmatpush1.msra.mxu0 0.0
      %2215 = vmatprep.subr.mxu0 0.0
      %2216 = vmatpush1.msra.mxu0 0.0
      %2217 = vmatprep.subr.mxu0 0.0
      %2218 = vmatpush1.msra.mxu0 0.0
      %2219 = vmatprep.subr.mxu0 0.0
      %2220 = vmatpush1.msra.mxu0 0.0
      %2221 = vmatprep.subr.mxu0 0.0
      %2222 = vmatpush1.msra.mxu0 0.0
      %2223 = vmatprep.subr.mxu0 0.0
      %2224 = vmatpush1.msra.mxu0 0.0
      %2225 = vmatprep.subr.mxu0 0.0
      %2226 = vmatpush1.msra.mxu0 0.0
      %2227 = vmatprep.subr.mxu0 0.0
      %2228 = vmatpush1.msra.mxu0 0.0
      %2229 = vmatprep.subr.mxu0 0.0
      %2230 = vmatpush1.msra.mxu0 0.0
      %2231 = vmatprep.subr.mxu0 0.0
      %2232 = vmatpush1.msra.mxu0 0.0
      %2233 = vmatprep.subr.mxu0 0.0
      %2234 = vmatpush1.msra.mxu0 0.0
      %2235 = vmatprep.subr.mxu0 0.0
      %2236 = vmatpush1.msra.mxu0 0.0
      %2237 = vmatprep.subr.mxu0 0.0
      %2238 = vmatpush1.msra.mxu0 0.0
      %2239 = vmatprep.subr.mxu0 0.0
      %2240 = vmatpush1.msra.mxu0 0.0
      %2241 = vmatprep.subr.mxu0 0.0
      %2242 = vmatpush1.msra.mxu0 0.0
      %2243 = vmatprep.subr.mxu0 0.0
      %2244 = vmatpush1.msra.mxu0 0.0
      %2245 = vmatprep.subr.mxu0 0.0
      %2246 = vmatpush1.msra.mxu0 0.0
      %2247 = vmatprep.subr.mxu0 0.0
      %2248 = vmatpush1.msra.mxu0 0.0
      %2249 = vmatprep.mubr.f32.mxu0 0.0
      %2250 = vmatmul.mubr.f32.gmra.mrb[0].mxu0 %v2162
      %v2251 = vpop.f32.mrb[0].mxu0
      %v2252 = vadd.f32 0.0, %v2251
      %v2253 = vpop.f32.mrb[0].mxu0
      %2254 = vmatprep.mubr.f32.mxu0 0.0
      %2255 = vmatmul.mubr.f32.gmra.mrb[0].mxu0 %v2165
      %v2256 = vpop.f32.mrb[0].mxu0
      %v2257 = vadd.f32 0.0, %v2256
      %v2258 = vpop.f32.mrb[0].mxu0
      %2259 = vmatprep.mubr.f32.mxu0 0.0
      %2260 = vmatmul.mubr.f32.gmra.mrb[0].mxu0 %v2168
      %v2261 = vpop.f32.mrb[0].mxu0
      %v2262 = vadd.f32 0.0, %v2261
      %v2263 = vpop.f32.mrb[0].mxu0
      %2264 = vmatprep.mubr.f32.mxu0 0.0
      %2265 = vmatmul.mubr.f32.gmra.mrb[0].mxu0 %v2171
      %v2266 = vpop.f32.mrb[0].mxu0
      %v2267 = vadd.f32 0.0, %v2266
      %v2268 = vpop.f32.mrb[0].mxu0
      %2269 = vmatprep.mubr.f32.mxu0 0.0
      %2270 = vmatmul.mubr.f32.gmra.mrb[0].mxu0 %v2174
      %v2271 = vpop.f32.mrb[0].mxu0
      %v2272 = vadd.f32 0.0, %v2271
      %v2273 = vpop.f32.mrb[0].mxu0
      %2274 = vmatprep.mubr.f32.mxu0 0.0
      %2275 = vmatmul.mubr.f32.gmra.mrb[0].mxu0 %v2177
      %v2276 = vpop.f32.mrb[0].mxu0
      %v2277 = vadd.f32 0.0, %v2276
      %v2278 = vpop.f32.mrb[0].mxu0
      %2279 = vmatprep.mubr.f32.mxu0 0.0
      %2280 = vmatmul.mubr.f32.gmra.mrb[0].mxu0 %v2180
      %v2281 = vpop.f32.mrb[0].mxu0
      %v2282 = vadd.f32 0.0, %v2281
      %v2283 = vpop.f32.mrb[0].mxu0
      %2284 = vmatprep.mubr.f32.mxu0 0.0
      %2285 = vmatmul.mubr.f32.gmra.mrb[0].mxu0 %v2183
      %v2286 = vpop.f32.mrb[0].mxu0
      %v2287 = vadd.f32 0.0, %v2286
      %v2288 = vpop.f32.mrb[0].mxu0
      %2289 = vdwg.mxu0
      %v2290 = vsel %vm1026, %v2153, 0.0
      %2291 = vadd.xlane.f32.xlu0 %v2290
      %v2292 = vpop.xlane.xlu0 %2291
      %v2293 = vsel %vm1026, %v2154, 0.0
      %2294 = vadd.xlane.f32.xlu0 %v2293
      %v2295 = vpop.xlane.xlu0 %2294
      %v2296 = vsel %vm1026, %v2155, 0.0
      %2297 = vadd.xlane.f32.xlu0 %v2296
      %v2298 = vpop.xlane.xlu0 %2297
      %v2299 = vsel %vm1026, %v2156, 0.0
      %2300 = vadd.xlane.f32.xlu0 %v2299
      %v2301 = vpop.xlane.xlu0 %2300
      %v2302 = vsel %vm1026, %v2157, 0.0
      %2303 = vadd.xlane.f32.xlu0 %v2302
      %v2304 = vpop.xlane.xlu0 %2303
      %v2305 = vsel %vm1026, %v2158, 0.0
      %2306 = vadd.xlane.f32.xlu0 %v2305
      %v2307 = vpop.xlane.xlu0 %2306
      %v2308 = vsel %vm1026, %v2159, 0.0
      %2309 = vadd.xlane.f32.xlu0 %v2308
      %v2310 = vpop.xlane.xlu0 %2309
      %v2311 = vsel %vm1026, %v2160, 0.0
      %2312 = vadd.xlane.f32.xlu0 %v2311
      %v2313 = vpop.xlane.xlu0 %2312
      %v2314 = vadd.f32 %v2292, 1e-06
      %v2315 = vadd.f32 %v2295, 1e-06
      %v2316 = vadd.f32 %v2298, 1e-06
      %v2317 = vadd.f32 %v2301, 1e-06
      %v2318 = vadd.f32 %v2304, 1e-06
      %v2319 = vadd.f32 %v2307, 1e-06
      %v2320 = vadd.f32 %v2310, 1e-06
      %v2321 = vadd.f32 %v2313, 1e-06
      %v2322 = vrcp.pop %v2314
      %v2323 = vrcp.pop %v2315
      %v2324 = vrcp.pop %v2316
      %v2325 = vrcp.pop %v2317
      %v2326 = vrcp.pop %v2318
      %v2327 = vrcp.pop %v2319
      %v2328 = vrcp.pop %v2320
      %v2329 = vrcp.pop %v2321
      %v2330 = vmul.f32 %v2252, %v2322
      %v2331 = vmul.f32 %v2257, %v2323
      %v2332 = vmul.f32 %v2262, %v2324
      %v2333 = vmul.f32 %v2267, %v2325
      %v2334 = vmul.f32 %v2272, %v2326
      %v2335 = vmul.f32 %v2277, %v2327
      %v2336 = vmul.f32 %v2282, %v2328
      %v2337 = vmul.f32 %v2287, %v2329
      %v2338 = vmul.f32 %v2330, %v540
      %v2339 = vmul.f32 %v2331, %v540
      %v2340 = vmul.f32 %v2332, %v540
      %v2341 = vmul.f32 %v2333, %v540
      %v2342 = vmul.f32 %v2334, %v540
      %v2343 = vmul.f32 %v2335, %v540
      %v2344 = vmul.f32 %v2336, %v540
      %v2345 = vmul.f32 %v2337, %v540
      %v2346 = vadd.f32 %v1968, %v2338
      %v2347 = vadd.f32 %v1969, %v2339
      %v2348 = vadd.f32 %v1970, %v2340
      %v2349 = vadd.f32 %v1971, %v2341
      %v2350 = vadd.f32 %v1972, %v2342
      %v2351 = vadd.f32 %v1973, %v2343
      %v2352 = vadd.f32 %v1974, %v2344
      %v2353 = vadd.f32 %v1975, %v2345
      %v2354 = vpack.c.bf16 %v2347, %v2346
      %v2355 = vpack.c.bf16 %v2349, %v2348
      %v2356 = vpack.c.bf16 %v2351, %v2350
      %v2357 = vpack.c.bf16 %v2353, %v2352
      %s2358 = scalar_lea.vmem %s4, 48
      %v2359 = vld [vmem:[%s2358] sm:$0xf]
      %v2360 = vld [vmem:[%s2358 + $0x4] sm:$0xf]
      %v2361 = vld [vmem:[%s2358 + $0x8] sm:$0xf]
      %v2362 = vld [vmem:[%s2358 + $0xc] sm:$0xf]
      %v2363 = vlaneseq
      %v2364 = vshrl.u32 %v2363, 7
      %v2365 = vsub.s32 3, %v2364
      %v2366 = vrot.slane %v541, %v2365
      %v2371 = vunpack.c.l.b16 %v2359
      %v2372 = vunpack.c.l.b16 %v2360
      %v2373 = vunpack.c.l.b16 %v2361
      %v2374 = vunpack.c.l.b16 %v2362
      %v2375 = vpack.c.b16 %v2372, %v2371
      %v2376 = vpack.c.b16 %v2374, %v2373
      %v2380 = vsel %vm567, %v2354, 0
      %v2383 = vsel %vm567, %v2355, 0
      %v2386 = vsel %vm567, %v2356, 0
      %v2389 = vsel %vm567, %v2357, 0
      %2391 = vmatprep.subr.bf16.mxu0 0
      %2392 = vmatpush1.bf16.msra.mxu0 %v2375
      %2393 = vmatprep.subr.bf16.mxu0 0
      %2394 = vmatpush1.bf16.msra.mxu0 %v2376
      %2395 = vmatprep.subr.bf16.mxu0 0
      %2396 = vmatpush1.bf16.msra.mxu0 0
      %2397 = vmatprep.subr.bf16.mxu0 0
      %2398 = vmatpush1.bf16.msra.mxu0 0
      %2399 = vmatprep.subr.bf16.mxu0 0
      %2400 = vmatpush1.bf16.msra.mxu0 0
      %2401 = vmatprep.subr.bf16.mxu0 0
      %2402 = vmatpush1.bf16.msra.mxu0 0
      %2403 = vmatprep.subr.bf16.mxu0 0
      %2404 = vmatpush1.bf16.msra.mxu0 0
      %2405 = vmatprep.subr.bf16.mxu0 0
      %2406 = vmatpush1.bf16.msra.mxu0 0
      %2407 = vmatprep.subr.bf16.mxu0 0
      %2408 = vmatpush1.bf16.msra.mxu0 0
      %2409 = vmatprep.subr.bf16.mxu0 0
      %2410 = vmatpush1.bf16.msra.mxu0 0
      %2411 = vmatprep.subr.bf16.mxu0 0
      %2412 = vmatpush1.bf16.msra.mxu0 0
      %2413 = vmatprep.subr.bf16.mxu0 0
      %2414 = vmatpush1.bf16.msra.mxu0 0
      %2415 = vmatprep.subr.bf16.mxu0 0
      %2416 = vmatpush1.bf16.msra.mxu0 0
      %2417 = vmatprep.subr.bf16.mxu0 0
      %2418 = vmatpush1.bf16.msra.mxu0 0
      %2419 = vmatprep.subr.bf16.mxu0 0
      %2420 = vmatpush1.bf16.msra.mxu0 0
      %2421 = vmatprep.subr.bf16.mxu0 0
      %2422 = vmatpush1.bf16.msra.mxu0 0
      %2423 = vmatprep.mubr.bf16.mxu0 0
      %2424 = vmatmul.mubr.bf16.gmra.mrb[0].mxu0 %v2380
      %v2425 = vpop.f32.mrb[0].mxu0
      %v2426 = vadd.f32 %v2366, %v2425
      %v2427 = vpop.f32.mrb[0].mxu0
      %v2428 = vpop.f32.mrb[0].mxu0
      %v2429 = vadd.f32 %v2366, %v2428
      %v2430 = vpop.f32.mrb[0].mxu0
      %2431 = vmatprep.mubr.bf16.mxu0 0
      %2432 = vmatmul.mubr.bf16.gmra.mrb[0].mxu0 %v2383
      %v2433 = vpop.f32.mrb[0].mxu0
      %v2434 = vadd.f32 %v2366, %v2433
      %v2435 = vpop.f32.mrb[0].mxu0
      %v2436 = vpop.f32.mrb[0].mxu0
      %v2437 = vadd.f32 %v2366, %v2436
      %v2438 = vpop.f32.mrb[0].mxu0
      %2439 = vmatprep.mubr.bf16.mxu0 0
      %2440 = vmatmul.mubr.bf16.gmra.mrb[0].mxu0 %v2386
      %v2441 = vpop.f32.mrb[0].mxu0
      %v2442 = vadd.f32 %v2366, %v2441
      %v2443 = vpop.f32.mrb[0].mxu0
      %v2444 = vpop.f32.mrb[0].mxu0
      %v2445 = vadd.f32 %v2366, %v2444
      %v2446 = vpop.f32.mrb[0].mxu0
      %2447 = vmatprep.mubr.bf16.mxu0 0
      %2448 = vmatmul.mubr.bf16.gmra.mrb[0].mxu0 %v2389
      %v2449 = vpop.f32.mrb[0].mxu0
      %v2450 = vadd.f32 %v2366, %v2449
      %v2451 = vpop.f32.mrb[0].mxu0
      %v2452 = vpop.f32.mrb[0].mxu0
      %v2453 = vadd.f32 %v2366, %v2452
      %v2454 = vpop.f32.mrb[0].mxu0
      %2455 = vdwg.mxu0
      %v2456 = vadd.f32 %v489, %v2426
      %v2457 = vadd.f32 %v492, %v2429
      %v2458 = vadd.f32 %v497, %v2434
      %v2459 = vadd.f32 %v500, %v2437
      %v2460 = vadd.f32 %v505, %v2442
      %v2461 = vadd.f32 %v508, %v2445
      %v2462 = vadd.f32 %v513, %v2450
      %v2463 = vadd.f32 %v516, %v2453
      %v2464 = vsel %vm567, %v2456, 0.0
      %2465 = vadd.xlane.f32.xlu0 %v2464
      %v2466 = vpop.xlane.xlu0 %2465
      %v2467 = vsel %vm567, %v2457, 0.0
      %2468 = vadd.xlane.f32.xlu0 %v2467
      %v2469 = vpop.xlane.xlu0 %2468
      %v2470 = vsel %vm567, %v2458, 0.0
      %2471 = vadd.xlane.f32.xlu0 %v2470
      %v2472 = vpop.xlane.xlu0 %2471
      %v2473 = vsel %vm567, %v2459, 0.0
      %2474 = vadd.xlane.f32.xlu0 %v2473
      %v2475 = vpop.xlane.xlu0 %2474
      %v2476 = vsel %vm567, %v2460, 0.0
      %2477 = vadd.xlane.f32.xlu0 %v2476
      %v2478 = vpop.xlane.xlu0 %2477
      %v2479 = vsel %vm567, %v2461, 0.0
      %2480 = vadd.xlane.f32.xlu0 %v2479
      %v2481 = vpop.xlane.xlu0 %2480
      %v2482 = vsel %vm567, %v2462, 0.0
      %2483 = vadd.xlane.f32.xlu0 %v2482
      %v2484 = vpop.xlane.xlu0 %2483
      %v2485 = vsel %vm567, %v2463, 0.0
      %2486 = vadd.xlane.f32.xlu0 %v2485
      %v2487 = vpop.xlane.xlu0 %2486
      %v2488 = vrcp.pop 32.0
      %v2489 = vmul.f32 %v2466, %v2488
      %v2490 = vmul.f32 %v2469, %v2488
      %v2491 = vmul.f32 %v2472, %v2488
      %v2492 = vmul.f32 %v2475, %v2488
      %v2493 = vmul.f32 %v2478, %v2488
      %v2494 = vmul.f32 %v2481, %v2488
      %v2495 = vmul.f32 %v2484, %v2488
      %v2496 = vmul.f32 %v2487, %v2488
      %v2497 = vsub.f32 %v2456, %v2489
      %v2498 = vsub.f32 %v2457, %v2490
      %v2499 = vsub.f32 %v2458, %v2491
      %v2500 = vsub.f32 %v2459, %v2492
      %v2501 = vsub.f32 %v2460, %v2493
      %v2502 = vsub.f32 %v2461, %v2494
      %v2503 = vsub.f32 %v2462, %v2495
      %v2504 = vsub.f32 %v2463, %v2496
      %v2505 = vmul.f32 %v2497, %v2497
      %v2506 = vmul.f32 %v2498, %v2498
      %v2507 = vmul.f32 %v2499, %v2499
      %v2508 = vmul.f32 %v2500, %v2500
      %v2509 = vmul.f32 %v2501, %v2501
      %v2510 = vmul.f32 %v2502, %v2502
      %v2511 = vmul.f32 %v2503, %v2503
      %v2512 = vmul.f32 %v2504, %v2504
      %v2513 = vsel %vm567, %v2505, 0.0
      %2514 = vadd.xlane.f32.xlu0 %v2513
      %v2515 = vpop.xlane.xlu0 %2514
      %v2516 = vsel %vm567, %v2506, 0.0
      %2517 = vadd.xlane.f32.xlu0 %v2516
      %v2518 = vpop.xlane.xlu0 %2517
      %v2519 = vsel %vm567, %v2507, 0.0
      %2520 = vadd.xlane.f32.xlu0 %v2519
      %v2521 = vpop.xlane.xlu0 %2520
      %v2522 = vsel %vm567, %v2508, 0.0
      %2523 = vadd.xlane.f32.xlu0 %v2522
      %v2524 = vpop.xlane.xlu0 %2523
      %v2525 = vsel %vm567, %v2509, 0.0
      %2526 = vadd.xlane.f32.xlu0 %v2525
      %v2527 = vpop.xlane.xlu0 %2526
      %v2528 = vsel %vm567, %v2510, 0.0
      %2529 = vadd.xlane.f32.xlu0 %v2528
      %v2530 = vpop.xlane.xlu0 %2529
      %v2531 = vsel %vm567, %v2511, 0.0
      %2532 = vadd.xlane.f32.xlu0 %v2531
      %v2533 = vpop.xlane.xlu0 %2532
      %v2534 = vsel %vm567, %v2512, 0.0
      %2535 = vadd.xlane.f32.xlu0 %v2534
      %v2536 = vpop.xlane.xlu0 %2535
      %v2537 = vmul.f32 %v2515, %v2488
      %v2538 = vmul.f32 %v2518, %v2488
      %v2539 = vmul.f32 %v2521, %v2488
      %v2540 = vmul.f32 %v2524, %v2488
      %v2541 = vmul.f32 %v2527, %v2488
      %v2542 = vmul.f32 %v2530, %v2488
      %v2543 = vmul.f32 %v2533, %v2488
      %v2544 = vmul.f32 %v2536, %v2488
      %v2545 = vadd.f32 %v2537, 1e-05
      %v2546 = vadd.f32 %v2538, 1e-05
      %v2547 = vadd.f32 %v2539, 1e-05
      %v2548 = vadd.f32 %v2540, 1e-05
      %v2549 = vadd.f32 %v2541, 1e-05
      %v2550 = vadd.f32 %v2542, 1e-05
      %v2551 = vadd.f32 %v2543, 1e-05
      %v2552 = vadd.f32 %v2544, 1e-05
      %v2553 = vrsqrt.pop %v2545
      %v2554 = vrsqrt.pop %v2546
      %v2555 = vrsqrt.pop %v2547
      %v2556 = vrsqrt.pop %v2548
      %v2557 = vrsqrt.pop %v2549
      %v2558 = vrsqrt.pop %v2550
      %v2559 = vrsqrt.pop %v2551
      %v2560 = vrsqrt.pop %v2552
      %v2561 = vmul.f32 %v2497, %v2553
      %v2562 = vmul.f32 %v2498, %v2554
      %v2563 = vmul.f32 %v2499, %v2555
      %v2564 = vmul.f32 %v2500, %v2556
      %v2565 = vmul.f32 %v2501, %v2557
      %v2566 = vmul.f32 %v2502, %v2558
      %v2567 = vmul.f32 %v2503, %v2559
      %v2568 = vmul.f32 %v2504, %v2560
      %v2569 = vlaneseq
      %v2570 = vshrl.u32 %v2569, 7
      %v2571 = vsub.s32 6, %v2570
      %v2572 = vrot.slane %v541, %v2571
      %v2573 = vmul.f32 %v2561, %v2572
      %v2574 = vmul.f32 %v2562, %v2572
      %v2575 = vmul.f32 %v2563, %v2572
      %v2576 = vmul.f32 %v2564, %v2572
      %v2577 = vmul.f32 %v2565, %v2572
      %v2578 = vmul.f32 %v2566, %v2572
      %v2579 = vmul.f32 %v2567, %v2572
      %v2580 = vmul.f32 %v2568, %v2572
      %v2581 = vlaneseq
      %v2582 = vshrl.u32 %v2581, 7
      %v2583 = vsub.s32 7, %v2582
      %v2584 = vrot.slane %v541, %v2583
      %v2585 = vadd.f32 %v2573, %v2584
      %v2586 = vadd.f32 %v2574, %v2584
      %v2587 = vadd.f32 %v2575, %v2584
      %v2588 = vadd.f32 %v2576, %v2584
      %v2589 = vadd.f32 %v2577, %v2584
      %v2590 = vadd.f32 %v2578, %v2584
      %v2591 = vadd.f32 %v2579, %v2584
      %v2592 = vadd.f32 %v2580, %v2584
      %v2593 = vpack.c.bf16 %v2586, %v2585
      %v2594 = vpack.c.bf16 %v2588, %v2587
      %v2595 = vpack.c.bf16 %v2590, %v2589
      %v2596 = vpack.c.bf16 %v2592, %v2591
      %v2597 = vld [vmem:[%s5] sm:$0xf]
      %v2598 = vld [vmem:[%s5 + $0x4] sm:$0xf]
      %v2599 = vld [vmem:[%s5 + $0x8] sm:$0xf]
      %v2600 = vld [vmem:[%s5 + $0xc] sm:$0xf]
      %v2601 = vlaneseq
      %v2602 = vshrl.u32 %v2601, 7
      %v2603 = vsub.s32 4, %v2602
      %v2604 = vrot.slane %v541, %v2603
      %v2609 = vunpack.c.l.b16 %v2597
      %v2610 = vunpack.c.l.b16 %v2598
      %v2611 = vunpack.c.l.b16 %v2599
      %v2612 = vunpack.c.l.b16 %v2600
      %v2613 = vpack.c.b16 %v2610, %v2609
      %v2614 = vpack.c.b16 %v2612, %v2611
      %v2618 = vsel %vm567, %v2593, 0
      %v2621 = vsel %vm567, %v2594, 0
      %v2624 = vsel %vm567, %v2595, 0
      %v2627 = vsel %vm567, %v2596, 0
      %2629 = vmatprep.subr.bf16.mxu0 0
      %2630 = vmatpush1.bf16.msra.mxu0 %v2613
      %2631 = vmatprep.subr.bf16.mxu0 0
      %2632 = vmatpush1.bf16.msra.mxu0 %v2614
      %2633 = vmatprep.subr.bf16.mxu0 0
      %2634 = vmatpush1.bf16.msra.mxu0 0
      %2635 = vmatprep.subr.bf16.mxu0 0
      %2636 = vmatpush1.bf16.msra.mxu0 0
      %2637 = vmatprep.subr.bf16.mxu0 0
      %2638 = vmatpush1.bf16.msra.mxu0 0
      %2639 = vmatprep.subr.bf16.mxu0 0
      %2640 = vmatpush1.bf16.msra.mxu0 0
      %2641 = vmatprep.subr.bf16.mxu0 0
      %2642 = vmatpush1.bf16.msra.mxu0 0
      %2643 = vmatprep.subr.bf16.mxu0 0
      %2644 = vmatpush1.bf16.msra.mxu0 0
      %2645 = vmatprep.subr.bf16.mxu0 0
      %2646 = vmatpush1.bf16.msra.mxu0 0
      %2647 = vmatprep.subr.bf16.mxu0 0
      %2648 = vmatpush1.bf16.msra.mxu0 0
      %2649 = vmatprep.subr.bf16.mxu0 0
      %2650 = vmatpush1.bf16.msra.mxu0 0
      %2651 = vmatprep.subr.bf16.mxu0 0
      %2652 = vmatpush1.bf16.msra.mxu0 0
      %2653 = vmatprep.subr.bf16.mxu0 0
      %2654 = vmatpush1.bf16.msra.mxu0 0
      %2655 = vmatprep.subr.bf16.mxu0 0
      %2656 = vmatpush1.bf16.msra.mxu0 0
      %2657 = vmatprep.subr.bf16.mxu0 0
      %2658 = vmatpush1.bf16.msra.mxu0 0
      %2659 = vmatprep.subr.bf16.mxu0 0
      %2660 = vmatpush1.bf16.msra.mxu0 0
      %2661 = vmatprep.mubr.bf16.mxu0 0
      %2662 = vmatmul.mubr.bf16.gmra.mrb[0].mxu0 %v2618
      %v2663 = vpop.f32.mrb[0].mxu0
      %v2664 = vadd.f32 %v2604, %v2663
      %v2665 = vpop.f32.mrb[0].mxu0
      %v2666 = vpop.f32.mrb[0].mxu0
      %v2667 = vadd.f32 %v2604, %v2666
      %v2668 = vpop.f32.mrb[0].mxu0
      %2669 = vmatprep.mubr.bf16.mxu0 0
      %2670 = vmatmul.mubr.bf16.gmra.mrb[0].mxu0 %v2621
      %v2671 = vpop.f32.mrb[0].mxu0
      %v2672 = vadd.f32 %v2604, %v2671
      %v2673 = vpop.f32.mrb[0].mxu0
      %v2674 = vpop.f32.mrb[0].mxu0
      %v2675 = vadd.f32 %v2604, %v2674
      %v2676 = vpop.f32.mrb[0].mxu0
      %2677 = vmatprep.mubr.bf16.mxu0 0
      %2678 = vmatmul.mubr.bf16.gmra.mrb[0].mxu0 %v2624
      %v2679 = vpop.f32.mrb[0].mxu0
      %v2680 = vadd.f32 %v2604, %v2679
      %v2681 = vpop.f32.mrb[0].mxu0
      %v2682 = vpop.f32.mrb[0].mxu0
      %v2683 = vadd.f32 %v2604, %v2682
      %v2684 = vpop.f32.mrb[0].mxu0
      %2685 = vmatprep.mubr.bf16.mxu0 0
      %2686 = vmatmul.mubr.bf16.gmra.mrb[0].mxu0 %v2627
      %v2687 = vpop.f32.mrb[0].mxu0
      %v2688 = vadd.f32 %v2604, %v2687
      %v2689 = vpop.f32.mrb[0].mxu0
      %v2690 = vpop.f32.mrb[0].mxu0
      %v2691 = vadd.f32 %v2604, %v2690
      %v2692 = vpop.f32.mrb[0].mxu0
      %2693 = vdwg.mxu0
      %v2694 = vmax.f32 %v2664, 0.0
      %v2695 = vmax.f32 %v2667, 0.0
      %v2696 = vmax.f32 %v2672, 0.0
      %v2697 = vmax.f32 %v2675, 0.0
      %v2698 = vmax.f32 %v2680, 0.0
      %v2699 = vmax.f32 %v2683, 0.0
      %v2700 = vmax.f32 %v2688, 0.0
      %v2701 = vmax.f32 %v2691, 0.0
      %v2702 = vpack.c.bf16 %v2695, %v2694
      %v2703 = vpack.c.bf16 %v2697, %v2696
      %v2704 = vpack.c.bf16 %v2699, %v2698
      %v2705 = vpack.c.bf16 %v2701, %v2700
      %v2706 = vld [vmem:[%s6] sm:$0xf]
      %v2707 = vld [vmem:[%s6 + $0x4] sm:$0xf]
      %v2708 = vld [vmem:[%s6 + $0x8] sm:$0xf]
      %v2709 = vld [vmem:[%s6 + $0xc] sm:$0xf]
      %v2710 = vld [vmem:[%s6 + $0x10] sm:$0xf]
      %v2711 = vld [vmem:[%s6 + $0x14] sm:$0xf]
      %v2712 = vld [vmem:[%s6 + $0x18] sm:$0xf]
      %v2713 = vld [vmem:[%s6 + $0x1c] sm:$0xf]
      %v2714 = vlaneseq
      %v2715 = vshrl.u32 %v2714, 7
      %v2716 = vsub.s32 5, %v2715
      %v2717 = vrot.slane %v541, %v2716
      %v2726 = vunpack.c.l.b16 %v2706
      %v2727 = vunpack.c.l.b16 %v2707
      %v2728 = vunpack.c.l.b16 %v2708
      %v2729 = vunpack.c.l.b16 %v2709
      %v2730 = vunpack.c.l.b16 %v2710
      %v2731 = vunpack.c.l.b16 %v2711
      %v2732 = vunpack.c.l.b16 %v2712
      %v2733 = vunpack.c.l.b16 %v2713
      %v2734 = vpack.c.b16 %v2727, %v2726
      %v2735 = vpack.c.b16 %v2729, %v2728
      %v2736 = vpack.c.b16 %v2731, %v2730
      %v2737 = vpack.c.b16 %v2733, %v2732
      %v2743 = vsel %vm1026, %v2702, 0
      %v2746 = vsel %vm1026, %v2703, 0
      %v2749 = vsel %vm1026, %v2704, 0
      %v2752 = vsel %vm1026, %v2705, 0
      %2754 = vmatprep.subr.bf16.mxu0 0
      %2755 = vmatpush1.bf16.msra.mxu0 %v2734
      %2756 = vmatprep.subr.bf16.mxu0 0
      %2757 = vmatpush1.bf16.msra.mxu0 %v2735
      %2758 = vmatprep.subr.bf16.mxu0 0
      %2759 = vmatpush1.bf16.msra.mxu0 %v2736
      %2760 = vmatprep.subr.bf16.mxu0 0
      %2761 = vmatpush1.bf16.msra.mxu0 %v2737
      %2762 = vmatprep.subr.bf16.mxu0 0
      %2763 = vmatpush1.bf16.msra.mxu0 0
      %2764 = vmatprep.subr.bf16.mxu0 0
      %2765 = vmatpush1.bf16.msra.mxu0 0
      %2766 = vmatprep.subr.bf16.mxu0 0
      %2767 = vmatpush1.bf16.msra.mxu0 0
      %2768 = vmatprep.subr.bf16.mxu0 0
      %2769 = vmatpush1.bf16.msra.mxu0 0
      %2770 = vmatprep.subr.bf16.mxu0 0
      %2771 = vmatpush1.bf16.msra.mxu0 0
      %2772 = vmatprep.subr.bf16.mxu0 0
      %2773 = vmatpush1.bf16.msra.mxu0 0
      %2774 = vmatprep.subr.bf16.mxu0 0
      %2775 = vmatpush1.bf16.msra.mxu0 0
      %2776 = vmatprep.subr.bf16.mxu0 0
      %2777 = vmatpush1.bf16.msra.mxu0 0
      %2778 = vmatprep.subr.bf16.mxu0 0
      %2779 = vmatpush1.bf16.msra.mxu0 0
      %2780 = vmatprep.subr.bf16.mxu0 0
      %2781 = vmatpush1.bf16.msra.mxu0 0
      %2782 = vmatprep.subr.bf16.mxu0 0
      %2783 = vmatpush1.bf16.msra.mxu0 0
      %2784 = vmatprep.subr.bf16.mxu0 0
      %2785 = vmatpush1.bf16.msra.mxu0 0
      %2786 = vmatprep.mubr.bf16.mxu0 0
      %2787 = vmatmul.mubr.bf16.gmra.mrb[0].mxu0 %v2743
      %v2788 = vpop.f32.mrb[0].mxu0
      %v2789 = vadd.f32 %v2717, %v2788
      %v2790 = vpop.f32.mrb[0].mxu0
      %v2791 = vpop.f32.mrb[0].mxu0
      %v2792 = vadd.f32 %v2717, %v2791
      %v2793 = vpop.f32.mrb[0].mxu0
      %2794 = vmatprep.mubr.bf16.mxu0 0
      %2795 = vmatmul.mubr.bf16.gmra.mrb[0].mxu0 %v2746
      %v2796 = vpop.f32.mrb[0].mxu0
      %v2797 = vadd.f32 %v2717, %v2796
      %v2798 = vpop.f32.mrb[0].mxu0
      %v2799 = vpop.f32.mrb[0].mxu0
      %v2800 = vadd.f32 %v2717, %v2799
      %v2801 = vpop.f32.mrb[0].mxu0
      %2802 = vmatprep.mubr.bf16.mxu0 0
      %2803 = vmatmul.mubr.bf16.gmra.mrb[0].mxu0 %v2749
      %v2804 = vpop.f32.mrb[0].mxu0
      %v2805 = vadd.f32 %v2717, %v2804
      %v2806 = vpop.f32.mrb[0].mxu0
      %v2807 = vpop.f32.mrb[0].mxu0
      %v2808 = vadd.f32 %v2717, %v2807
      %v2809 = vpop.f32.mrb[0].mxu0
      %2810 = vmatprep.mubr.bf16.mxu0 0
      %2811 = vmatmul.mubr.bf16.gmra.mrb[0].mxu0 %v2752
      %v2812 = vpop.f32.mrb[0].mxu0
      %v2813 = vadd.f32 %v2717, %v2812
      %v2814 = vpop.f32.mrb[0].mxu0
      %v2815 = vpop.f32.mrb[0].mxu0
      %v2816 = vadd.f32 %v2717, %v2815
      %v2817 = vpop.f32.mrb[0].mxu0
      %2818 = vdwg.mxu0
      %v2819 = vadd.f32 %v2585, %v2789
      %v2820 = vadd.f32 %v2586, %v2792
      %v2821 = vadd.f32 %v2587, %v2797
      %v2822 = vadd.f32 %v2588, %v2800
      %v2823 = vadd.f32 %v2589, %v2805
      %v2824 = vadd.f32 %v2590, %v2808
      %v2825 = vadd.f32 %v2591, %v2813
      %v2826 = vadd.f32 %v2592, %v2816
      %v2827 = vsel %vm567, %v2819, 0.0
      %2828 = vadd.xlane.f32.xlu0 %v2827
      %v2829 = vpop.xlane.xlu0 %2828
      %v2830 = vsel %vm567, %v2820, 0.0
      %2831 = vadd.xlane.f32.xlu0 %v2830
      %v2832 = vpop.xlane.xlu0 %2831
      %v2833 = vsel %vm567, %v2821, 0.0
      %2834 = vadd.xlane.f32.xlu0 %v2833
      %v2835 = vpop.xlane.xlu0 %2834
      %v2836 = vsel %vm567, %v2822, 0.0
      %2837 = vadd.xlane.f32.xlu0 %v2836
      %v2838 = vpop.xlane.xlu0 %2837
      %v2839 = vsel %vm567, %v2823, 0.0
      %2840 = vadd.xlane.f32.xlu0 %v2839
      %v2841 = vpop.xlane.xlu0 %2840
      %v2842 = vsel %vm567, %v2824, 0.0
      %2843 = vadd.xlane.f32.xlu0 %v2842
      %v2844 = vpop.xlane.xlu0 %2843
      %v2845 = vsel %vm567, %v2825, 0.0
      %2846 = vadd.xlane.f32.xlu0 %v2845
      %v2847 = vpop.xlane.xlu0 %2846
      %v2848 = vsel %vm567, %v2826, 0.0
      %2849 = vadd.xlane.f32.xlu0 %v2848
      %v2850 = vpop.xlane.xlu0 %2849
      %v2851 = vmul.f32 %v2829, %v2488
      %v2852 = vmul.f32 %v2832, %v2488
      %v2853 = vmul.f32 %v2835, %v2488
      %v2854 = vmul.f32 %v2838, %v2488
      %v2855 = vmul.f32 %v2841, %v2488
      %v2856 = vmul.f32 %v2844, %v2488
      %v2857 = vmul.f32 %v2847, %v2488
      %v2858 = vmul.f32 %v2850, %v2488
      %v2859 = vsub.f32 %v2819, %v2851
      %v2860 = vsub.f32 %v2820, %v2852
      %v2861 = vsub.f32 %v2821, %v2853
      %v2862 = vsub.f32 %v2822, %v2854
      %v2863 = vsub.f32 %v2823, %v2855
      %v2864 = vsub.f32 %v2824, %v2856
      %v2865 = vsub.f32 %v2825, %v2857
      %v2866 = vsub.f32 %v2826, %v2858
      %v2867 = vmul.f32 %v2859, %v2859
      %v2868 = vmul.f32 %v2860, %v2860
      %v2869 = vmul.f32 %v2861, %v2861
      %v2870 = vmul.f32 %v2862, %v2862
      %v2871 = vmul.f32 %v2863, %v2863
      %v2872 = vmul.f32 %v2864, %v2864
      %v2873 = vmul.f32 %v2865, %v2865
      %v2874 = vmul.f32 %v2866, %v2866
      %v2875 = vsel %vm567, %v2867, 0.0
      %2876 = vadd.xlane.f32.xlu0 %v2875
      %v2877 = vpop.xlane.xlu0 %2876
      %v2878 = vsel %vm567, %v2868, 0.0
      %2879 = vadd.xlane.f32.xlu0 %v2878
      %v2880 = vpop.xlane.xlu0 %2879
      %v2881 = vsel %vm567, %v2869, 0.0
      %2882 = vadd.xlane.f32.xlu0 %v2881
      %v2883 = vpop.xlane.xlu0 %2882
      %v2884 = vsel %vm567, %v2870, 0.0
      %2885 = vadd.xlane.f32.xlu0 %v2884
      %v2886 = vpop.xlane.xlu0 %2885
      %v2887 = vsel %vm567, %v2871, 0.0
      %2888 = vadd.xlane.f32.xlu0 %v2887
      %v2889 = vpop.xlane.xlu0 %2888
      %v2890 = vsel %vm567, %v2872, 0.0
      %2891 = vadd.xlane.f32.xlu0 %v2890
      %v2892 = vpop.xlane.xlu0 %2891
      %v2893 = vsel %vm567, %v2873, 0.0
      %2894 = vadd.xlane.f32.xlu0 %v2893
      %v2895 = vpop.xlane.xlu0 %2894
      %v2896 = vsel %vm567, %v2874, 0.0
      %2897 = vadd.xlane.f32.xlu0 %v2896
      %v2898 = vpop.xlane.xlu0 %2897
      %v2899 = vmul.f32 %v2877, %v2488
      %v2900 = vmul.f32 %v2880, %v2488
      %v2901 = vmul.f32 %v2883, %v2488
      %v2902 = vmul.f32 %v2886, %v2488
      %v2903 = vmul.f32 %v2889, %v2488
      %v2904 = vmul.f32 %v2892, %v2488
      %v2905 = vmul.f32 %v2895, %v2488
      %v2906 = vmul.f32 %v2898, %v2488
      %v2907 = vadd.f32 %v2899, 1e-05
      %v2908 = vadd.f32 %v2900, 1e-05
      %v2909 = vadd.f32 %v2901, 1e-05
      %v2910 = vadd.f32 %v2902, 1e-05
      %v2911 = vadd.f32 %v2903, 1e-05
      %v2912 = vadd.f32 %v2904, 1e-05
      %v2913 = vadd.f32 %v2905, 1e-05
      %v2914 = vadd.f32 %v2906, 1e-05
      %v2915 = vrsqrt.pop %v2907
      %v2916 = vrsqrt.pop %v2908
      %v2917 = vrsqrt.pop %v2909
      %v2918 = vrsqrt.pop %v2910
      %v2919 = vrsqrt.pop %v2911
      %v2920 = vrsqrt.pop %v2912
      %v2921 = vrsqrt.pop %v2913
      %v2922 = vrsqrt.pop %v2914
      %v2923 = vmul.f32 %v2859, %v2915
      %v2924 = vmul.f32 %v2860, %v2916
      %v2925 = vmul.f32 %v2861, %v2917
      %v2926 = vmul.f32 %v2862, %v2918
      %v2927 = vmul.f32 %v2863, %v2919
      %v2928 = vmul.f32 %v2864, %v2920
      %v2929 = vmul.f32 %v2865, %v2921
      %v2930 = vmul.f32 %v2866, %v2922
      %v2931 = vlaneseq
      %v2932 = vshrl.u32 %v2931, 7
      %v2933 = vsub.s32 0, %v2932
      %v2934 = vrot.slane %v542, %v2933
      %v2935 = vmul.f32 %v2923, %v2934
      %v2936 = vmul.f32 %v2924, %v2934
      %v2937 = vmul.f32 %v2925, %v2934
      %v2938 = vmul.f32 %v2926, %v2934
      %v2939 = vmul.f32 %v2927, %v2934
      %v2940 = vmul.f32 %v2928, %v2934
      %v2941 = vmul.f32 %v2929, %v2934
      %v2942 = vmul.f32 %v2930, %v2934
      %v2943 = vlaneseq
      %v2944 = vshrl.u32 %v2943, 7
      %v2945 = vsub.s32 1, %v2944
      %v2946 = vrot.slane %v542, %v2945
      %v2947 = vadd.f32 %v2935, %v2946
      %v2948 = vadd.f32 %v2936, %v2946
      %v2949 = vadd.f32 %v2937, %v2946
      %v2950 = vadd.f32 %v2938, %v2946
      %v2951 = vadd.f32 %v2939, %v2946
      %v2952 = vadd.f32 %v2940, %v2946
      %v2953 = vadd.f32 %v2941, %v2946
      %v2954 = vadd.f32 %v2942, %v2946
      %s2955 = scalar_lea.vmem %s7, 16
      %v2956 = vld [vmem:[%s2955] sm:$0xff]
      %v2957 = vld [vmem:[%s2955 + $0x8] sm:$0x3]
      %v2958 = vpack.c.bf16 %v2948, %v2947
      %v2959 = vpack.c.bf16 %v2950, %v2949
      %v2960 = vpack.c.bf16 %v2952, %v2951
      %v2961 = vpack.c.bf16 %v2954, %v2953
      %s2962 = scalar_lea.vmem %s4, 64
      %v2963 = vld [vmem:[%s2962] sm:$0xf]
      %v2964 = vld [vmem:[%s2962 + $0x4] sm:$0xf]
      %v2965 = vld [vmem:[%s2962 + $0x8] sm:$0xf]
      %v2966 = vld [vmem:[%s2962 + $0xc] sm:$0xf]
      %v2967 = vlaneseq
      %v2968 = vshrl.u32 %v2967, 7
      %v2969 = vsub.s32 0, %v2968
      %v2970 = vrot.slane %v2956, %v2969
      %v2975 = vunpack.c.l.b16 %v2963
      %v2976 = vunpack.c.l.b16 %v2964
      %v2977 = vunpack.c.l.b16 %v2965
      %v2978 = vunpack.c.l.b16 %v2966
      %v2979 = vpack.c.b16 %v2976, %v2975
      %v2980 = vpack.c.b16 %v2978, %v2977
      %v2984 = vsel %vm567, %v2958, 0
      %v2987 = vsel %vm567, %v2959, 0
      %v2990 = vsel %vm567, %v2960, 0
      %v2993 = vsel %vm567, %v2961, 0
      %2995 = vmatprep.subr.bf16.mxu0 0
      %2996 = vmatpush1.bf16.msra.mxu0 %v2979
      %2997 = vmatprep.subr.bf16.mxu0 0
      %2998 = vmatpush1.bf16.msra.mxu0 %v2980
      %2999 = vmatprep.subr.bf16.mxu0 0
      %3000 = vmatpush1.bf16.msra.mxu0 0
      %3001 = vmatprep.subr.bf16.mxu0 0
      %3002 = vmatpush1.bf16.msra.mxu0 0
      %3003 = vmatprep.subr.bf16.mxu0 0
      %3004 = vmatpush1.bf16.msra.mxu0 0
      %3005 = vmatprep.subr.bf16.mxu0 0
      %3006 = vmatpush1.bf16.msra.mxu0 0
      %3007 = vmatprep.subr.bf16.mxu0 0
      %3008 = vmatpush1.bf16.msra.mxu0 0
      %3009 = vmatprep.subr.bf16.mxu0 0
      %3010 = vmatpush1.bf16.msra.mxu0 0
      %3011 = vmatprep.subr.bf16.mxu0 0
      %3012 = vmatpush1.bf16.msra.mxu0 0
      %3013 = vmatprep.subr.bf16.mxu0 0
      %3014 = vmatpush1.bf16.msra.mxu0 0
      %3015 = vmatprep.subr.bf16.mxu0 0
      %3016 = vmatpush1.bf16.msra.mxu0 0
      %3017 = vmatprep.subr.bf16.mxu0 0
      %3018 = vmatpush1.bf16.msra.mxu0 0
      %3019 = vmatprep.subr.bf16.mxu0 0
      %3020 = vmatpush1.bf16.msra.mxu0 0
      %3021 = vmatprep.subr.bf16.mxu0 0
      %3022 = vmatpush1.bf16.msra.mxu0 0
      %3023 = vmatprep.subr.bf16.mxu0 0
      %3024 = vmatpush1.bf16.msra.mxu0 0
      %3025 = vmatprep.subr.bf16.mxu0 0
      %3026 = vmatpush1.bf16.msra.mxu0 0
      %3027 = vmatprep.mubr.bf16.mxu0 0
      %3028 = vmatmul.mubr.bf16.gmra.mrb[0].mxu0 %v2984
      %v3029 = vpop.f32.mrb[0].mxu0
      %v3030 = vadd.f32 %v2970, %v3029
      %v3031 = vpop.f32.mrb[0].mxu0
      %v3032 = vpop.f32.mrb[0].mxu0
      %v3033 = vadd.f32 %v2970, %v3032
      %v3034 = vpop.f32.mrb[0].mxu0
      %3035 = vmatprep.mubr.bf16.mxu0 0
      %3036 = vmatmul.mubr.bf16.gmra.mrb[0].mxu0 %v2987
      %v3037 = vpop.f32.mrb[0].mxu0
      %v3038 = vadd.f32 %v2970, %v3037
      %v3039 = vpop.f32.mrb[0].mxu0
      %v3040 = vpop.f32.mrb[0].mxu0
      %v3041 = vadd.f32 %v2970, %v3040
      %v3042 = vpop.f32.mrb[0].mxu0
      %3043 = vmatprep.mubr.bf16.mxu0 0
      %3044 = vmatmul.mubr.bf16.gmra.mrb[0].mxu0 %v2990
      %v3045 = vpop.f32.mrb[0].mxu0
      %v3046 = vadd.f32 %v2970, %v3045
      %v3047 = vpop.f32.mrb[0].mxu0
      %v3048 = vpop.f32.mrb[0].mxu0
      %v3049 = vadd.f32 %v2970, %v3048
      %v3050 = vpop.f32.mrb[0].mxu0
      %3051 = vmatprep.mubr.bf16.mxu0 0
      %3052 = vmatmul.mubr.bf16.gmra.mrb[0].mxu0 %v2993
      %v3053 = vpop.f32.mrb[0].mxu0
      %v3054 = vadd.f32 %v2970, %v3053
      %v3055 = vpop.f32.mrb[0].mxu0
      %v3056 = vpop.f32.mrb[0].mxu0
      %v3057 = vadd.f32 %v2970, %v3056
      %v3058 = vpop.f32.mrb[0].mxu0
      %3059 = vdwg.mxu0
      %s3060 = scalar_lea.vmem %s4, 80
      %v3061 = vld [vmem:[%s3060] sm:$0xf]
      %v3062 = vld [vmem:[%s3060 + $0x4] sm:$0xf]
      %v3063 = vld [vmem:[%s3060 + $0x8] sm:$0xf]
      %v3064 = vld [vmem:[%s3060 + $0xc] sm:$0xf]
      %v3065 = vlaneseq
      %v3066 = vshrl.u32 %v3065, 7
      %v3067 = vsub.s32 1, %v3066
      %v3068 = vrot.slane %v2956, %v3067
      %v3073 = vunpack.c.l.b16 %v3061
      %v3074 = vunpack.c.l.b16 %v3062
      %v3075 = vunpack.c.l.b16 %v3063
      %v3076 = vunpack.c.l.b16 %v3064
      %v3077 = vpack.c.b16 %v3074, %v3073
      %v3078 = vpack.c.b16 %v3076, %v3075
      %3081 = vmatprep.subr.bf16.mxu0 0
      %3082 = vmatpush1.bf16.msra.mxu0 %v3077
      %3083 = vmatprep.subr.bf16.mxu0 0
      %3084 = vmatpush1.bf16.msra.mxu0 %v3078
      %3085 = vmatprep.subr.bf16.mxu0 0
      %3086 = vmatpush1.bf16.msra.mxu0 0
      %3087 = vmatprep.subr.bf16.mxu0 0
      %3088 = vmatpush1.bf16.msra.mxu0 0
      %3089 = vmatprep.subr.bf16.mxu0 0
      %3090 = vmatpush1.bf16.msra.mxu0 0
      %3091 = vmatprep.subr.bf16.mxu0 0
      %3092 = vmatpush1.bf16.msra.mxu0 0
      %3093 = vmatprep.subr.bf16.mxu0 0
      %3094 = vmatpush1.bf16.msra.mxu0 0
      %3095 = vmatprep.subr.bf16.mxu0 0
      %3096 = vmatpush1.bf16.msra.mxu0 0
      %3097 = vmatprep.subr.bf16.mxu0 0
      %3098 = vmatpush1.bf16.msra.mxu0 0
      %3099 = vmatprep.subr.bf16.mxu0 0
      %3100 = vmatpush1.bf16.msra.mxu0 0
      %3101 = vmatprep.subr.bf16.mxu0 0
      %3102 = vmatpush1.bf16.msra.mxu0 0
      %3103 = vmatprep.subr.bf16.mxu0 0
      %3104 = vmatpush1.bf16.msra.mxu0 0
      %3105 = vmatprep.subr.bf16.mxu0 0
      %3106 = vmatpush1.bf16.msra.mxu0 0
      %3107 = vmatprep.subr.bf16.mxu0 0
      %3108 = vmatpush1.bf16.msra.mxu0 0
      %3109 = vmatprep.subr.bf16.mxu0 0
      %3110 = vmatpush1.bf16.msra.mxu0 0
      %3111 = vmatprep.subr.bf16.mxu0 0
      %3112 = vmatpush1.bf16.msra.mxu0 0
      %3113 = vmatprep.mubr.bf16.mxu0 0
      %3114 = vmatmul.mubr.bf16.gmra.mrb[0].mxu0 %v2984
      %v3115 = vpop.f32.mrb[0].mxu0
      %v3116 = vadd.f32 %v3068, %v3115
      %v3117 = vpop.f32.mrb[0].mxu0
      %v3118 = vpop.f32.mrb[0].mxu0
      %v3119 = vadd.f32 %v3068, %v3118
      %v3120 = vpop.f32.mrb[0].mxu0
      %3121 = vmatprep.mubr.bf16.mxu0 0
      %3122 = vmatmul.mubr.bf16.gmra.mrb[0].mxu0 %v2987
      %v3123 = vpop.f32.mrb[0].mxu0
      %v3124 = vadd.f32 %v3068, %v3123
      %v3125 = vpop.f32.mrb[0].mxu0
      %v3126 = vpop.f32.mrb[0].mxu0
      %v3127 = vadd.f32 %v3068, %v3126
      %v3128 = vpop.f32.mrb[0].mxu0
      %3129 = vmatprep.mubr.bf16.mxu0 0
      %3130 = vmatmul.mubr.bf16.gmra.mrb[0].mxu0 %v2990
      %v3131 = vpop.f32.mrb[0].mxu0
      %v3132 = vadd.f32 %v3068, %v3131
      %v3133 = vpop.f32.mrb[0].mxu0
      %v3134 = vpop.f32.mrb[0].mxu0
      %v3135 = vadd.f32 %v3068, %v3134
      %v3136 = vpop.f32.mrb[0].mxu0
      %3137 = vmatprep.mubr.bf16.mxu0 0
      %3138 = vmatmul.mubr.bf16.gmra.mrb[0].mxu0 %v2993
      %v3139 = vpop.f32.mrb[0].mxu0
      %v3140 = vadd.f32 %v3068, %v3139
      %v3141 = vpop.f32.mrb[0].mxu0
      %v3142 = vpop.f32.mrb[0].mxu0
      %v3143 = vadd.f32 %v3068, %v3142
      %v3144 = vpop.f32.mrb[0].mxu0
      %3145 = vdwg.mxu0
      %s3146 = scalar_lea.vmem %s4, 96
      %v3147 = vld [vmem:[%s3146] sm:$0xf]
      %v3148 = vld [vmem:[%s3146 + $0x4] sm:$0xf]
      %v3149 = vld [vmem:[%s3146 + $0x8] sm:$0xf]
      %v3150 = vld [vmem:[%s3146 + $0xc] sm:$0xf]
      %v3151 = vlaneseq
      %v3152 = vshrl.u32 %v3151, 7
      %v3153 = vsub.s32 2, %v3152
      %v3154 = vrot.slane %v2956, %v3153
      %v3159 = vunpack.c.l.b16 %v3147
      %v3160 = vunpack.c.l.b16 %v3148
      %v3161 = vunpack.c.l.b16 %v3149
      %v3162 = vunpack.c.l.b16 %v3150
      %v3163 = vpack.c.b16 %v3160, %v3159
      %v3164 = vpack.c.b16 %v3162, %v3161
      %3167 = vmatprep.subr.bf16.mxu0 0
      %3168 = vmatpush1.bf16.msra.mxu0 %v3163
      %3169 = vmatprep.subr.bf16.mxu0 0
      %3170 = vmatpush1.bf16.msra.mxu0 %v3164
      %3171 = vmatprep.subr.bf16.mxu0 0
      %3172 = vmatpush1.bf16.msra.mxu0 0
      %3173 = vmatprep.subr.bf16.mxu0 0
      %3174 = vmatpush1.bf16.msra.mxu0 0
      %3175 = vmatprep.subr.bf16.mxu0 0
      %3176 = vmatpush1.bf16.msra.mxu0 0
      %3177 = vmatprep.subr.bf16.mxu0 0
      %3178 = vmatpush1.bf16.msra.mxu0 0
      %3179 = vmatprep.subr.bf16.mxu0 0
      %3180 = vmatpush1.bf16.msra.mxu0 0
      %3181 = vmatprep.subr.bf16.mxu0 0
      %3182 = vmatpush1.bf16.msra.mxu0 0
      %3183 = vmatprep.subr.bf16.mxu0 0
      %3184 = vmatpush1.bf16.msra.mxu0 0
      %3185 = vmatprep.subr.bf16.mxu0 0
      %3186 = vmatpush1.bf16.msra.mxu0 0
      %3187 = vmatprep.subr.bf16.mxu0 0
      %3188 = vmatpush1.bf16.msra.mxu0 0
      %3189 = vmatprep.subr.bf16.mxu0 0
      %3190 = vmatpush1.bf16.msra.mxu0 0
      %3191 = vmatprep.subr.bf16.mxu0 0
      %3192 = vmatpush1.bf16.msra.mxu0 0
      %3193 = vmatprep.subr.bf16.mxu0 0
      %3194 = vmatpush1.bf16.msra.mxu0 0
      %3195 = vmatprep.subr.bf16.mxu0 0
      %3196 = vmatpush1.bf16.msra.mxu0 0
      %3197 = vmatprep.subr.bf16.mxu0 0
      %3198 = vmatpush1.bf16.msra.mxu0 0
      %3199 = vmatprep.mubr.bf16.mxu0 0
      %3200 = vmatmul.mubr.bf16.gmra.mrb[0].mxu0 %v2984
      %v3201 = vpop.f32.mrb[0].mxu0
      %v3202 = vadd.f32 %v3154, %v3201
      %v3203 = vpop.f32.mrb[0].mxu0
      %v3204 = vpop.f32.mrb[0].mxu0
      %v3205 = vadd.f32 %v3154, %v3204
      %v3206 = vpop.f32.mrb[0].mxu0
      %3207 = vmatprep.mubr.bf16.mxu0 0
      %3208 = vmatmul.mubr.bf16.gmra.mrb[0].mxu0 %v2987
      %v3209 = vpop.f32.mrb[0].mxu0
      %v3210 = vadd.f32 %v3154, %v3209
      %v3211 = vpop.f32.mrb[0].mxu0
      %v3212 = vpop.f32.mrb[0].mxu0
      %v3213 = vadd.f32 %v3154, %v3212
      %v3214 = vpop.f32.mrb[0].mxu0
      %3215 = vmatprep.mubr.bf16.mxu0 0
      %3216 = vmatmul.mubr.bf16.gmra.mrb[0].mxu0 %v2990
      %v3217 = vpop.f32.mrb[0].mxu0
      %v3218 = vadd.f32 %v3154, %v3217
      %v3219 = vpop.f32.mrb[0].mxu0
      %v3220 = vpop.f32.mrb[0].mxu0
      %v3221 = vadd.f32 %v3154, %v3220
      %v3222 = vpop.f32.mrb[0].mxu0
      %3223 = vmatprep.mubr.bf16.mxu0 0
      %3224 = vmatmul.mubr.bf16.gmra.mrb[0].mxu0 %v2993
      %v3225 = vpop.f32.mrb[0].mxu0
      %v3226 = vadd.f32 %v3154, %v3225
      %v3227 = vpop.f32.mrb[0].mxu0
      %v3228 = vpop.f32.mrb[0].mxu0
      %v3229 = vadd.f32 %v3154, %v3228
      %v3230 = vpop.f32.mrb[0].mxu0
      %3231 = vdwg.mxu0
      %v3232 = vmul.f32 %v3030, %v525
      %v3233 = vmul.f32 %v3033, %v525
      %v3234 = vmul.f32 %v3038, %v525
      %v3235 = vmul.f32 %v3041, %v525
      %v3236 = vmul.f32 %v3046, %v525
      %v3237 = vmul.f32 %v3049, %v525
      %v3238 = vmul.f32 %v3054, %v525
      %v3239 = vmul.f32 %v3057, %v525
      %v3241 = vsel %vm567, %v3232, 0
      %v3244 = vsel %vm567, %v3233, 0
      %v3247 = vsel %vm567, %v3234, 0
      %v3250 = vsel %vm567, %v3235, 0
      %v3253 = vsel %vm567, %v3236, 0
      %v3256 = vsel %vm567, %v3237, 0
      %v3259 = vsel %vm567, %v3238, 0
      %v3262 = vsel %vm567, %v3239, 0
      %v3265 = vsel %vm567, %v3116, 0
      %v3268 = vsel %vm567, %v3119, 0
      %v3271 = vsel %vm567, %v3124, 0
      %v3274 = vsel %vm567, %v3127, 0
      %v3277 = vsel %vm567, %v3132, 0
      %v3280 = vsel %vm567, %v3135, 0
      %v3283 = vsel %vm567, %v3140, 0
      %v3286 = vsel %vm567, %v3143, 0
      %3288 = vmatprep.subr.mxu0 0.0
      %3289 = vmatpush1.xpose.msra.mxu0 %v3265
      %3290 = vmatprep.subr.mxu0 0.0
      %3291 = vmatpush1.xpose.msra.mxu0 %v3268
      %3292 = vmatprep.subr.mxu0 0.0
      %3293 = vmatpush1.xpose.msra.mxu0 %v3271
      %3294 = vmatprep.subr.mxu0 0.0
      %3295 = vmatpush1.xpose.msra.mxu0 %v3274
      %3296 = vmatprep.subr.mxu0 0.0
      %3297 = vmatpush1.xpose.msra.mxu0 %v3277
      %3298 = vmatprep.subr.mxu0 0.0
      %3299 = vmatpush1.xpose.msra.mxu0 %v3280
      %3300 = vmatprep.subr.mxu0 0.0
      %3301 = vmatpush1.xpose.msra.mxu0 %v3283
      %3302 = vmatprep.subr.mxu0 0.0
      %3303 = vmatpush1.xpose.msra.mxu0 %v3286
      %3304 = vmatprep.subr.mxu0 0.0
      %3305 = vmatpush1.xpose.msra.mxu0 0.0
      %3306 = vmatprep.subr.mxu0 0.0
      %3307 = vmatpush1.xpose.msra.mxu0 0.0
      %3308 = vmatprep.subr.mxu0 0.0
      %3309 = vmatpush1.xpose.msra.mxu0 0.0
      %3310 = vmatprep.subr.mxu0 0.0
      %3311 = vmatpush1.xpose.msra.mxu0 0.0
      %3312 = vmatprep.subr.mxu0 0.0
      %3313 = vmatpush1.xpose.msra.mxu0 0.0
      %3314 = vmatprep.subr.mxu0 0.0
      %3315 = vmatpush1.xpose.msra.mxu0 0.0
      %3316 = vmatprep.subr.mxu0 0.0
      %3317 = vmatpush1.xpose.msra.mxu0 0.0
      %3318 = vmatprep.subr.mxu0 0.0
      %3319 = vmatpush1.xpose.msra.mxu0 0.0
      %3320 = vmatprep.subr.mxu0 0.0
      %3321 = vmatpush1.xpose.msra.mxu0 0.0
      %3322 = vmatprep.subr.mxu0 0.0
      %3323 = vmatpush1.xpose.msra.mxu0 0.0
      %3324 = vmatprep.subr.mxu0 0.0
      %3325 = vmatpush1.xpose.msra.mxu0 0.0
      %3326 = vmatprep.subr.mxu0 0.0
      %3327 = vmatpush1.xpose.msra.mxu0 0.0
      %3328 = vmatprep.subr.mxu0 0.0
      %3329 = vmatpush1.xpose.msra.mxu0 0.0
      %3330 = vmatprep.subr.mxu0 0.0
      %3331 = vmatpush1.xpose.msra.mxu0 0.0
      %3332 = vmatprep.subr.mxu0 0.0
      %3333 = vmatpush1.xpose.msra.mxu0 0.0
      %3334 = vmatprep.subr.mxu0 0.0
      %3335 = vmatpush1.xpose.msra.mxu0 0.0
      %3336 = vmatprep.subr.mxu0 0.0
      %3337 = vmatpush1.xpose.msra.mxu0 0.0
      %3338 = vmatprep.subr.mxu0 0.0
      %3339 = vmatpush1.xpose.msra.mxu0 0.0
      %3340 = vmatprep.subr.mxu0 0.0
      %3341 = vmatpush1.xpose.msra.mxu0 0.0
      %3342 = vmatprep.subr.mxu0 0.0
      %3343 = vmatpush1.xpose.msra.mxu0 0.0
      %3344 = vmatprep.subr.mxu0 0.0
      %3345 = vmatpush1.xpose.msra.mxu0 0.0
      %3346 = vmatprep.subr.mxu0 0.0
      %3347 = vmatpush1.xpose.msra.mxu0 0.0
      %3348 = vmatprep.subr.mxu0 0.0
      %3349 = vmatpush1.xpose.msra.mxu0 0.0
      %3350 = vmatprep.subr.mxu0 0.0
      %3351 = vmatpush1.xpose.msra.mxu0 0.0
      %3352 = vmatprep.mubr.f32.mxu0 0.0
      %3353 = vmatmul.mubr.f32.gmra.mrb[0].mxu0 %v3241
      %v3354 = vpop.f32.mrb[0].mxu0
      %v3355 = vadd.f32 0.0, %v3354
      %v3356 = vpop.f32.mrb[0].mxu0
      %3357 = vmatprep.mubr.f32.mxu0 0.0
      %3358 = vmatmul.mubr.f32.gmra.mrb[0].mxu0 %v3244
      %v3359 = vpop.f32.mrb[0].mxu0
      %v3360 = vadd.f32 0.0, %v3359
      %v3361 = vpop.f32.mrb[0].mxu0
      %3362 = vmatprep.mubr.f32.mxu0 0.0
      %3363 = vmatmul.mubr.f32.gmra.mrb[0].mxu0 %v3247
      %v3364 = vpop.f32.mrb[0].mxu0
      %v3365 = vadd.f32 0.0, %v3364
      %v3366 = vpop.f32.mrb[0].mxu0
      %3367 = vmatprep.mubr.f32.mxu0 0.0
      %3368 = vmatmul.mubr.f32.gmra.mrb[0].mxu0 %v3250
      %v3369 = vpop.f32.mrb[0].mxu0
      %v3370 = vadd.f32 0.0, %v3369
      %v3371 = vpop.f32.mrb[0].mxu0
      %3372 = vmatprep.mubr.f32.mxu0 0.0
      %3373 = vmatmul.mubr.f32.gmra.mrb[0].mxu0 %v3253
      %v3374 = vpop.f32.mrb[0].mxu0
      %v3375 = vadd.f32 0.0, %v3374
      %v3376 = vpop.f32.mrb[0].mxu0
      %3377 = vmatprep.mubr.f32.mxu0 0.0
      %3378 = vmatmul.mubr.f32.gmra.mrb[0].mxu0 %v3256
      %v3379 = vpop.f32.mrb[0].mxu0
      %v3380 = vadd.f32 0.0, %v3379
      %v3381 = vpop.f32.mrb[0].mxu0
      %3382 = vmatprep.mubr.f32.mxu0 0.0
      %3383 = vmatmul.mubr.f32.gmra.mrb[0].mxu0 %v3259
      %v3384 = vpop.f32.mrb[0].mxu0
      %v3385 = vadd.f32 0.0, %v3384
      %v3386 = vpop.f32.mrb[0].mxu0
      %3387 = vmatprep.mubr.f32.mxu0 0.0
      %3388 = vmatmul.mubr.f32.gmra.mrb[0].mxu0 %v3262
      %v3389 = vpop.f32.mrb[0].mxu0
      %v3390 = vadd.f32 0.0, %v3389
      %v3391 = vpop.f32.mrb[0].mxu0
      %3392 = vdwg.mxu0
      %v3393 = vmul.f32 %v3355, 0.35355338
      %v3394 = vmul.f32 %v3360, 0.35355338
      %v3395 = vmul.f32 %v3365, 0.35355338
      %v3396 = vmul.f32 %v3370, 0.35355338
      %v3397 = vmul.f32 %v3375, 0.35355338
      %v3398 = vmul.f32 %v3380, 0.35355338
      %v3399 = vmul.f32 %v3385, 0.35355338
      %v3400 = vmul.f32 %v3390, 0.35355338
      %v3401 = vmax.f32 %v3393, -5.0
      %v3402 = vmax.f32 %v3394, -5.0
      %v3403 = vmax.f32 %v3395, -5.0
      %v3404 = vmax.f32 %v3396, -5.0
      %v3405 = vmax.f32 %v3397, -5.0
      %v3406 = vmax.f32 %v3398, -5.0
      %v3407 = vmax.f32 %v3399, -5.0
      %v3408 = vmax.f32 %v3400, -5.0
      %v3409 = vmin.f32 %v3401, 5.0
      %v3410 = vmin.f32 %v3402, 5.0
      %v3411 = vmin.f32 %v3403, 5.0
      %v3412 = vmin.f32 %v3404, 5.0
      %v3413 = vmin.f32 %v3405, 5.0
      %v3414 = vmin.f32 %v3406, 5.0
      %v3415 = vmin.f32 %v3407, 5.0
      %v3416 = vmin.f32 %v3408, 5.0
      %v3417 = vmul.f32 %v3409, 1.442695
      %v3418 = vpow.pop %v3417
      %v3419 = vmul.f32 %v3410, 1.442695
      %v3420 = vpow.pop %v3419
      %v3421 = vmul.f32 %v3411, 1.442695
      %v3422 = vpow.pop %v3421
      %v3423 = vmul.f32 %v3412, 1.442695
      %v3424 = vpow.pop %v3423
      %v3425 = vmul.f32 %v3413, 1.442695
      %v3426 = vpow.pop %v3425
      %v3427 = vmul.f32 %v3414, 1.442695
      %v3428 = vpow.pop %v3427
      %v3429 = vmul.f32 %v3415, 1.442695
      %v3430 = vpow.pop %v3429
      %v3431 = vmul.f32 %v3416, 1.442695
      %v3432 = vpow.pop %v3431
      %v3433 = vmul.f32 %v3418, %v416
      %v3434 = vmul.f32 %v3420, %v417
      %v3435 = vmul.f32 %v3422, %v418
      %v3436 = vmul.f32 %v3424, %v419
      %v3437 = vmul.f32 %v3426, %v420
      %v3438 = vmul.f32 %v3428, %v421
      %v3439 = vmul.f32 %v3430, %v422
      %v3440 = vmul.f32 %v3432, %v423
      %v3442 = vsel %vm1026, %v3433, 0
      %v3445 = vsel %vm1026, %v3434, 0
      %v3448 = vsel %vm1026, %v3435, 0
      %v3451 = vsel %vm1026, %v3436, 0
      %v3454 = vsel %vm1026, %v3437, 0
      %v3457 = vsel %vm1026, %v3438, 0
      %v3460 = vsel %vm1026, %v3439, 0
      %v3463 = vsel %vm1026, %v3440, 0
      %3465 = vmatprep.subr.mxu0 0.0
      %3466 = vmatpush1.msra.mxu0 %v3202
      %3467 = vmatprep.subr.mxu0 0.0
      %3468 = vmatpush1.msra.mxu0 %v3205
      %3469 = vmatprep.subr.mxu0 0.0
      %3470 = vmatpush1.msra.mxu0 %v3210
      %3471 = vmatprep.subr.mxu0 0.0
      %3472 = vmatpush1.msra.mxu0 %v3213
      %3473 = vmatprep.subr.mxu0 0.0
      %3474 = vmatpush1.msra.mxu0 %v3218
      %3475 = vmatprep.subr.mxu0 0.0
      %3476 = vmatpush1.msra.mxu0 %v3221
      %3477 = vmatprep.subr.mxu0 0.0
      %3478 = vmatpush1.msra.mxu0 %v3226
      %3479 = vmatprep.subr.mxu0 0.0
      %3480 = vmatpush1.msra.mxu0 %v3229
      %3481 = vmatprep.subr.mxu0 0.0
      %3482 = vmatpush1.msra.mxu0 0.0
      %3483 = vmatprep.subr.mxu0 0.0
      %3484 = vmatpush1.msra.mxu0 0.0
      %3485 = vmatprep.subr.mxu0 0.0
      %3486 = vmatpush1.msra.mxu0 0.0
      %3487 = vmatprep.subr.mxu0 0.0
      %3488 = vmatpush1.msra.mxu0 0.0
      %3489 = vmatprep.subr.mxu0 0.0
      %3490 = vmatpush1.msra.mxu0 0.0
      %3491 = vmatprep.subr.mxu0 0.0
      %3492 = vmatpush1.msra.mxu0 0.0
      %3493 = vmatprep.subr.mxu0 0.0
      %3494 = vmatpush1.msra.mxu0 0.0
      %3495 = vmatprep.subr.mxu0 0.0
      %3496 = vmatpush1.msra.mxu0 0.0
      %3497 = vmatprep.subr.mxu0 0.0
      %3498 = vmatpush1.msra.mxu0 0.0
      %3499 = vmatprep.subr.mxu0 0.0
      %3500 = vmatpush1.msra.mxu0 0.0
      %3501 = vmatprep.subr.mxu0 0.0
      %3502 = vmatpush1.msra.mxu0 0.0
      %3503 = vmatprep.subr.mxu0 0.0
      %3504 = vmatpush1.msra.mxu0 0.0
      %3505 = vmatprep.subr.mxu0 0.0
      %3506 = vmatpush1.msra.mxu0 0.0
      %3507 = vmatprep.subr.mxu0 0.0
      %3508 = vmatpush1.msra.mxu0 0.0
      %3509 = vmatprep.subr.mxu0 0.0
      %3510 = vmatpush1.msra.mxu0 0.0
      %3511 = vmatprep.subr.mxu0 0.0
      %3512 = vmatpush1.msra.mxu0 0.0
      %3513 = vmatprep.subr.mxu0 0.0
      %3514 = vmatpush1.msra.mxu0 0.0
      %3515 = vmatprep.subr.mxu0 0.0
      %3516 = vmatpush1.msra.mxu0 0.0
      %3517 = vmatprep.subr.mxu0 0.0
      %3518 = vmatpush1.msra.mxu0 0.0
      %3519 = vmatprep.subr.mxu0 0.0
      %3520 = vmatpush1.msra.mxu0 0.0
      %3521 = vmatprep.subr.mxu0 0.0
      %3522 = vmatpush1.msra.mxu0 0.0
      %3523 = vmatprep.subr.mxu0 0.0
      %3524 = vmatpush1.msra.mxu0 0.0
      %3525 = vmatprep.subr.mxu0 0.0
      %3526 = vmatpush1.msra.mxu0 0.0
      %3527 = vmatprep.subr.mxu0 0.0
      %3528 = vmatpush1.msra.mxu0 0.0
      %3529 = vmatprep.mubr.f32.mxu0 0.0
      %3530 = vmatmul.mubr.f32.gmra.mrb[0].mxu0 %v3442
      %v3531 = vpop.f32.mrb[0].mxu0
      %v3532 = vadd.f32 0.0, %v3531
      %v3533 = vpop.f32.mrb[0].mxu0
      %3534 = vmatprep.mubr.f32.mxu0 0.0
      %3535 = vmatmul.mubr.f32.gmra.mrb[0].mxu0 %v3445
      %v3536 = vpop.f32.mrb[0].mxu0
      %v3537 = vadd.f32 0.0, %v3536
      %v3538 = vpop.f32.mrb[0].mxu0
      %3539 = vmatprep.mubr.f32.mxu0 0.0
      %3540 = vmatmul.mubr.f32.gmra.mrb[0].mxu0 %v3448
      %v3541 = vpop.f32.mrb[0].mxu0
      %v3542 = vadd.f32 0.0, %v3541
      %v3543 = vpop.f32.mrb[0].mxu0
      %3544 = vmatprep.mubr.f32.mxu0 0.0
      %3545 = vmatmul.mubr.f32.gmra.mrb[0].mxu0 %v3451
      %v3546 = vpop.f32.mrb[0].mxu0
      %v3547 = vadd.f32 0.0, %v3546
      %v3548 = vpop.f32.mrb[0].mxu0
      %3549 = vmatprep.mubr.f32.mxu0 0.0
      %3550 = vmatmul.mubr.f32.gmra.mrb[0].mxu0 %v3454
      %v3551 = vpop.f32.mrb[0].mxu0
      %v3552 = vadd.f32 0.0, %v3551
      %v3553 = vpop.f32.mrb[0].mxu0
      %3554 = vmatprep.mubr.f32.mxu0 0.0
      %3555 = vmatmul.mubr.f32.gmra.mrb[0].mxu0 %v3457
      %v3556 = vpop.f32.mrb[0].mxu0
      %v3557 = vadd.f32 0.0, %v3556
      %v3558 = vpop.f32.mrb[0].mxu0
      %3559 = vmatprep.mubr.f32.mxu0 0.0
      %3560 = vmatmul.mubr.f32.gmra.mrb[0].mxu0 %v3460
      %v3561 = vpop.f32.mrb[0].mxu0
      %v3562 = vadd.f32 0.0, %v3561
      %v3563 = vpop.f32.mrb[0].mxu0
      %3564 = vmatprep.mubr.f32.mxu0 0.0
      %3565 = vmatmul.mubr.f32.gmra.mrb[0].mxu0 %v3463
      %v3566 = vpop.f32.mrb[0].mxu0
      %v3567 = vadd.f32 0.0, %v3566
      %v3568 = vpop.f32.mrb[0].mxu0
      %3569 = vdwg.mxu0
      %v3570 = vsel %vm1026, %v3433, 0.0
      %3571 = vadd.xlane.f32.xlu0 %v3570
      %v3572 = vpop.xlane.xlu0 %3571
      %v3573 = vsel %vm1026, %v3434, 0.0
      %3574 = vadd.xlane.f32.xlu0 %v3573
      %v3575 = vpop.xlane.xlu0 %3574
      %v3576 = vsel %vm1026, %v3435, 0.0
      %3577 = vadd.xlane.f32.xlu0 %v3576
      %v3578 = vpop.xlane.xlu0 %3577
      %v3579 = vsel %vm1026, %v3436, 0.0
      %3580 = vadd.xlane.f32.xlu0 %v3579
      %v3581 = vpop.xlane.xlu0 %3580
      %v3582 = vsel %vm1026, %v3437, 0.0
      %3583 = vadd.xlane.f32.xlu0 %v3582
      %v3584 = vpop.xlane.xlu0 %3583
      %v3585 = vsel %vm1026, %v3438, 0.0
      %3586 = vadd.xlane.f32.xlu0 %v3585
      %v3587 = vpop.xlane.xlu0 %3586
      %v3588 = vsel %vm1026, %v3439, 0.0
      %3589 = vadd.xlane.f32.xlu0 %v3588
      %v3590 = vpop.xlane.xlu0 %3589
      %v3591 = vsel %vm1026, %v3440, 0.0
      %3592 = vadd.xlane.f32.xlu0 %v3591
      %v3593 = vpop.xlane.xlu0 %3592
      %v3594 = vadd.f32 %v3572, 1e-06
      %v3595 = vadd.f32 %v3575, 1e-06
      %v3596 = vadd.f32 %v3578, 1e-06
      %v3597 = vadd.f32 %v3581, 1e-06
      %v3598 = vadd.f32 %v3584, 1e-06
      %v3599 = vadd.f32 %v3587, 1e-06
      %v3600 = vadd.f32 %v3590, 1e-06
      %v3601 = vadd.f32 %v3593, 1e-06
      %v3602 = vrcp.pop %v3594
      %v3603 = vrcp.pop %v3595
      %v3604 = vrcp.pop %v3596
      %v3605 = vrcp.pop %v3597
      %v3606 = vrcp.pop %v3598
      %v3607 = vrcp.pop %v3599
      %v3608 = vrcp.pop %v3600
      %v3609 = vrcp.pop %v3601
      %v3610 = vmul.f32 %v3532, %v3602
      %v3611 = vmul.f32 %v3537, %v3603
      %v3612 = vmul.f32 %v3542, %v3604
      %v3613 = vmul.f32 %v3547, %v3605
      %v3614 = vmul.f32 %v3552, %v3606
      %v3615 = vmul.f32 %v3557, %v3607
      %v3616 = vmul.f32 %v3562, %v3608
      %v3617 = vmul.f32 %v3567, %v3609
      %v3618 = vmul.f32 %v3610, %v525
      %v3619 = vmul.f32 %v3611, %v525
      %v3620 = vmul.f32 %v3612, %v525
      %v3621 = vmul.f32 %v3613, %v525
      %v3622 = vmul.f32 %v3614, %v525
      %v3623 = vmul.f32 %v3615, %v525
      %v3624 = vmul.f32 %v3616, %v525
      %v3625 = vmul.f32 %v3617, %v525
      %v3626 = vadd.f32 %v3618, 0.0
      %v3627 = vadd.f32 %v3619, 0.0
      %v3628 = vadd.f32 %v3620, 0.0
      %v3629 = vadd.f32 %v3621, 0.0
      %v3630 = vadd.f32 %v3622, 0.0
      %v3631 = vadd.f32 %v3623, 0.0
      %v3632 = vadd.f32 %v3624, 0.0
      %v3633 = vadd.f32 %v3625, 0.0
      %v3634 = vmul.f32 %v3030, %v530
      %v3635 = vmul.f32 %v3033, %v530
      %v3636 = vmul.f32 %v3038, %v530
      %v3637 = vmul.f32 %v3041, %v530
      %v3638 = vmul.f32 %v3046, %v530
      %v3639 = vmul.f32 %v3049, %v530
      %v3640 = vmul.f32 %v3054, %v530
      %v3641 = vmul.f32 %v3057, %v530
      %v3643 = vsel %vm567, %v3634, 0
      %v3646 = vsel %vm567, %v3635, 0
      %v3649 = vsel %vm567, %v3636, 0
      %v3652 = vsel %vm567, %v3637, 0
      %v3655 = vsel %vm567, %v3638, 0
      %v3658 = vsel %vm567, %v3639, 0
      %v3661 = vsel %vm567, %v3640, 0
      %v3664 = vsel %vm567, %v3641, 0
      %3666 = vmatprep.subr.mxu0 0.0
      %3667 = vmatpush1.xpose.msra.mxu0 %v3265
      %3668 = vmatprep.subr.mxu0 0.0
      %3669 = vmatpush1.xpose.msra.mxu0 %v3268
      %3670 = vmatprep.subr.mxu0 0.0
      %3671 = vmatpush1.xpose.msra.mxu0 %v3271
      %3672 = vmatprep.subr.mxu0 0.0
      %3673 = vmatpush1.xpose.msra.mxu0 %v3274
      %3674 = vmatprep.subr.mxu0 0.0
      %3675 = vmatpush1.xpose.msra.mxu0 %v3277
      %3676 = vmatprep.subr.mxu0 0.0
      %3677 = vmatpush1.xpose.msra.mxu0 %v3280
      %3678 = vmatprep.subr.mxu0 0.0
      %3679 = vmatpush1.xpose.msra.mxu0 %v3283
      %3680 = vmatprep.subr.mxu0 0.0
      %3681 = vmatpush1.xpose.msra.mxu0 %v3286
      %3682 = vmatprep.subr.mxu0 0.0
      %3683 = vmatpush1.xpose.msra.mxu0 0.0
      %3684 = vmatprep.subr.mxu0 0.0
      %3685 = vmatpush1.xpose.msra.mxu0 0.0
      %3686 = vmatprep.subr.mxu0 0.0
      %3687 = vmatpush1.xpose.msra.mxu0 0.0
      %3688 = vmatprep.subr.mxu0 0.0
      %3689 = vmatpush1.xpose.msra.mxu0 0.0
      %3690 = vmatprep.subr.mxu0 0.0
      %3691 = vmatpush1.xpose.msra.mxu0 0.0
      %3692 = vmatprep.subr.mxu0 0.0
      %3693 = vmatpush1.xpose.msra.mxu0 0.0
      %3694 = vmatprep.subr.mxu0 0.0
      %3695 = vmatpush1.xpose.msra.mxu0 0.0
      %3696 = vmatprep.subr.mxu0 0.0
      %3697 = vmatpush1.xpose.msra.mxu0 0.0
      %3698 = vmatprep.subr.mxu0 0.0
      %3699 = vmatpush1.xpose.msra.mxu0 0.0
      %3700 = vmatprep.subr.mxu0 0.0
      %3701 = vmatpush1.xpose.msra.mxu0 0.0
      %3702 = vmatprep.subr.mxu0 0.0
      %3703 = vmatpush1.xpose.msra.mxu0 0.0
      %3704 = vmatprep.subr.mxu0 0.0
      %3705 = vmatpush1.xpose.msra.mxu0 0.0
      %3706 = vmatprep.subr.mxu0 0.0
      %3707 = vmatpush1.xpose.msra.mxu0 0.0
      %3708 = vmatprep.subr.mxu0 0.0
      %3709 = vmatpush1.xpose.msra.mxu0 0.0
      %3710 = vmatprep.subr.mxu0 0.0
      %3711 = vmatpush1.xpose.msra.mxu0 0.0
      %3712 = vmatprep.subr.mxu0 0.0
      %3713 = vmatpush1.xpose.msra.mxu0 0.0
      %3714 = vmatprep.subr.mxu0 0.0
      %3715 = vmatpush1.xpose.msra.mxu0 0.0
      %3716 = vmatprep.subr.mxu0 0.0
      %3717 = vmatpush1.xpose.msra.mxu0 0.0
      %3718 = vmatprep.subr.mxu0 0.0
      %3719 = vmatpush1.xpose.msra.mxu0 0.0
      %3720 = vmatprep.subr.mxu0 0.0
      %3721 = vmatpush1.xpose.msra.mxu0 0.0
      %3722 = vmatprep.subr.mxu0 0.0
      %3723 = vmatpush1.xpose.msra.mxu0 0.0
      %3724 = vmatprep.subr.mxu0 0.0
      %3725 = vmatpush1.xpose.msra.mxu0 0.0
      %3726 = vmatprep.subr.mxu0 0.0
      %3727 = vmatpush1.xpose.msra.mxu0 0.0
      %3728 = vmatprep.subr.mxu0 0.0
      %3729 = vmatpush1.xpose.msra.mxu0 0.0
      %3730 = vmatprep.mubr.f32.mxu0 0.0
      %3731 = vmatmul.mubr.f32.gmra.mrb[0].mxu0 %v3643
      %v3732 = vpop.f32.mrb[0].mxu0
      %v3733 = vadd.f32 0.0, %v3732
      %v3734 = vpop.f32.mrb[0].mxu0
      %3735 = vmatprep.mubr.f32.mxu0 0.0
      %3736 = vmatmul.mubr.f32.gmra.mrb[0].mxu0 %v3646
      %v3737 = vpop.f32.mrb[0].mxu0
      %v3738 = vadd.f32 0.0, %v3737
      %v3739 = vpop.f32.mrb[0].mxu0
      %3740 = vmatprep.mubr.f32.mxu0 0.0
      %3741 = vmatmul.mubr.f32.gmra.mrb[0].mxu0 %v3649
      %v3742 = vpop.f32.mrb[0].mxu0
      %v3743 = vadd.f32 0.0, %v3742
      %v3744 = vpop.f32.mrb[0].mxu0
      %3745 = vmatprep.mubr.f32.mxu0 0.0
      %3746 = vmatmul.mubr.f32.gmra.mrb[0].mxu0 %v3652
      %v3747 = vpop.f32.mrb[0].mxu0
      %v3748 = vadd.f32 0.0, %v3747
      %v3749 = vpop.f32.mrb[0].mxu0
      %3750 = vmatprep.mubr.f32.mxu0 0.0
      %3751 = vmatmul.mubr.f32.gmra.mrb[0].mxu0 %v3655
      %v3752 = vpop.f32.mrb[0].mxu0
      %v3753 = vadd.f32 0.0, %v3752
      %v3754 = vpop.f32.mrb[0].mxu0
      %3755 = vmatprep.mubr.f32.mxu0 0.0
      %3756 = vmatmul.mubr.f32.gmra.mrb[0].mxu0 %v3658
      %v3757 = vpop.f32.mrb[0].mxu0
      %v3758 = vadd.f32 0.0, %v3757
      %v3759 = vpop.f32.mrb[0].mxu0
      %3760 = vmatprep.mubr.f32.mxu0 0.0
      %3761 = vmatmul.mubr.f32.gmra.mrb[0].mxu0 %v3661
      %v3762 = vpop.f32.mrb[0].mxu0
      %v3763 = vadd.f32 0.0, %v3762
      %v3764 = vpop.f32.mrb[0].mxu0
      %3765 = vmatprep.mubr.f32.mxu0 0.0
      %3766 = vmatmul.mubr.f32.gmra.mrb[0].mxu0 %v3664
      %v3767 = vpop.f32.mrb[0].mxu0
      %v3768 = vadd.f32 0.0, %v3767
      %v3769 = vpop.f32.mrb[0].mxu0
      %3770 = vdwg.mxu0
      %v3771 = vmul.f32 %v3733, 0.35355338
      %v3772 = vmul.f32 %v3738, 0.35355338
      %v3773 = vmul.f32 %v3743, 0.35355338
      %v3774 = vmul.f32 %v3748, 0.35355338
      %v3775 = vmul.f32 %v3753, 0.35355338
      %v3776 = vmul.f32 %v3758, 0.35355338
      %v3777 = vmul.f32 %v3763, 0.35355338
      %v3778 = vmul.f32 %v3768, 0.35355338
      %v3779 = vmax.f32 %v3771, -5.0
      %v3780 = vmax.f32 %v3772, -5.0
      %v3781 = vmax.f32 %v3773, -5.0
      %v3782 = vmax.f32 %v3774, -5.0
      %v3783 = vmax.f32 %v3775, -5.0
      %v3784 = vmax.f32 %v3776, -5.0
      %v3785 = vmax.f32 %v3777, -5.0
      %v3786 = vmax.f32 %v3778, -5.0
      %v3787 = vmin.f32 %v3779, 5.0
      %v3788 = vmin.f32 %v3780, 5.0
      %v3789 = vmin.f32 %v3781, 5.0
      %v3790 = vmin.f32 %v3782, 5.0
      %v3791 = vmin.f32 %v3783, 5.0
      %v3792 = vmin.f32 %v3784, 5.0
      %v3793 = vmin.f32 %v3785, 5.0
      %v3794 = vmin.f32 %v3786, 5.0
      %v3795 = vmul.f32 %v3787, 1.442695
      %v3796 = vpow.pop %v3795
      %v3797 = vmul.f32 %v3788, 1.442695
      %v3798 = vpow.pop %v3797
      %v3799 = vmul.f32 %v3789, 1.442695
      %v3800 = vpow.pop %v3799
      %v3801 = vmul.f32 %v3790, 1.442695
      %v3802 = vpow.pop %v3801
      %v3803 = vmul.f32 %v3791, 1.442695
      %v3804 = vpow.pop %v3803
      %v3805 = vmul.f32 %v3792, 1.442695
      %v3806 = vpow.pop %v3805
      %v3807 = vmul.f32 %v3793, 1.442695
      %v3808 = vpow.pop %v3807
      %v3809 = vmul.f32 %v3794, 1.442695
      %v3810 = vpow.pop %v3809
      %v3811 = vmul.f32 %v3796, %v416
      %v3812 = vmul.f32 %v3798, %v417
      %v3813 = vmul.f32 %v3800, %v418
      %v3814 = vmul.f32 %v3802, %v419
      %v3815 = vmul.f32 %v3804, %v420
      %v3816 = vmul.f32 %v3806, %v421
      %v3817 = vmul.f32 %v3808, %v422
      %v3818 = vmul.f32 %v3810, %v423
      %v3820 = vsel %vm1026, %v3811, 0
      %v3823 = vsel %vm1026, %v3812, 0
      %v3826 = vsel %vm1026, %v3813, 0
      %v3829 = vsel %vm1026, %v3814, 0
      %v3832 = vsel %vm1026, %v3815, 0
      %v3835 = vsel %vm1026, %v3816, 0
      %v3838 = vsel %vm1026, %v3817, 0
      %v3841 = vsel %vm1026, %v3818, 0
      %3843 = vmatprep.subr.mxu0 0.0
      %3844 = vmatpush1.msra.mxu0 %v3202
      %3845 = vmatprep.subr.mxu0 0.0
      %3846 = vmatpush1.msra.mxu0 %v3205
      %3847 = vmatprep.subr.mxu0 0.0
      %3848 = vmatpush1.msra.mxu0 %v3210
      %3849 = vmatprep.subr.mxu0 0.0
      %3850 = vmatpush1.msra.mxu0 %v3213
      %3851 = vmatprep.subr.mxu0 0.0
      %3852 = vmatpush1.msra.mxu0 %v3218
      %3853 = vmatprep.subr.mxu0 0.0
      %3854 = vmatpush1.msra.mxu0 %v3221
      %3855 = vmatprep.subr.mxu0 0.0
      %3856 = vmatpush1.msra.mxu0 %v3226
      %3857 = vmatprep.subr.mxu0 0.0
      %3858 = vmatpush1.msra.mxu0 %v3229
      %3859 = vmatprep.subr.mxu0 0.0
      %3860 = vmatpush1.msra.mxu0 0.0
      %3861 = vmatprep.subr.mxu0 0.0
      %3862 = vmatpush1.msra.mxu0 0.0
      %3863 = vmatprep.subr.mxu0 0.0
      %3864 = vmatpush1.msra.mxu0 0.0
      %3865 = vmatprep.subr.mxu0 0.0
      %3866 = vmatpush1.msra.mxu0 0.0
      %3867 = vmatprep.subr.mxu0 0.0
      %3868 = vmatpush1.msra.mxu0 0.0
      %3869 = vmatprep.subr.mxu0 0.0
      %3870 = vmatpush1.msra.mxu0 0.0
      %3871 = vmatprep.subr.mxu0 0.0
      %3872 = vmatpush1.msra.mxu0 0.0
      %3873 = vmatprep.subr.mxu0 0.0
      %3874 = vmatpush1.msra.mxu0 0.0
      %3875 = vmatprep.subr.mxu0 0.0
      %3876 = vmatpush1.msra.mxu0 0.0
      %3877 = vmatprep.subr.mxu0 0.0
      %3878 = vmatpush1.msra.mxu0 0.0
      %3879 = vmatprep.subr.mxu0 0.0
      %3880 = vmatpush1.msra.mxu0 0.0
      %3881 = vmatprep.subr.mxu0 0.0
      %3882 = vmatpush1.msra.mxu0 0.0
      %3883 = vmatprep.subr.mxu0 0.0
      %3884 = vmatpush1.msra.mxu0 0.0
      %3885 = vmatprep.subr.mxu0 0.0
      %3886 = vmatpush1.msra.mxu0 0.0
      %3887 = vmatprep.subr.mxu0 0.0
      %3888 = vmatpush1.msra.mxu0 0.0
      %3889 = vmatprep.subr.mxu0 0.0
      %3890 = vmatpush1.msra.mxu0 0.0
      %3891 = vmatprep.subr.mxu0 0.0
      %3892 = vmatpush1.msra.mxu0 0.0
      %3893 = vmatprep.subr.mxu0 0.0
      %3894 = vmatpush1.msra.mxu0 0.0
      %3895 = vmatprep.subr.mxu0 0.0
      %3896 = vmatpush1.msra.mxu0 0.0
      %3897 = vmatprep.subr.mxu0 0.0
      %3898 = vmatpush1.msra.mxu0 0.0
      %3899 = vmatprep.subr.mxu0 0.0
      %3900 = vmatpush1.msra.mxu0 0.0
      %3901 = vmatprep.subr.mxu0 0.0
      %3902 = vmatpush1.msra.mxu0 0.0
      %3903 = vmatprep.subr.mxu0 0.0
      %3904 = vmatpush1.msra.mxu0 0.0
      %3905 = vmatprep.subr.mxu0 0.0
      %3906 = vmatpush1.msra.mxu0 0.0
      %3907 = vmatprep.mubr.f32.mxu0 0.0
      %3908 = vmatmul.mubr.f32.gmra.mrb[0].mxu0 %v3820
      %v3909 = vpop.f32.mrb[0].mxu0
      %v3910 = vadd.f32 0.0, %v3909
      %v3911 = vpop.f32.mrb[0].mxu0
      %3912 = vmatprep.mubr.f32.mxu0 0.0
      %3913 = vmatmul.mubr.f32.gmra.mrb[0].mxu0 %v3823
      %v3914 = vpop.f32.mrb[0].mxu0
      %v3915 = vadd.f32 0.0, %v3914
      %v3916 = vpop.f32.mrb[0].mxu0
      %3917 = vmatprep.mubr.f32.mxu0 0.0
      %3918 = vmatmul.mubr.f32.gmra.mrb[0].mxu0 %v3826
      %v3919 = vpop.f32.mrb[0].mxu0
      %v3920 = vadd.f32 0.0, %v3919
      %v3921 = vpop.f32.mrb[0].mxu0
      %3922 = vmatprep.mubr.f32.mxu0 0.0
      %3923 = vmatmul.mubr.f32.gmra.mrb[0].mxu0 %v3829
      %v3924 = vpop.f32.mrb[0].mxu0
      %v3925 = vadd.f32 0.0, %v3924
      %v3926 = vpop.f32.mrb[0].mxu0
      %3927 = vmatprep.mubr.f32.mxu0 0.0
      %3928 = vmatmul.mubr.f32.gmra.mrb[0].mxu0 %v3832
      %v3929 = vpop.f32.mrb[0].mxu0
      %v3930 = vadd.f32 0.0, %v3929
      %v3931 = vpop.f32.mrb[0].mxu0
      %3932 = vmatprep.mubr.f32.mxu0 0.0
      %3933 = vmatmul.mubr.f32.gmra.mrb[0].mxu0 %v3835
      %v3934 = vpop.f32.mrb[0].mxu0
      %v3935 = vadd.f32 0.0, %v3934
      %v3936 = vpop.f32.mrb[0].mxu0
      %3937 = vmatprep.mubr.f32.mxu0 0.0
      %3938 = vmatmul.mubr.f32.gmra.mrb[0].mxu0 %v3838
      %v3939 = vpop.f32.mrb[0].mxu0
      %v3940 = vadd.f32 0.0, %v3939
      %v3941 = vpop.f32.mrb[0].mxu0
      %3942 = vmatprep.mubr.f32.mxu0 0.0
      %3943 = vmatmul.mubr.f32.gmra.mrb[0].mxu0 %v3841
      %v3944 = vpop.f32.mrb[0].mxu0
      %v3945 = vadd.f32 0.0, %v3944
      %v3946 = vpop.f32.mrb[0].mxu0
      %3947 = vdwg.mxu0
      %v3948 = vsel %vm1026, %v3811, 0.0
      %3949 = vadd.xlane.f32.xlu0 %v3948
      %v3950 = vpop.xlane.xlu0 %3949
      %v3951 = vsel %vm1026, %v3812, 0.0
      %3952 = vadd.xlane.f32.xlu0 %v3951
      %v3953 = vpop.xlane.xlu0 %3952
      %v3954 = vsel %vm1026, %v3813, 0.0
      %3955 = vadd.xlane.f32.xlu0 %v3954
      %v3956 = vpop.xlane.xlu0 %3955
      %v3957 = vsel %vm1026, %v3814, 0.0
      %3958 = vadd.xlane.f32.xlu0 %v3957
      %v3959 = vpop.xlane.xlu0 %3958
      %v3960 = vsel %vm1026, %v3815, 0.0
      %3961 = vadd.xlane.f32.xlu0 %v3960
      %v3962 = vpop.xlane.xlu0 %3961
      %v3963 = vsel %vm1026, %v3816, 0.0
      %3964 = vadd.xlane.f32.xlu0 %v3963
      %v3965 = vpop.xlane.xlu0 %3964
      %v3966 = vsel %vm1026, %v3817, 0.0
      %3967 = vadd.xlane.f32.xlu0 %v3966
      %v3968 = vpop.xlane.xlu0 %3967
      %v3969 = vsel %vm1026, %v3818, 0.0
      %3970 = vadd.xlane.f32.xlu0 %v3969
      %v3971 = vpop.xlane.xlu0 %3970
      %v3972 = vadd.f32 %v3950, 1e-06
      %v3973 = vadd.f32 %v3953, 1e-06
      %v3974 = vadd.f32 %v3956, 1e-06
      %v3975 = vadd.f32 %v3959, 1e-06
      %v3976 = vadd.f32 %v3962, 1e-06
      %v3977 = vadd.f32 %v3965, 1e-06
      %v3978 = vadd.f32 %v3968, 1e-06
      %v3979 = vadd.f32 %v3971, 1e-06
      %v3980 = vrcp.pop %v3972
      %v3981 = vrcp.pop %v3973
      %v3982 = vrcp.pop %v3974
      %v3983 = vrcp.pop %v3975
      %v3984 = vrcp.pop %v3976
      %v3985 = vrcp.pop %v3977
      %v3986 = vrcp.pop %v3978
      %v3987 = vrcp.pop %v3979
      %v3988 = vmul.f32 %v3910, %v3980
      %v3989 = vmul.f32 %v3915, %v3981
      %v3990 = vmul.f32 %v3920, %v3982
      %v3991 = vmul.f32 %v3925, %v3983
      %v3992 = vmul.f32 %v3930, %v3984
      %v3993 = vmul.f32 %v3935, %v3985
      %v3994 = vmul.f32 %v3940, %v3986
      %v3995 = vmul.f32 %v3945, %v3987
      %v3996 = vmul.f32 %v3988, %v530
      %v3997 = vmul.f32 %v3989, %v530
      %v3998 = vmul.f32 %v3990, %v530
      %v3999 = vmul.f32 %v3991, %v530
      %v4000 = vmul.f32 %v3992, %v530
      %v4001 = vmul.f32 %v3993, %v530
      %v4002 = vmul.f32 %v3994, %v530
      %v4003 = vmul.f32 %v3995, %v530
      %v4004 = vadd.f32 %v3626, %v3996
      %v4005 = vadd.f32 %v3627, %v3997
      %v4006 = vadd.f32 %v3628, %v3998
      %v4007 = vadd.f32 %v3629, %v3999
      %v4008 = vadd.f32 %v3630, %v4000
      %v4009 = vadd.f32 %v3631, %v4001
      %v4010 = vadd.f32 %v3632, %v4002
      %v4011 = vadd.f32 %v3633, %v4003
      %v4012 = vmul.f32 %v3030, %v535
      %v4013 = vmul.f32 %v3033, %v535
      %v4014 = vmul.f32 %v3038, %v535
      %v4015 = vmul.f32 %v3041, %v535
      %v4016 = vmul.f32 %v3046, %v535
      %v4017 = vmul.f32 %v3049, %v535
      %v4018 = vmul.f32 %v3054, %v535
      %v4019 = vmul.f32 %v3057, %v535
      %v4021 = vsel %vm567, %v4012, 0
      %v4024 = vsel %vm567, %v4013, 0
      %v4027 = vsel %vm567, %v4014, 0
      %v4030 = vsel %vm567, %v4015, 0
      %v4033 = vsel %vm567, %v4016, 0
      %v4036 = vsel %vm567, %v4017, 0
      %v4039 = vsel %vm567, %v4018, 0
      %v4042 = vsel %vm567, %v4019, 0
      %4044 = vmatprep.subr.mxu0 0.0
      %4045 = vmatpush1.xpose.msra.mxu0 %v3265
      %4046 = vmatprep.subr.mxu0 0.0
      %4047 = vmatpush1.xpose.msra.mxu0 %v3268
      %4048 = vmatprep.subr.mxu0 0.0
      %4049 = vmatpush1.xpose.msra.mxu0 %v3271
      %4050 = vmatprep.subr.mxu0 0.0
      %4051 = vmatpush1.xpose.msra.mxu0 %v3274
      %4052 = vmatprep.subr.mxu0 0.0
      %4053 = vmatpush1.xpose.msra.mxu0 %v3277
      %4054 = vmatprep.subr.mxu0 0.0
      %4055 = vmatpush1.xpose.msra.mxu0 %v3280
      %4056 = vmatprep.subr.mxu0 0.0
      %4057 = vmatpush1.xpose.msra.mxu0 %v3283
      %4058 = vmatprep.subr.mxu0 0.0
      %4059 = vmatpush1.xpose.msra.mxu0 %v3286
      %4060 = vmatprep.subr.mxu0 0.0
      %4061 = vmatpush1.xpose.msra.mxu0 0.0
      %4062 = vmatprep.subr.mxu0 0.0
      %4063 = vmatpush1.xpose.msra.mxu0 0.0
      %4064 = vmatprep.subr.mxu0 0.0
      %4065 = vmatpush1.xpose.msra.mxu0 0.0
      %4066 = vmatprep.subr.mxu0 0.0
      %4067 = vmatpush1.xpose.msra.mxu0 0.0
      %4068 = vmatprep.subr.mxu0 0.0
      %4069 = vmatpush1.xpose.msra.mxu0 0.0
      %4070 = vmatprep.subr.mxu0 0.0
      %4071 = vmatpush1.xpose.msra.mxu0 0.0
      %4072 = vmatprep.subr.mxu0 0.0
      %4073 = vmatpush1.xpose.msra.mxu0 0.0
      %4074 = vmatprep.subr.mxu0 0.0
      %4075 = vmatpush1.xpose.msra.mxu0 0.0
      %4076 = vmatprep.subr.mxu0 0.0
      %4077 = vmatpush1.xpose.msra.mxu0 0.0
      %4078 = vmatprep.subr.mxu0 0.0
      %4079 = vmatpush1.xpose.msra.mxu0 0.0
      %4080 = vmatprep.subr.mxu0 0.0
      %4081 = vmatpush1.xpose.msra.mxu0 0.0
      %4082 = vmatprep.subr.mxu0 0.0
      %4083 = vmatpush1.xpose.msra.mxu0 0.0
      %4084 = vmatprep.subr.mxu0 0.0
      %4085 = vmatpush1.xpose.msra.mxu0 0.0
      %4086 = vmatprep.subr.mxu0 0.0
      %4087 = vmatpush1.xpose.msra.mxu0 0.0
      %4088 = vmatprep.subr.mxu0 0.0
      %4089 = vmatpush1.xpose.msra.mxu0 0.0
      %4090 = vmatprep.subr.mxu0 0.0
      %4091 = vmatpush1.xpose.msra.mxu0 0.0
      %4092 = vmatprep.subr.mxu0 0.0
      %4093 = vmatpush1.xpose.msra.mxu0 0.0
      %4094 = vmatprep.subr.mxu0 0.0
      %4095 = vmatpush1.xpose.msra.mxu0 0.0
      %4096 = vmatprep.subr.mxu0 0.0
      %4097 = vmatpush1.xpose.msra.mxu0 0.0
      %4098 = vmatprep.subr.mxu0 0.0
      %4099 = vmatpush1.xpose.msra.mxu0 0.0
      %4100 = vmatprep.subr.mxu0 0.0
      %4101 = vmatpush1.xpose.msra.mxu0 0.0
      %4102 = vmatprep.subr.mxu0 0.0
      %4103 = vmatpush1.xpose.msra.mxu0 0.0
      %4104 = vmatprep.subr.mxu0 0.0
      %4105 = vmatpush1.xpose.msra.mxu0 0.0
      %4106 = vmatprep.subr.mxu0 0.0
      %4107 = vmatpush1.xpose.msra.mxu0 0.0
      %4108 = vmatprep.mubr.f32.mxu0 0.0
      %4109 = vmatmul.mubr.f32.gmra.mrb[0].mxu0 %v4021
      %v4110 = vpop.f32.mrb[0].mxu0
      %v4111 = vadd.f32 0.0, %v4110
      %v4112 = vpop.f32.mrb[0].mxu0
      %4113 = vmatprep.mubr.f32.mxu0 0.0
      %4114 = vmatmul.mubr.f32.gmra.mrb[0].mxu0 %v4024
      %v4115 = vpop.f32.mrb[0].mxu0
      %v4116 = vadd.f32 0.0, %v4115
      %v4117 = vpop.f32.mrb[0].mxu0
      %4118 = vmatprep.mubr.f32.mxu0 0.0
      %4119 = vmatmul.mubr.f32.gmra.mrb[0].mxu0 %v4027
      %v4120 = vpop.f32.mrb[0].mxu0
      %v4121 = vadd.f32 0.0, %v4120
      %v4122 = vpop.f32.mrb[0].mxu0
      %4123 = vmatprep.mubr.f32.mxu0 0.0
      %4124 = vmatmul.mubr.f32.gmra.mrb[0].mxu0 %v4030
      %v4125 = vpop.f32.mrb[0].mxu0
      %v4126 = vadd.f32 0.0, %v4125
      %v4127 = vpop.f32.mrb[0].mxu0
      %4128 = vmatprep.mubr.f32.mxu0 0.0
      %4129 = vmatmul.mubr.f32.gmra.mrb[0].mxu0 %v4033
      %v4130 = vpop.f32.mrb[0].mxu0
      %v4131 = vadd.f32 0.0, %v4130
      %v4132 = vpop.f32.mrb[0].mxu0
      %4133 = vmatprep.mubr.f32.mxu0 0.0
      %4134 = vmatmul.mubr.f32.gmra.mrb[0].mxu0 %v4036
      %v4135 = vpop.f32.mrb[0].mxu0
      %v4136 = vadd.f32 0.0, %v4135
      %v4137 = vpop.f32.mrb[0].mxu0
      %4138 = vmatprep.mubr.f32.mxu0 0.0
      %4139 = vmatmul.mubr.f32.gmra.mrb[0].mxu0 %v4039
      %v4140 = vpop.f32.mrb[0].mxu0
      %v4141 = vadd.f32 0.0, %v4140
      %v4142 = vpop.f32.mrb[0].mxu0
      %4143 = vmatprep.mubr.f32.mxu0 0.0
      %4144 = vmatmul.mubr.f32.gmra.mrb[0].mxu0 %v4042
      %v4145 = vpop.f32.mrb[0].mxu0
      %v4146 = vadd.f32 0.0, %v4145
      %v4147 = vpop.f32.mrb[0].mxu0
      %4148 = vdwg.mxu0
      %v4149 = vmul.f32 %v4111, 0.35355338
      %v4150 = vmul.f32 %v4116, 0.35355338
      %v4151 = vmul.f32 %v4121, 0.35355338
      %v4152 = vmul.f32 %v4126, 0.35355338
      %v4153 = vmul.f32 %v4131, 0.35355338
      %v4154 = vmul.f32 %v4136, 0.35355338
      %v4155 = vmul.f32 %v4141, 0.35355338
      %v4156 = vmul.f32 %v4146, 0.35355338
      %v4157 = vmax.f32 %v4149, -5.0
      %v4158 = vmax.f32 %v4150, -5.0
      %v4159 = vmax.f32 %v4151, -5.0
      %v4160 = vmax.f32 %v4152, -5.0
      %v4161 = vmax.f32 %v4153, -5.0
      %v4162 = vmax.f32 %v4154, -5.0
      %v4163 = vmax.f32 %v4155, -5.0
      %v4164 = vmax.f32 %v4156, -5.0
      %v4165 = vmin.f32 %v4157, 5.0
      %v4166 = vmin.f32 %v4158, 5.0
      %v4167 = vmin.f32 %v4159, 5.0
      %v4168 = vmin.f32 %v4160, 5.0
      %v4169 = vmin.f32 %v4161, 5.0
      %v4170 = vmin.f32 %v4162, 5.0
      %v4171 = vmin.f32 %v4163, 5.0
      %v4172 = vmin.f32 %v4164, 5.0
      %v4173 = vmul.f32 %v4165, 1.442695
      %v4174 = vpow.pop %v4173
      %v4175 = vmul.f32 %v4166, 1.442695
      %v4176 = vpow.pop %v4175
      %v4177 = vmul.f32 %v4167, 1.442695
      %v4178 = vpow.pop %v4177
      %v4179 = vmul.f32 %v4168, 1.442695
      %v4180 = vpow.pop %v4179
      %v4181 = vmul.f32 %v4169, 1.442695
      %v4182 = vpow.pop %v4181
      %v4183 = vmul.f32 %v4170, 1.442695
      %v4184 = vpow.pop %v4183
      %v4185 = vmul.f32 %v4171, 1.442695
      %v4186 = vpow.pop %v4185
      %v4187 = vmul.f32 %v4172, 1.442695
      %v4188 = vpow.pop %v4187
      %v4189 = vmul.f32 %v4174, %v416
      %v4190 = vmul.f32 %v4176, %v417
      %v4191 = vmul.f32 %v4178, %v418
      %v4192 = vmul.f32 %v4180, %v419
      %v4193 = vmul.f32 %v4182, %v420
      %v4194 = vmul.f32 %v4184, %v421
      %v4195 = vmul.f32 %v4186, %v422
      %v4196 = vmul.f32 %v4188, %v423
      %v4198 = vsel %vm1026, %v4189, 0
      %v4201 = vsel %vm1026, %v4190, 0
      %v4204 = vsel %vm1026, %v4191, 0
      %v4207 = vsel %vm1026, %v4192, 0
      %v4210 = vsel %vm1026, %v4193, 0
      %v4213 = vsel %vm1026, %v4194, 0
      %v4216 = vsel %vm1026, %v4195, 0
      %v4219 = vsel %vm1026, %v4196, 0
      %4221 = vmatprep.subr.mxu0 0.0
      %4222 = vmatpush1.msra.mxu0 %v3202
      %4223 = vmatprep.subr.mxu0 0.0
      %4224 = vmatpush1.msra.mxu0 %v3205
      %4225 = vmatprep.subr.mxu0 0.0
      %4226 = vmatpush1.msra.mxu0 %v3210
      %4227 = vmatprep.subr.mxu0 0.0
      %4228 = vmatpush1.msra.mxu0 %v3213
      %4229 = vmatprep.subr.mxu0 0.0
      %4230 = vmatpush1.msra.mxu0 %v3218
      %4231 = vmatprep.subr.mxu0 0.0
      %4232 = vmatpush1.msra.mxu0 %v3221
      %4233 = vmatprep.subr.mxu0 0.0
      %4234 = vmatpush1.msra.mxu0 %v3226
      %4235 = vmatprep.subr.mxu0 0.0
      %4236 = vmatpush1.msra.mxu0 %v3229
      %4237 = vmatprep.subr.mxu0 0.0
      %4238 = vmatpush1.msra.mxu0 0.0
      %4239 = vmatprep.subr.mxu0 0.0
      %4240 = vmatpush1.msra.mxu0 0.0
      %4241 = vmatprep.subr.mxu0 0.0
      %4242 = vmatpush1.msra.mxu0 0.0
      %4243 = vmatprep.subr.mxu0 0.0
      %4244 = vmatpush1.msra.mxu0 0.0
      %4245 = vmatprep.subr.mxu0 0.0
      %4246 = vmatpush1.msra.mxu0 0.0
      %4247 = vmatprep.subr.mxu0 0.0
      %4248 = vmatpush1.msra.mxu0 0.0
      %4249 = vmatprep.subr.mxu0 0.0
      %4250 = vmatpush1.msra.mxu0 0.0
      %4251 = vmatprep.subr.mxu0 0.0
      %4252 = vmatpush1.msra.mxu0 0.0
      %4253 = vmatprep.subr.mxu0 0.0
      %4254 = vmatpush1.msra.mxu0 0.0
      %4255 = vmatprep.subr.mxu0 0.0
      %4256 = vmatpush1.msra.mxu0 0.0
      %4257 = vmatprep.subr.mxu0 0.0
      %4258 = vmatpush1.msra.mxu0 0.0
      %4259 = vmatprep.subr.mxu0 0.0
      %4260 = vmatpush1.msra.mxu0 0.0
      %4261 = vmatprep.subr.mxu0 0.0
      %4262 = vmatpush1.msra.mxu0 0.0
      %4263 = vmatprep.subr.mxu0 0.0
      %4264 = vmatpush1.msra.mxu0 0.0
      %4265 = vmatprep.subr.mxu0 0.0
      %4266 = vmatpush1.msra.mxu0 0.0
      %4267 = vmatprep.subr.mxu0 0.0
      %4268 = vmatpush1.msra.mxu0 0.0
      %4269 = vmatprep.subr.mxu0 0.0
      %4270 = vmatpush1.msra.mxu0 0.0
      %4271 = vmatprep.subr.mxu0 0.0
      %4272 = vmatpush1.msra.mxu0 0.0
      %4273 = vmatprep.subr.mxu0 0.0
      %4274 = vmatpush1.msra.mxu0 0.0
      %4275 = vmatprep.subr.mxu0 0.0
      %4276 = vmatpush1.msra.mxu0 0.0
      %4277 = vmatprep.subr.mxu0 0.0
      %4278 = vmatpush1.msra.mxu0 0.0
      %4279 = vmatprep.subr.mxu0 0.0
      %4280 = vmatpush1.msra.mxu0 0.0
      %4281 = vmatprep.subr.mxu0 0.0
      %4282 = vmatpush1.msra.mxu0 0.0
      %4283 = vmatprep.subr.mxu0 0.0
      %4284 = vmatpush1.msra.mxu0 0.0
      %4285 = vmatprep.mubr.f32.mxu0 0.0
      %4286 = vmatmul.mubr.f32.gmra.mrb[0].mxu0 %v4198
      %v4287 = vpop.f32.mrb[0].mxu0
      %v4288 = vadd.f32 0.0, %v4287
      %v4289 = vpop.f32.mrb[0].mxu0
      %4290 = vmatprep.mubr.f32.mxu0 0.0
      %4291 = vmatmul.mubr.f32.gmra.mrb[0].mxu0 %v4201
      %v4292 = vpop.f32.mrb[0].mxu0
      %v4293 = vadd.f32 0.0, %v4292
      %v4294 = vpop.f32.mrb[0].mxu0
      %4295 = vmatprep.mubr.f32.mxu0 0.0
      %4296 = vmatmul.mubr.f32.gmra.mrb[0].mxu0 %v4204
      %v4297 = vpop.f32.mrb[0].mxu0
      %v4298 = vadd.f32 0.0, %v4297
      %v4299 = vpop.f32.mrb[0].mxu0
      %4300 = vmatprep.mubr.f32.mxu0 0.0
      %4301 = vmatmul.mubr.f32.gmra.mrb[0].mxu0 %v4207
      %v4302 = vpop.f32.mrb[0].mxu0
      %v4303 = vadd.f32 0.0, %v4302
      %v4304 = vpop.f32.mrb[0].mxu0
      %4305 = vmatprep.mubr.f32.mxu0 0.0
      %4306 = vmatmul.mubr.f32.gmra.mrb[0].mxu0 %v4210
      %v4307 = vpop.f32.mrb[0].mxu0
      %v4308 = vadd.f32 0.0, %v4307
      %v4309 = vpop.f32.mrb[0].mxu0
      %4310 = vmatprep.mubr.f32.mxu0 0.0
      %4311 = vmatmul.mubr.f32.gmra.mrb[0].mxu0 %v4213
      %v4312 = vpop.f32.mrb[0].mxu0
      %v4313 = vadd.f32 0.0, %v4312
      %v4314 = vpop.f32.mrb[0].mxu0
      %4315 = vmatprep.mubr.f32.mxu0 0.0
      %4316 = vmatmul.mubr.f32.gmra.mrb[0].mxu0 %v4216
      %v4317 = vpop.f32.mrb[0].mxu0
      %v4318 = vadd.f32 0.0, %v4317
      %v4319 = vpop.f32.mrb[0].mxu0
      %4320 = vmatprep.mubr.f32.mxu0 0.0
      %4321 = vmatmul.mubr.f32.gmra.mrb[0].mxu0 %v4219
      %v4322 = vpop.f32.mrb[0].mxu0
      %v4323 = vadd.f32 0.0, %v4322
      %v4324 = vpop.f32.mrb[0].mxu0
      %4325 = vdwg.mxu0
      %v4326 = vsel %vm1026, %v4189, 0.0
      %4327 = vadd.xlane.f32.xlu0 %v4326
      %v4328 = vpop.xlane.xlu0 %4327
      %v4329 = vsel %vm1026, %v4190, 0.0
      %4330 = vadd.xlane.f32.xlu0 %v4329
      %v4331 = vpop.xlane.xlu0 %4330
      %v4332 = vsel %vm1026, %v4191, 0.0
      %4333 = vadd.xlane.f32.xlu0 %v4332
      %v4334 = vpop.xlane.xlu0 %4333
      %v4335 = vsel %vm1026, %v4192, 0.0
      %4336 = vadd.xlane.f32.xlu0 %v4335
      %v4337 = vpop.xlane.xlu0 %4336
      %v4338 = vsel %vm1026, %v4193, 0.0
      %4339 = vadd.xlane.f32.xlu0 %v4338
      %v4340 = vpop.xlane.xlu0 %4339
      %v4341 = vsel %vm1026, %v4194, 0.0
      %4342 = vadd.xlane.f32.xlu0 %v4341
      %v4343 = vpop.xlane.xlu0 %4342
      %v4344 = vsel %vm1026, %v4195, 0.0
      %4345 = vadd.xlane.f32.xlu0 %v4344
      %v4346 = vpop.xlane.xlu0 %4345
      %v4347 = vsel %vm1026, %v4196, 0.0
      %4348 = vadd.xlane.f32.xlu0 %v4347
      %v4349 = vpop.xlane.xlu0 %4348
      %v4350 = vadd.f32 %v4328, 1e-06
      %v4351 = vadd.f32 %v4331, 1e-06
      %v4352 = vadd.f32 %v4334, 1e-06
      %v4353 = vadd.f32 %v4337, 1e-06
      %v4354 = vadd.f32 %v4340, 1e-06
      %v4355 = vadd.f32 %v4343, 1e-06
      %v4356 = vadd.f32 %v4346, 1e-06
      %v4357 = vadd.f32 %v4349, 1e-06
      %v4358 = vrcp.pop %v4350
      %v4359 = vrcp.pop %v4351
      %v4360 = vrcp.pop %v4352
      %v4361 = vrcp.pop %v4353
      %v4362 = vrcp.pop %v4354
      %v4363 = vrcp.pop %v4355
      %v4364 = vrcp.pop %v4356
      %v4365 = vrcp.pop %v4357
      %v4366 = vmul.f32 %v4288, %v4358
      %v4367 = vmul.f32 %v4293, %v4359
      %v4368 = vmul.f32 %v4298, %v4360
      %v4369 = vmul.f32 %v4303, %v4361
      %v4370 = vmul.f32 %v4308, %v4362
      %v4371 = vmul.f32 %v4313, %v4363
      %v4372 = vmul.f32 %v4318, %v4364
      %v4373 = vmul.f32 %v4323, %v4365
      %v4374 = vmul.f32 %v4366, %v535
      %v4375 = vmul.f32 %v4367, %v535
      %v4376 = vmul.f32 %v4368, %v535
      %v4377 = vmul.f32 %v4369, %v535
      %v4378 = vmul.f32 %v4370, %v535
      %v4379 = vmul.f32 %v4371, %v535
      %v4380 = vmul.f32 %v4372, %v535
      %v4381 = vmul.f32 %v4373, %v535
      %v4382 = vadd.f32 %v4004, %v4374
      %v4383 = vadd.f32 %v4005, %v4375
      %v4384 = vadd.f32 %v4006, %v4376
      %v4385 = vadd.f32 %v4007, %v4377
      %v4386 = vadd.f32 %v4008, %v4378
      %v4387 = vadd.f32 %v4009, %v4379
      %v4388 = vadd.f32 %v4010, %v4380
      %v4389 = vadd.f32 %v4011, %v4381
      %v4390 = vmul.f32 %v3030, %v540
      %v4391 = vmul.f32 %v3033, %v540
      %v4392 = vmul.f32 %v3038, %v540
      %v4393 = vmul.f32 %v3041, %v540
      %v4394 = vmul.f32 %v3046, %v540
      %v4395 = vmul.f32 %v3049, %v540
      %v4396 = vmul.f32 %v3054, %v540
      %v4397 = vmul.f32 %v3057, %v540
      %v4399 = vsel %vm567, %v4390, 0
      %v4402 = vsel %vm567, %v4391, 0
      %v4405 = vsel %vm567, %v4392, 0
      %v4408 = vsel %vm567, %v4393, 0
      %v4411 = vsel %vm567, %v4394, 0
      %v4414 = vsel %vm567, %v4395, 0
      %v4417 = vsel %vm567, %v4396, 0
      %v4420 = vsel %vm567, %v4397, 0
      %4422 = vmatprep.subr.mxu0 0.0
      %4423 = vmatpush1.xpose.msra.mxu0 %v3265
      %4424 = vmatprep.subr.mxu0 0.0
      %4425 = vmatpush1.xpose.msra.mxu0 %v3268
      %4426 = vmatprep.subr.mxu0 0.0
      %4427 = vmatpush1.xpose.msra.mxu0 %v3271
      %4428 = vmatprep.subr.mxu0 0.0
      %4429 = vmatpush1.xpose.msra.mxu0 %v3274
      %4430 = vmatprep.subr.mxu0 0.0
      %4431 = vmatpush1.xpose.msra.mxu0 %v3277
      %4432 = vmatprep.subr.mxu0 0.0
      %4433 = vmatpush1.xpose.msra.mxu0 %v3280
      %4434 = vmatprep.subr.mxu0 0.0
      %4435 = vmatpush1.xpose.msra.mxu0 %v3283
      %4436 = vmatprep.subr.mxu0 0.0
      %4437 = vmatpush1.xpose.msra.mxu0 %v3286
      %4438 = vmatprep.subr.mxu0 0.0
      %4439 = vmatpush1.xpose.msra.mxu0 0.0
      %4440 = vmatprep.subr.mxu0 0.0
      %4441 = vmatpush1.xpose.msra.mxu0 0.0
      %4442 = vmatprep.subr.mxu0 0.0
      %4443 = vmatpush1.xpose.msra.mxu0 0.0
      %4444 = vmatprep.subr.mxu0 0.0
      %4445 = vmatpush1.xpose.msra.mxu0 0.0
      %4446 = vmatprep.subr.mxu0 0.0
      %4447 = vmatpush1.xpose.msra.mxu0 0.0
      %4448 = vmatprep.subr.mxu0 0.0
      %4449 = vmatpush1.xpose.msra.mxu0 0.0
      %4450 = vmatprep.subr.mxu0 0.0
      %4451 = vmatpush1.xpose.msra.mxu0 0.0
      %4452 = vmatprep.subr.mxu0 0.0
      %4453 = vmatpush1.xpose.msra.mxu0 0.0
      %4454 = vmatprep.subr.mxu0 0.0
      %4455 = vmatpush1.xpose.msra.mxu0 0.0
      %4456 = vmatprep.subr.mxu0 0.0
      %4457 = vmatpush1.xpose.msra.mxu0 0.0
      %4458 = vmatprep.subr.mxu0 0.0
      %4459 = vmatpush1.xpose.msra.mxu0 0.0
      %4460 = vmatprep.subr.mxu0 0.0
      %4461 = vmatpush1.xpose.msra.mxu0 0.0
      %4462 = vmatprep.subr.mxu0 0.0
      %4463 = vmatpush1.xpose.msra.mxu0 0.0
      %4464 = vmatprep.subr.mxu0 0.0
      %4465 = vmatpush1.xpose.msra.mxu0 0.0
      %4466 = vmatprep.subr.mxu0 0.0
      %4467 = vmatpush1.xpose.msra.mxu0 0.0
      %4468 = vmatprep.subr.mxu0 0.0
      %4469 = vmatpush1.xpose.msra.mxu0 0.0
      %4470 = vmatprep.subr.mxu0 0.0
      %4471 = vmatpush1.xpose.msra.mxu0 0.0
      %4472 = vmatprep.subr.mxu0 0.0
      %4473 = vmatpush1.xpose.msra.mxu0 0.0
      %4474 = vmatprep.subr.mxu0 0.0
      %4475 = vmatpush1.xpose.msra.mxu0 0.0
      %4476 = vmatprep.subr.mxu0 0.0
      %4477 = vmatpush1.xpose.msra.mxu0 0.0
      %4478 = vmatprep.subr.mxu0 0.0
      %4479 = vmatpush1.xpose.msra.mxu0 0.0
      %4480 = vmatprep.subr.mxu0 0.0
      %4481 = vmatpush1.xpose.msra.mxu0 0.0
      %4482 = vmatprep.subr.mxu0 0.0
      %4483 = vmatpush1.xpose.msra.mxu0 0.0
      %4484 = vmatprep.subr.mxu0 0.0
      %4485 = vmatpush1.xpose.msra.mxu0 0.0
      %4486 = vmatprep.mubr.f32.mxu0 0.0
      %4487 = vmatmul.mubr.f32.gmra.mrb[0].mxu0 %v4399
      %v4488 = vpop.f32.mrb[0].mxu0
      %v4489 = vadd.f32 0.0, %v4488
      %v4490 = vpop.f32.mrb[0].mxu0
      %4491 = vmatprep.mubr.f32.mxu0 0.0
      %4492 = vmatmul.mubr.f32.gmra.mrb[0].mxu0 %v4402
      %v4493 = vpop.f32.mrb[0].mxu0
      %v4494 = vadd.f32 0.0, %v4493
      %v4495 = vpop.f32.mrb[0].mxu0
      %4496 = vmatprep.mubr.f32.mxu0 0.0
      %4497 = vmatmul.mubr.f32.gmra.mrb[0].mxu0 %v4405
      %v4498 = vpop.f32.mrb[0].mxu0
      %v4499 = vadd.f32 0.0, %v4498
      %v4500 = vpop.f32.mrb[0].mxu0
      %4501 = vmatprep.mubr.f32.mxu0 0.0
      %4502 = vmatmul.mubr.f32.gmra.mrb[0].mxu0 %v4408
      %v4503 = vpop.f32.mrb[0].mxu0
      %v4504 = vadd.f32 0.0, %v4503
      %v4505 = vpop.f32.mrb[0].mxu0
      %4506 = vmatprep.mubr.f32.mxu0 0.0
      %4507 = vmatmul.mubr.f32.gmra.mrb[0].mxu0 %v4411
      %v4508 = vpop.f32.mrb[0].mxu0
      %v4509 = vadd.f32 0.0, %v4508
      %v4510 = vpop.f32.mrb[0].mxu0
      %4511 = vmatprep.mubr.f32.mxu0 0.0
      %4512 = vmatmul.mubr.f32.gmra.mrb[0].mxu0 %v4414
      %v4513 = vpop.f32.mrb[0].mxu0
      %v4514 = vadd.f32 0.0, %v4513
      %v4515 = vpop.f32.mrb[0].mxu0
      %4516 = vmatprep.mubr.f32.mxu0 0.0
      %4517 = vmatmul.mubr.f32.gmra.mrb[0].mxu0 %v4417
      %v4518 = vpop.f32.mrb[0].mxu0
      %v4519 = vadd.f32 0.0, %v4518
      %v4520 = vpop.f32.mrb[0].mxu0
      %4521 = vmatprep.mubr.f32.mxu0 0.0
      %4522 = vmatmul.mubr.f32.gmra.mrb[0].mxu0 %v4420
      %v4523 = vpop.f32.mrb[0].mxu0
      %v4524 = vadd.f32 0.0, %v4523
      %v4525 = vpop.f32.mrb[0].mxu0
      %4526 = vdwg.mxu0
      %v4527 = vmul.f32 %v4489, 0.35355338
      %v4528 = vmul.f32 %v4494, 0.35355338
      %v4529 = vmul.f32 %v4499, 0.35355338
      %v4530 = vmul.f32 %v4504, 0.35355338
      %v4531 = vmul.f32 %v4509, 0.35355338
      %v4532 = vmul.f32 %v4514, 0.35355338
      %v4533 = vmul.f32 %v4519, 0.35355338
      %v4534 = vmul.f32 %v4524, 0.35355338
      %v4535 = vmax.f32 %v4527, -5.0
      %v4536 = vmax.f32 %v4528, -5.0
      %v4537 = vmax.f32 %v4529, -5.0
      %v4538 = vmax.f32 %v4530, -5.0
      %v4539 = vmax.f32 %v4531, -5.0
      %v4540 = vmax.f32 %v4532, -5.0
      %v4541 = vmax.f32 %v4533, -5.0
      %v4542 = vmax.f32 %v4534, -5.0
      %v4543 = vmin.f32 %v4535, 5.0
      %v4544 = vmin.f32 %v4536, 5.0
      %v4545 = vmin.f32 %v4537, 5.0
      %v4546 = vmin.f32 %v4538, 5.0
      %v4547 = vmin.f32 %v4539, 5.0
      %v4548 = vmin.f32 %v4540, 5.0
      %v4549 = vmin.f32 %v4541, 5.0
      %v4550 = vmin.f32 %v4542, 5.0
      %v4551 = vmul.f32 %v4543, 1.442695
      %v4552 = vpow.pop %v4551
      %v4553 = vmul.f32 %v4544, 1.442695
      %v4554 = vpow.pop %v4553
      %v4555 = vmul.f32 %v4545, 1.442695
      %v4556 = vpow.pop %v4555
      %v4557 = vmul.f32 %v4546, 1.442695
      %v4558 = vpow.pop %v4557
      %v4559 = vmul.f32 %v4547, 1.442695
      %v4560 = vpow.pop %v4559
      %v4561 = vmul.f32 %v4548, 1.442695
      %v4562 = vpow.pop %v4561
      %v4563 = vmul.f32 %v4549, 1.442695
      %v4564 = vpow.pop %v4563
      %v4565 = vmul.f32 %v4550, 1.442695
      %v4566 = vpow.pop %v4565
      %v4567 = vmul.f32 %v4552, %v416
      %v4568 = vmul.f32 %v4554, %v417
      %v4569 = vmul.f32 %v4556, %v418
      %v4570 = vmul.f32 %v4558, %v419
      %v4571 = vmul.f32 %v4560, %v420
      %v4572 = vmul.f32 %v4562, %v421
      %v4573 = vmul.f32 %v4564, %v422
      %v4574 = vmul.f32 %v4566, %v423
      %v4576 = vsel %vm1026, %v4567, 0
      %v4579 = vsel %vm1026, %v4568, 0
      %v4582 = vsel %vm1026, %v4569, 0
      %v4585 = vsel %vm1026, %v4570, 0
      %v4588 = vsel %vm1026, %v4571, 0
      %v4591 = vsel %vm1026, %v4572, 0
      %v4594 = vsel %vm1026, %v4573, 0
      %v4597 = vsel %vm1026, %v4574, 0
      %4599 = vmatprep.subr.mxu0 0.0
      %4600 = vmatpush1.msra.mxu0 %v3202
      %4601 = vmatprep.subr.mxu0 0.0
      %4602 = vmatpush1.msra.mxu0 %v3205
      %4603 = vmatprep.subr.mxu0 0.0
      %4604 = vmatpush1.msra.mxu0 %v3210
      %4605 = vmatprep.subr.mxu0 0.0
      %4606 = vmatpush1.msra.mxu0 %v3213
      %4607 = vmatprep.subr.mxu0 0.0
      %4608 = vmatpush1.msra.mxu0 %v3218
      %4609 = vmatprep.subr.mxu0 0.0
      %4610 = vmatpush1.msra.mxu0 %v3221
      %4611 = vmatprep.subr.mxu0 0.0
      %4612 = vmatpush1.msra.mxu0 %v3226
      %4613 = vmatprep.subr.mxu0 0.0
      %4614 = vmatpush1.msra.mxu0 %v3229
      %4615 = vmatprep.subr.mxu0 0.0
      %4616 = vmatpush1.msra.mxu0 0.0
      %4617 = vmatprep.subr.mxu0 0.0
      %4618 = vmatpush1.msra.mxu0 0.0
      %4619 = vmatprep.subr.mxu0 0.0
      %4620 = vmatpush1.msra.mxu0 0.0
      %4621 = vmatprep.subr.mxu0 0.0
      %4622 = vmatpush1.msra.mxu0 0.0
      %4623 = vmatprep.subr.mxu0 0.0
      %4624 = vmatpush1.msra.mxu0 0.0
      %4625 = vmatprep.subr.mxu0 0.0
      %4626 = vmatpush1.msra.mxu0 0.0
      %4627 = vmatprep.subr.mxu0 0.0
      %4628 = vmatpush1.msra.mxu0 0.0
      %4629 = vmatprep.subr.mxu0 0.0
      %4630 = vmatpush1.msra.mxu0 0.0
      %4631 = vmatprep.subr.mxu0 0.0
      %4632 = vmatpush1.msra.mxu0 0.0
      %4633 = vmatprep.subr.mxu0 0.0
      %4634 = vmatpush1.msra.mxu0 0.0
      %4635 = vmatprep.subr.mxu0 0.0
      %4636 = vmatpush1.msra.mxu0 0.0
      %4637 = vmatprep.subr.mxu0 0.0
      %4638 = vmatpush1.msra.mxu0 0.0
      %4639 = vmatprep.subr.mxu0 0.0
      %4640 = vmatpush1.msra.mxu0 0.0
      %4641 = vmatprep.subr.mxu0 0.0
      %4642 = vmatpush1.msra.mxu0 0.0
      %4643 = vmatprep.subr.mxu0 0.0
      %4644 = vmatpush1.msra.mxu0 0.0
      %4645 = vmatprep.subr.mxu0 0.0
      %4646 = vmatpush1.msra.mxu0 0.0
      %4647 = vmatprep.subr.mxu0 0.0
      %4648 = vmatpush1.msra.mxu0 0.0
      %4649 = vmatprep.subr.mxu0 0.0
      %4650 = vmatpush1.msra.mxu0 0.0
      %4651 = vmatprep.subr.mxu0 0.0
      %4652 = vmatpush1.msra.mxu0 0.0
      %4653 = vmatprep.subr.mxu0 0.0
      %4654 = vmatpush1.msra.mxu0 0.0
      %4655 = vmatprep.subr.mxu0 0.0
      %4656 = vmatpush1.msra.mxu0 0.0
      %4657 = vmatprep.subr.mxu0 0.0
      %4658 = vmatpush1.msra.mxu0 0.0
      %4659 = vmatprep.subr.mxu0 0.0
      %4660 = vmatpush1.msra.mxu0 0.0
      %4661 = vmatprep.subr.mxu0 0.0
      %4662 = vmatpush1.msra.mxu0 0.0
      %4663 = vmatprep.mubr.f32.mxu0 0.0
      %4664 = vmatmul.mubr.f32.gmra.mrb[0].mxu0 %v4576
      %v4665 = vpop.f32.mrb[0].mxu0
      %v4666 = vadd.f32 0.0, %v4665
      %v4667 = vpop.f32.mrb[0].mxu0
      %4668 = vmatprep.mubr.f32.mxu0 0.0
      %4669 = vmatmul.mubr.f32.gmra.mrb[0].mxu0 %v4579
      %v4670 = vpop.f32.mrb[0].mxu0
      %v4671 = vadd.f32 0.0, %v4670
      %v4672 = vpop.f32.mrb[0].mxu0
      %4673 = vmatprep.mubr.f32.mxu0 0.0
      %4674 = vmatmul.mubr.f32.gmra.mrb[0].mxu0 %v4582
      %v4675 = vpop.f32.mrb[0].mxu0
      %v4676 = vadd.f32 0.0, %v4675
      %v4677 = vpop.f32.mrb[0].mxu0
      %4678 = vmatprep.mubr.f32.mxu0 0.0
      %4679 = vmatmul.mubr.f32.gmra.mrb[0].mxu0 %v4585
      %v4680 = vpop.f32.mrb[0].mxu0
      %v4681 = vadd.f32 0.0, %v4680
      %v4682 = vpop.f32.mrb[0].mxu0
      %4683 = vmatprep.mubr.f32.mxu0 0.0
      %4684 = vmatmul.mubr.f32.gmra.mrb[0].mxu0 %v4588
      %v4685 = vpop.f32.mrb[0].mxu0
      %v4686 = vadd.f32 0.0, %v4685
      %v4687 = vpop.f32.mrb[0].mxu0
      %4688 = vmatprep.mubr.f32.mxu0 0.0
      %4689 = vmatmul.mubr.f32.gmra.mrb[0].mxu0 %v4591
      %v4690 = vpop.f32.mrb[0].mxu0
      %v4691 = vadd.f32 0.0, %v4690
      %v4692 = vpop.f32.mrb[0].mxu0
      %4693 = vmatprep.mubr.f32.mxu0 0.0
      %4694 = vmatmul.mubr.f32.gmra.mrb[0].mxu0 %v4594
      %v4695 = vpop.f32.mrb[0].mxu0
      %v4696 = vadd.f32 0.0, %v4695
      %v4697 = vpop.f32.mrb[0].mxu0
      %4698 = vmatprep.mubr.f32.mxu0 0.0
      %4699 = vmatmul.mubr.f32.gmra.mrb[0].mxu0 %v4597
      %v4700 = vpop.f32.mrb[0].mxu0
      %v4701 = vadd.f32 0.0, %v4700
      %v4702 = vpop.f32.mrb[0].mxu0
      %4703 = vdwg.mxu0
      %v4704 = vsel %vm1026, %v4567, 0.0
      %4705 = vadd.xlane.f32.xlu0 %v4704
      %v4706 = vpop.xlane.xlu0 %4705
      %v4707 = vsel %vm1026, %v4568, 0.0
      %4708 = vadd.xlane.f32.xlu0 %v4707
      %v4709 = vpop.xlane.xlu0 %4708
      %v4710 = vsel %vm1026, %v4569, 0.0
      %4711 = vadd.xlane.f32.xlu0 %v4710
      %v4712 = vpop.xlane.xlu0 %4711
      %v4713 = vsel %vm1026, %v4570, 0.0
      %4714 = vadd.xlane.f32.xlu0 %v4713
      %v4715 = vpop.xlane.xlu0 %4714
      %v4716 = vsel %vm1026, %v4571, 0.0
      %4717 = vadd.xlane.f32.xlu0 %v4716
      %v4718 = vpop.xlane.xlu0 %4717
      %v4719 = vsel %vm1026, %v4572, 0.0
      %4720 = vadd.xlane.f32.xlu0 %v4719
      %v4721 = vpop.xlane.xlu0 %4720
      %v4722 = vsel %vm1026, %v4573, 0.0
      %4723 = vadd.xlane.f32.xlu0 %v4722
      %v4724 = vpop.xlane.xlu0 %4723
      %v4725 = vsel %vm1026, %v4574, 0.0
      %4726 = vadd.xlane.f32.xlu0 %v4725
      %v4727 = vpop.xlane.xlu0 %4726
      %v4728 = vadd.f32 %v4706, 1e-06
      %v4729 = vadd.f32 %v4709, 1e-06
      %v4730 = vadd.f32 %v4712, 1e-06
      %v4731 = vadd.f32 %v4715, 1e-06
      %v4732 = vadd.f32 %v4718, 1e-06
      %v4733 = vadd.f32 %v4721, 1e-06
      %v4734 = vadd.f32 %v4724, 1e-06
      %v4735 = vadd.f32 %v4727, 1e-06
      %v4736 = vrcp.pop %v4728
      %v4737 = vrcp.pop %v4729
      %v4738 = vrcp.pop %v4730
      %v4739 = vrcp.pop %v4731
      %v4740 = vrcp.pop %v4732
      %v4741 = vrcp.pop %v4733
      %v4742 = vrcp.pop %v4734
      %v4743 = vrcp.pop %v4735
      %v4744 = vmul.f32 %v4666, %v4736
      %v4745 = vmul.f32 %v4671, %v4737
      %v4746 = vmul.f32 %v4676, %v4738
      %v4747 = vmul.f32 %v4681, %v4739
      %v4748 = vmul.f32 %v4686, %v4740
      %v4749 = vmul.f32 %v4691, %v4741
      %v4750 = vmul.f32 %v4696, %v4742
      %v4751 = vmul.f32 %v4701, %v4743
      %v4752 = vmul.f32 %v4744, %v540
      %v4753 = vmul.f32 %v4745, %v540
      %v4754 = vmul.f32 %v4746, %v540
      %v4755 = vmul.f32 %v4747, %v540
      %v4756 = vmul.f32 %v4748, %v540
      %v4757 = vmul.f32 %v4749, %v540
      %v4758 = vmul.f32 %v4750, %v540
      %v4759 = vmul.f32 %v4751, %v540
      %v4760 = vadd.f32 %v4382, %v4752
      %v4761 = vadd.f32 %v4383, %v4753
      %v4762 = vadd.f32 %v4384, %v4754
      %v4763 = vadd.f32 %v4385, %v4755
      %v4764 = vadd.f32 %v4386, %v4756
      %v4765 = vadd.f32 %v4387, %v4757
      %v4766 = vadd.f32 %v4388, %v4758
      %v4767 = vadd.f32 %v4389, %v4759
      %v4768 = vpack.c.bf16 %v4761, %v4760
      %v4769 = vpack.c.bf16 %v4763, %v4762
      %v4770 = vpack.c.bf16 %v4765, %v4764
      %v4771 = vpack.c.bf16 %v4767, %v4766
      %s4772 = scalar_lea.vmem %s4, 112
      %v4773 = vld [vmem:[%s4772] sm:$0xf]
      %v4774 = vld [vmem:[%s4772 + $0x4] sm:$0xf]
      %v4775 = vld [vmem:[%s4772 + $0x8] sm:$0xf]
      %v4776 = vld [vmem:[%s4772 + $0xc] sm:$0xf]
      %v4777 = vlaneseq
      %v4778 = vshrl.u32 %v4777, 7
      %v4779 = vsub.s32 3, %v4778
      %v4780 = vrot.slane %v2956, %v4779
      %v4785 = vunpack.c.l.b16 %v4773
      %v4786 = vunpack.c.l.b16 %v4774
      %v4787 = vunpack.c.l.b16 %v4775
      %v4788 = vunpack.c.l.b16 %v4776
      %v4789 = vpack.c.b16 %v4786, %v4785
      %v4790 = vpack.c.b16 %v4788, %v4787
      %v4794 = vsel %vm567, %v4768, 0
      %v4797 = vsel %vm567, %v4769, 0
      %v4800 = vsel %vm567, %v4770, 0
      %v4803 = vsel %vm567, %v4771, 0
      %4805 = vmatprep.subr.bf16.mxu0 0
      %4806 = vmatpush1.bf16.msra.mxu0 %v4789
      %4807 = vmatprep.subr.bf16.mxu0 0
      %4808 = vmatpush1.bf16.msra.mxu0 %v4790
      %4809 = vmatprep.subr.bf16.mxu0 0
      %4810 = vmatpush1.bf16.msra.mxu0 0
      %4811 = vmatprep.subr.bf16.mxu0 0
      %4812 = vmatpush1.bf16.msra.mxu0 0
      %4813 = vmatprep.subr.bf16.mxu0 0
      %4814 = vmatpush1.bf16.msra.mxu0 0
      %4815 = vmatprep.subr.bf16.mxu0 0
      %4816 = vmatpush1.bf16.msra.mxu0 0
      %4817 = vmatprep.subr.bf16.mxu0 0
      %4818 = vmatpush1.bf16.msra.mxu0 0
      %4819 = vmatprep.subr.bf16.mxu0 0
      %4820 = vmatpush1.bf16.msra.mxu0 0
      %4821 = vmatprep.subr.bf16.mxu0 0
      %4822 = vmatpush1.bf16.msra.mxu0 0
      %4823 = vmatprep.subr.bf16.mxu0 0
      %4824 = vmatpush1.bf16.msra.mxu0 0
      %4825 = vmatprep.subr.bf16.mxu0 0
      %4826 = vmatpush1.bf16.msra.mxu0 0
      %4827 = vmatprep.subr.bf16.mxu0 0
      %4828 = vmatpush1.bf16.msra.mxu0 0
      %4829 = vmatprep.subr.bf16.mxu0 0
      %4830 = vmatpush1.bf16.msra.mxu0 0
      %4831 = vmatprep.subr.bf16.mxu0 0
      %4832 = vmatpush1.bf16.msra.mxu0 0
      %4833 = vmatprep.subr.bf16.mxu0 0
      %4834 = vmatpush1.bf16.msra.mxu0 0
      %4835 = vmatprep.subr.bf16.mxu0 0
      %4836 = vmatpush1.bf16.msra.mxu0 0
      %4837 = vmatprep.mubr.bf16.mxu0 0
      %4838 = vmatmul.mubr.bf16.gmra.mrb[0].mxu0 %v4794
      %v4839 = vpop.f32.mrb[0].mxu0
      %v4840 = vadd.f32 %v4780, %v4839
      %v4841 = vpop.f32.mrb[0].mxu0
      %v4842 = vpop.f32.mrb[0].mxu0
      %v4843 = vadd.f32 %v4780, %v4842
      %v4844 = vpop.f32.mrb[0].mxu0
      %4845 = vmatprep.mubr.bf16.mxu0 0
      %4846 = vmatmul.mubr.bf16.gmra.mrb[0].mxu0 %v4797
      %v4847 = vpop.f32.mrb[0].mxu0
      %v4848 = vadd.f32 %v4780, %v4847
      %v4849 = vpop.f32.mrb[0].mxu0
      %v4850 = vpop.f32.mrb[0].mxu0
      %v4851 = vadd.f32 %v4780, %v4850
      %v4852 = vpop.f32.mrb[0].mxu0
      %4853 = vmatprep.mubr.bf16.mxu0 0
      %4854 = vmatmul.mubr.bf16.gmra.mrb[0].mxu0 %v4800
      %v4855 = vpop.f32.mrb[0].mxu0
      %v4856 = vadd.f32 %v4780, %v4855
      %v4857 = vpop.f32.mrb[0].mxu0
      %v4858 = vpop.f32.mrb[0].mxu0
      %v4859 = vadd.f32 %v4780, %v4858
      %v4860 = vpop.f32.mrb[0].mxu0
      %4861 = vmatprep.mubr.bf16.mxu0 0
      %4862 = vmatmul.mubr.bf16.gmra.mrb[0].mxu0 %v4803
      %v4863 = vpop.f32.mrb[0].mxu0
      %v4864 = vadd.f32 %v4780, %v4863
      %v4865 = vpop.f32.mrb[0].mxu0
      %v4866 = vpop.f32.mrb[0].mxu0
      %v4867 = vadd.f32 %v4780, %v4866
      %v4868 = vpop.f32.mrb[0].mxu0
      %4869 = vdwg.mxu0
      %v4870 = vadd.f32 %v2947, %v4840
      %v4871 = vadd.f32 %v2948, %v4843
      %v4872 = vadd.f32 %v2949, %v4848
      %v4873 = vadd.f32 %v2950, %v4851
      %v4874 = vadd.f32 %v2951, %v4856
      %v4875 = vadd.f32 %v2952, %v4859
      %v4876 = vadd.f32 %v2953, %v4864
      %v4877 = vadd.f32 %v2954, %v4867
      %v4878 = vsel %vm567, %v4870, 0.0
      %4879 = vadd.xlane.f32.xlu0 %v4878
      %v4880 = vpop.xlane.xlu0 %4879
      %v4881 = vsel %vm567, %v4871, 0.0
      %4882 = vadd.xlane.f32.xlu0 %v4881
      %v4883 = vpop.xlane.xlu0 %4882
      %v4884 = vsel %vm567, %v4872, 0.0
      %4885 = vadd.xlane.f32.xlu0 %v4884
      %v4886 = vpop.xlane.xlu0 %4885
      %v4887 = vsel %vm567, %v4873, 0.0
      %4888 = vadd.xlane.f32.xlu0 %v4887
      %v4889 = vpop.xlane.xlu0 %4888
      %v4890 = vsel %vm567, %v4874, 0.0
      %4891 = vadd.xlane.f32.xlu0 %v4890
      %v4892 = vpop.xlane.xlu0 %4891
      %v4893 = vsel %vm567, %v4875, 0.0
      %4894 = vadd.xlane.f32.xlu0 %v4893
      %v4895 = vpop.xlane.xlu0 %4894
      %v4896 = vsel %vm567, %v4876, 0.0
      %4897 = vadd.xlane.f32.xlu0 %v4896
      %v4898 = vpop.xlane.xlu0 %4897
      %v4899 = vsel %vm567, %v4877, 0.0
      %4900 = vadd.xlane.f32.xlu0 %v4899
      %v4901 = vpop.xlane.xlu0 %4900
      %v4902 = vmul.f32 %v4880, %v2488
      %v4903 = vmul.f32 %v4883, %v2488
      %v4904 = vmul.f32 %v4886, %v2488
      %v4905 = vmul.f32 %v4889, %v2488
      %v4906 = vmul.f32 %v4892, %v2488
      %v4907 = vmul.f32 %v4895, %v2488
      %v4908 = vmul.f32 %v4898, %v2488
      %v4909 = vmul.f32 %v4901, %v2488
      %v4910 = vsub.f32 %v4870, %v4902
      %v4911 = vsub.f32 %v4871, %v4903
      %v4912 = vsub.f32 %v4872, %v4904
      %v4913 = vsub.f32 %v4873, %v4905
      %v4914 = vsub.f32 %v4874, %v4906
      %v4915 = vsub.f32 %v4875, %v4907
      %v4916 = vsub.f32 %v4876, %v4908
      %v4917 = vsub.f32 %v4877, %v4909
      %v4918 = vmul.f32 %v4910, %v4910
      %v4919 = vmul.f32 %v4911, %v4911
      %v4920 = vmul.f32 %v4912, %v4912
      %v4921 = vmul.f32 %v4913, %v4913
      %v4922 = vmul.f32 %v4914, %v4914
      %v4923 = vmul.f32 %v4915, %v4915
      %v4924 = vmul.f32 %v4916, %v4916
      %v4925 = vmul.f32 %v4917, %v4917
      %v4926 = vsel %vm567, %v4918, 0.0
      %4927 = vadd.xlane.f32.xlu0 %v4926
      %v4928 = vpop.xlane.xlu0 %4927
      %v4929 = vsel %vm567, %v4919, 0.0
      %4930 = vadd.xlane.f32.xlu0 %v4929
      %v4931 = vpop.xlane.xlu0 %4930
      %v4932 = vsel %vm567, %v4920, 0.0
      %4933 = vadd.xlane.f32.xlu0 %v4932
      %v4934 = vpop.xlane.xlu0 %4933
      %v4935 = vsel %vm567, %v4921, 0.0
      %4936 = vadd.xlane.f32.xlu0 %v4935
      %v4937 = vpop.xlane.xlu0 %4936
      %v4938 = vsel %vm567, %v4922, 0.0
      %4939 = vadd.xlane.f32.xlu0 %v4938
      %v4940 = vpop.xlane.xlu0 %4939
      %v4941 = vsel %vm567, %v4923, 0.0
      %4942 = vadd.xlane.f32.xlu0 %v4941
      %v4943 = vpop.xlane.xlu0 %4942
      %v4944 = vsel %vm567, %v4924, 0.0
      %4945 = vadd.xlane.f32.xlu0 %v4944
      %v4946 = vpop.xlane.xlu0 %4945
      %v4947 = vsel %vm567, %v4925, 0.0
      %4948 = vadd.xlane.f32.xlu0 %v4947
      %v4949 = vpop.xlane.xlu0 %4948
      %v4950 = vmul.f32 %v4928, %v2488
      %v4951 = vmul.f32 %v4931, %v2488
      %v4952 = vmul.f32 %v4934, %v2488
      %v4953 = vmul.f32 %v4937, %v2488
      %v4954 = vmul.f32 %v4940, %v2488
      %v4955 = vmul.f32 %v4943, %v2488
      %v4956 = vmul.f32 %v4946, %v2488
      %v4957 = vmul.f32 %v4949, %v2488
      %v4958 = vadd.f32 %v4950, 1e-05
      %v4959 = vadd.f32 %v4951, 1e-05
      %v4960 = vadd.f32 %v4952, 1e-05
      %v4961 = vadd.f32 %v4953, 1e-05
      %v4962 = vadd.f32 %v4954, 1e-05
      %v4963 = vadd.f32 %v4955, 1e-05
      %v4964 = vadd.f32 %v4956, 1e-05
      %v4965 = vadd.f32 %v4957, 1e-05
      %v4966 = vrsqrt.pop %v4958
      %v4967 = vrsqrt.pop %v4959
      %v4968 = vrsqrt.pop %v4960
      %v4969 = vrsqrt.pop %v4961
      %v4970 = vrsqrt.pop %v4962
      %v4971 = vrsqrt.pop %v4963
      %v4972 = vrsqrt.pop %v4964
      %v4973 = vrsqrt.pop %v4965
      %v4974 = vmul.f32 %v4910, %v4966
      %v4975 = vmul.f32 %v4911, %v4967
      %v4976 = vmul.f32 %v4912, %v4968
      %v4977 = vmul.f32 %v4913, %v4969
      %v4978 = vmul.f32 %v4914, %v4970
      %v4979 = vmul.f32 %v4915, %v4971
      %v4980 = vmul.f32 %v4916, %v4972
      %v4981 = vmul.f32 %v4917, %v4973
      %v4982 = vlaneseq
      %v4983 = vshrl.u32 %v4982, 7
      %v4984 = vsub.s32 6, %v4983
      %v4985 = vrot.slane %v2956, %v4984
      %v4986 = vmul.f32 %v4974, %v4985
      %v4987 = vmul.f32 %v4975, %v4985
      %v4988 = vmul.f32 %v4976, %v4985
      %v4989 = vmul.f32 %v4977, %v4985
      %v4990 = vmul.f32 %v4978, %v4985
      %v4991 = vmul.f32 %v4979, %v4985
      %v4992 = vmul.f32 %v4980, %v4985
      %v4993 = vmul.f32 %v4981, %v4985
      %v4994 = vlaneseq
      %v4995 = vshrl.u32 %v4994, 7
      %v4996 = vsub.s32 7, %v4995
      %v4997 = vrot.slane %v2956, %v4996
      %v4998 = vadd.f32 %v4986, %v4997
      %v4999 = vadd.f32 %v4987, %v4997
      %v5000 = vadd.f32 %v4988, %v4997
      %v5001 = vadd.f32 %v4989, %v4997
      %v5002 = vadd.f32 %v4990, %v4997
      %v5003 = vadd.f32 %v4991, %v4997
      %v5004 = vadd.f32 %v4992, %v4997
      %v5005 = vadd.f32 %v4993, %v4997
      %v5006 = vpack.c.bf16 %v4999, %v4998
      %v5007 = vpack.c.bf16 %v5001, %v5000
      %v5008 = vpack.c.bf16 %v5003, %v5002
      %v5009 = vpack.c.bf16 %v5005, %v5004
      %s5010 = scalar_lea.vmem %s5, 16
      %v5011 = vld [vmem:[%s5010] sm:$0xf]
      %v5012 = vld [vmem:[%s5010 + $0x4] sm:$0xf]
      %v5013 = vld [vmem:[%s5010 + $0x8] sm:$0xf]
      %v5014 = vld [vmem:[%s5010 + $0xc] sm:$0xf]
      %v5015 = vlaneseq
      %v5016 = vshrl.u32 %v5015, 7
      %v5017 = vsub.s32 4, %v5016
      %v5018 = vrot.slane %v2956, %v5017
      %v5023 = vunpack.c.l.b16 %v5011
      %v5024 = vunpack.c.l.b16 %v5012
      %v5025 = vunpack.c.l.b16 %v5013
      %v5026 = vunpack.c.l.b16 %v5014
      %v5027 = vpack.c.b16 %v5024, %v5023
      %v5028 = vpack.c.b16 %v5026, %v5025
      %v5032 = vsel %vm567, %v5006, 0
      %v5035 = vsel %vm567, %v5007, 0
      %v5038 = vsel %vm567, %v5008, 0
      %v5041 = vsel %vm567, %v5009, 0
      %5043 = vmatprep.subr.bf16.mxu0 0
      %5044 = vmatpush1.bf16.msra.mxu0 %v5027
      %5045 = vmatprep.subr.bf16.mxu0 0
      %5046 = vmatpush1.bf16.msra.mxu0 %v5028
      %5047 = vmatprep.subr.bf16.mxu0 0
      %5048 = vmatpush1.bf16.msra.mxu0 0
      %5049 = vmatprep.subr.bf16.mxu0 0
      %5050 = vmatpush1.bf16.msra.mxu0 0
      %5051 = vmatprep.subr.bf16.mxu0 0
      %5052 = vmatpush1.bf16.msra.mxu0 0
      %5053 = vmatprep.subr.bf16.mxu0 0
      %5054 = vmatpush1.bf16.msra.mxu0 0
      %5055 = vmatprep.subr.bf16.mxu0 0
      %5056 = vmatpush1.bf16.msra.mxu0 0
      %5057 = vmatprep.subr.bf16.mxu0 0
      %5058 = vmatpush1.bf16.msra.mxu0 0
      %5059 = vmatprep.subr.bf16.mxu0 0
      %5060 = vmatpush1.bf16.msra.mxu0 0
      %5061 = vmatprep.subr.bf16.mxu0 0
      %5062 = vmatpush1.bf16.msra.mxu0 0
      %5063 = vmatprep.subr.bf16.mxu0 0
      %5064 = vmatpush1.bf16.msra.mxu0 0
      %5065 = vmatprep.subr.bf16.mxu0 0
      %5066 = vmatpush1.bf16.msra.mxu0 0
      %5067 = vmatprep.subr.bf16.mxu0 0
      %5068 = vmatpush1.bf16.msra.mxu0 0
      %5069 = vmatprep.subr.bf16.mxu0 0
      %5070 = vmatpush1.bf16.msra.mxu0 0
      %5071 = vmatprep.subr.bf16.mxu0 0
      %5072 = vmatpush1.bf16.msra.mxu0 0
      %5073 = vmatprep.subr.bf16.mxu0 0
      %5074 = vmatpush1.bf16.msra.mxu0 0
      %5075 = vmatprep.mubr.bf16.mxu0 0
      %5076 = vmatmul.mubr.bf16.gmra.mrb[0].mxu0 %v5032
      %v5077 = vpop.f32.mrb[0].mxu0
      %v5078 = vadd.f32 %v5018, %v5077
      %v5079 = vpop.f32.mrb[0].mxu0
      %v5080 = vpop.f32.mrb[0].mxu0
      %v5081 = vadd.f32 %v5018, %v5080
      %v5082 = vpop.f32.mrb[0].mxu0
      %5083 = vmatprep.mubr.bf16.mxu0 0
      %5084 = vmatmul.mubr.bf16.gmra.mrb[0].mxu0 %v5035
      %v5085 = vpop.f32.mrb[0].mxu0
      %v5086 = vadd.f32 %v5018, %v5085
      %v5087 = vpop.f32.mrb[0].mxu0
      %v5088 = vpop.f32.mrb[0].mxu0
      %v5089 = vadd.f32 %v5018, %v5088
      %v5090 = vpop.f32.mrb[0].mxu0
      %5091 = vmatprep.mubr.bf16.mxu0 0
      %5092 = vmatmul.mubr.bf16.gmra.mrb[0].mxu0 %v5038
      %v5093 = vpop.f32.mrb[0].mxu0
      %v5094 = vadd.f32 %v5018, %v5093
      %v5095 = vpop.f32.mrb[0].mxu0
      %v5096 = vpop.f32.mrb[0].mxu0
      %v5097 = vadd.f32 %v5018, %v5096
      %v5098 = vpop.f32.mrb[0].mxu0
      %5099 = vmatprep.mubr.bf16.mxu0 0
      %5100 = vmatmul.mubr.bf16.gmra.mrb[0].mxu0 %v5041
      %v5101 = vpop.f32.mrb[0].mxu0
      %v5102 = vadd.f32 %v5018, %v5101
      %v5103 = vpop.f32.mrb[0].mxu0
      %v5104 = vpop.f32.mrb[0].mxu0
      %v5105 = vadd.f32 %v5018, %v5104
      %v5106 = vpop.f32.mrb[0].mxu0
      %5107 = vdwg.mxu0
      %v5108 = vmax.f32 %v5078, 0.0
      %v5109 = vmax.f32 %v5081, 0.0
      %v5110 = vmax.f32 %v5086, 0.0
      %v5111 = vmax.f32 %v5089, 0.0
      %v5112 = vmax.f32 %v5094, 0.0
      %v5113 = vmax.f32 %v5097, 0.0
      %v5114 = vmax.f32 %v5102, 0.0
      %v5115 = vmax.f32 %v5105, 0.0
      %v5116 = vpack.c.bf16 %v5109, %v5108
      %v5117 = vpack.c.bf16 %v5111, %v5110
      %v5118 = vpack.c.bf16 %v5113, %v5112
      %v5119 = vpack.c.bf16 %v5115, %v5114
      %s5120 = scalar_lea.vmem %s6, 32
      %v5121 = vld [vmem:[%s5120] sm:$0xf]
      %v5122 = vld [vmem:[%s5120 + $0x4] sm:$0xf]
      %v5123 = vld [vmem:[%s5120 + $0x8] sm:$0xf]
      %v5124 = vld [vmem:[%s5120 + $0xc] sm:$0xf]
      %v5125 = vld [vmem:[%s5120 + $0x10] sm:$0xf]
      %v5126 = vld [vmem:[%s5120 + $0x14] sm:$0xf]
      %v5127 = vld [vmem:[%s5120 + $0x18] sm:$0xf]
      %v5128 = vld [vmem:[%s5120 + $0x1c] sm:$0xf]
      %v5129 = vlaneseq
      %v5130 = vshrl.u32 %v5129, 7
      %v5131 = vsub.s32 5, %v5130
      %v5132 = vrot.slane %v2956, %v5131
      %v5141 = vunpack.c.l.b16 %v5121
      %v5142 = vunpack.c.l.b16 %v5122
      %v5143 = vunpack.c.l.b16 %v5123
      %v5144 = vunpack.c.l.b16 %v5124
      %v5145 = vunpack.c.l.b16 %v5125
      %v5146 = vunpack.c.l.b16 %v5126
      %v5147 = vunpack.c.l.b16 %v5127
      %v5148 = vunpack.c.l.b16 %v5128
      %v5149 = vpack.c.b16 %v5142, %v5141
      %v5150 = vpack.c.b16 %v5144, %v5143
      %v5151 = vpack.c.b16 %v5146, %v5145
      %v5152 = vpack.c.b16 %v5148, %v5147
      %v5158 = vsel %vm1026, %v5116, 0
      %v5161 = vsel %vm1026, %v5117, 0
      %v5164 = vsel %vm1026, %v5118, 0
      %v5167 = vsel %vm1026, %v5119, 0
      %5169 = vmatprep.subr.bf16.mxu0 0
      %5170 = vmatpush1.bf16.msra.mxu0 %v5149
      %5171 = vmatprep.subr.bf16.mxu0 0
      %5172 = vmatpush1.bf16.msra.mxu0 %v5150
      %5173 = vmatprep.subr.bf16.mxu0 0
      %5174 = vmatpush1.bf16.msra.mxu0 %v5151
      %5175 = vmatprep.subr.bf16.mxu0 0
      %5176 = vmatpush1.bf16.msra.mxu0 %v5152
      %5177 = vmatprep.subr.bf16.mxu0 0
      %5178 = vmatpush1.bf16.msra.mxu0 0
      %5179 = vmatprep.subr.bf16.mxu0 0
      %5180 = vmatpush1.bf16.msra.mxu0 0
      %5181 = vmatprep.subr.bf16.mxu0 0
      %5182 = vmatpush1.bf16.msra.mxu0 0
      %5183 = vmatprep.subr.bf16.mxu0 0
      %5184 = vmatpush1.bf16.msra.mxu0 0
      %5185 = vmatprep.subr.bf16.mxu0 0
      %5186 = vmatpush1.bf16.msra.mxu0 0
      %5187 = vmatprep.subr.bf16.mxu0 0
      %5188 = vmatpush1.bf16.msra.mxu0 0
      %5189 = vmatprep.subr.bf16.mxu0 0
      %5190 = vmatpush1.bf16.msra.mxu0 0
      %5191 = vmatprep.subr.bf16.mxu0 0
      %5192 = vmatpush1.bf16.msra.mxu0 0
      %5193 = vmatprep.subr.bf16.mxu0 0
      %5194 = vmatpush1.bf16.msra.mxu0 0
      %5195 = vmatprep.subr.bf16.mxu0 0
      %5196 = vmatpush1.bf16.msra.mxu0 0
      %5197 = vmatprep.subr.bf16.mxu0 0
      %5198 = vmatpush1.bf16.msra.mxu0 0
      %5199 = vmatprep.subr.bf16.mxu0 0
      %5200 = vmatpush1.bf16.msra.mxu0 0
      %5201 = vmatprep.mubr.bf16.mxu0 0
      %5202 = vmatmul.mubr.bf16.gmra.mrb[0].mxu0 %v5158
      %v5203 = vpop.f32.mrb[0].mxu0
      %v5204 = vadd.f32 %v5132, %v5203
      %v5205 = vpop.f32.mrb[0].mxu0
      %v5206 = vpop.f32.mrb[0].mxu0
      %v5207 = vadd.f32 %v5132, %v5206
      %v5208 = vpop.f32.mrb[0].mxu0
      %5209 = vmatprep.mubr.bf16.mxu0 0
      %5210 = vmatmul.mubr.bf16.gmra.mrb[0].mxu0 %v5161
      %v5211 = vpop.f32.mrb[0].mxu0
      %v5212 = vadd.f32 %v5132, %v5211
      %v5213 = vpop.f32.mrb[0].mxu0
      %v5214 = vpop.f32.mrb[0].mxu0
      %v5215 = vadd.f32 %v5132, %v5214
      %v5216 = vpop.f32.mrb[0].mxu0
      %5217 = vmatprep.mubr.bf16.mxu0 0
      %5218 = vmatmul.mubr.bf16.gmra.mrb[0].mxu0 %v5164
      %v5219 = vpop.f32.mrb[0].mxu0
      %v5220 = vadd.f32 %v5132, %v5219
      %v5221 = vpop.f32.mrb[0].mxu0
      %v5222 = vpop.f32.mrb[0].mxu0
      %v5223 = vadd.f32 %v5132, %v5222
      %v5224 = vpop.f32.mrb[0].mxu0
      %5225 = vmatprep.mubr.bf16.mxu0 0
      %5226 = vmatmul.mubr.bf16.gmra.mrb[0].mxu0 %v5167
      %v5227 = vpop.f32.mrb[0].mxu0
      %v5228 = vadd.f32 %v5132, %v5227
      %v5229 = vpop.f32.mrb[0].mxu0
      %v5230 = vpop.f32.mrb[0].mxu0
      %v5231 = vadd.f32 %v5132, %v5230
      %v5232 = vpop.f32.mrb[0].mxu0
      %5233 = vdwg.mxu0
      %v5234 = vadd.f32 %v4998, %v5204
      %v5235 = vadd.f32 %v4999, %v5207
      %v5236 = vadd.f32 %v5000, %v5212
      %v5237 = vadd.f32 %v5001, %v5215
      %v5238 = vadd.f32 %v5002, %v5220
      %v5239 = vadd.f32 %v5003, %v5223
      %v5240 = vadd.f32 %v5004, %v5228
      %v5241 = vadd.f32 %v5005, %v5231
      %v5242 = vsel %vm567, %v5234, 0.0
      %5243 = vadd.xlane.f32.xlu0 %v5242
      %v5244 = vpop.xlane.xlu0 %5243
      %v5245 = vsel %vm567, %v5235, 0.0
      %5246 = vadd.xlane.f32.xlu0 %v5245
      %v5247 = vpop.xlane.xlu0 %5246
      %v5248 = vsel %vm567, %v5236, 0.0
      %5249 = vadd.xlane.f32.xlu0 %v5248
      %v5250 = vpop.xlane.xlu0 %5249
      %v5251 = vsel %vm567, %v5237, 0.0
      %5252 = vadd.xlane.f32.xlu0 %v5251
      %v5253 = vpop.xlane.xlu0 %5252
      %v5254 = vsel %vm567, %v5238, 0.0
      %5255 = vadd.xlane.f32.xlu0 %v5254
      %v5256 = vpop.xlane.xlu0 %5255
      %v5257 = vsel %vm567, %v5239, 0.0
      %5258 = vadd.xlane.f32.xlu0 %v5257
      %v5259 = vpop.xlane.xlu0 %5258
      %v5260 = vsel %vm567, %v5240, 0.0
      %5261 = vadd.xlane.f32.xlu0 %v5260
      %v5262 = vpop.xlane.xlu0 %5261
      %v5263 = vsel %vm567, %v5241, 0.0
      %5264 = vadd.xlane.f32.xlu0 %v5263
      %v5265 = vpop.xlane.xlu0 %5264
      %v5266 = vmul.f32 %v5244, %v2488
      %v5267 = vmul.f32 %v5247, %v2488
      %v5268 = vmul.f32 %v5250, %v2488
      %v5269 = vmul.f32 %v5253, %v2488
      %v5270 = vmul.f32 %v5256, %v2488
      %v5271 = vmul.f32 %v5259, %v2488
      %v5272 = vmul.f32 %v5262, %v2488
      %v5273 = vmul.f32 %v5265, %v2488
      %v5274 = vsub.f32 %v5234, %v5266
      %v5275 = vsub.f32 %v5235, %v5267
      %v5276 = vsub.f32 %v5236, %v5268
      %v5277 = vsub.f32 %v5237, %v5269
      %v5278 = vsub.f32 %v5238, %v5270
      %v5279 = vsub.f32 %v5239, %v5271
      %v5280 = vsub.f32 %v5240, %v5272
      %v5281 = vsub.f32 %v5241, %v5273
      %v5282 = vmul.f32 %v5274, %v5274
      %v5283 = vmul.f32 %v5275, %v5275
      %v5284 = vmul.f32 %v5276, %v5276
      %v5285 = vmul.f32 %v5277, %v5277
      %v5286 = vmul.f32 %v5278, %v5278
      %v5287 = vmul.f32 %v5279, %v5279
      %v5288 = vmul.f32 %v5280, %v5280
      %v5289 = vmul.f32 %v5281, %v5281
      %v5290 = vsel %vm567, %v5282, 0.0
      %5291 = vadd.xlane.f32.xlu0 %v5290
      %v5292 = vpop.xlane.xlu0 %5291
      %v5293 = vsel %vm567, %v5283, 0.0
      %5294 = vadd.xlane.f32.xlu0 %v5293
      %v5295 = vpop.xlane.xlu0 %5294
      %v5296 = vsel %vm567, %v5284, 0.0
      %5297 = vadd.xlane.f32.xlu0 %v5296
      %v5298 = vpop.xlane.xlu0 %5297
      %v5299 = vsel %vm567, %v5285, 0.0
      %5300 = vadd.xlane.f32.xlu0 %v5299
      %v5301 = vpop.xlane.xlu0 %5300
      %v5302 = vsel %vm567, %v5286, 0.0
      %5303 = vadd.xlane.f32.xlu0 %v5302
      %v5304 = vpop.xlane.xlu0 %5303
      %v5305 = vsel %vm567, %v5287, 0.0
      %5306 = vadd.xlane.f32.xlu0 %v5305
      %v5307 = vpop.xlane.xlu0 %5306
      %v5308 = vsel %vm567, %v5288, 0.0
      %5309 = vadd.xlane.f32.xlu0 %v5308
      %v5310 = vpop.xlane.xlu0 %5309
      %v5311 = vsel %vm567, %v5289, 0.0
      %5312 = vadd.xlane.f32.xlu0 %v5311
      %v5313 = vpop.xlane.xlu0 %5312
      %v5314 = vmul.f32 %v5292, %v2488
      %v5315 = vmul.f32 %v5295, %v2488
      %v5316 = vmul.f32 %v5298, %v2488
      %v5317 = vmul.f32 %v5301, %v2488
      %v5318 = vmul.f32 %v5304, %v2488
      %v5319 = vmul.f32 %v5307, %v2488
      %v5320 = vmul.f32 %v5310, %v2488
      %v5321 = vmul.f32 %v5313, %v2488
      %v5322 = vadd.f32 %v5314, 1e-05
      %v5323 = vadd.f32 %v5315, 1e-05
      %v5324 = vadd.f32 %v5316, 1e-05
      %v5325 = vadd.f32 %v5317, 1e-05
      %v5326 = vadd.f32 %v5318, 1e-05
      %v5327 = vadd.f32 %v5319, 1e-05
      %v5328 = vadd.f32 %v5320, 1e-05
      %v5329 = vadd.f32 %v5321, 1e-05
      %v5330 = vrsqrt.pop %v5322
      %v5331 = vrsqrt.pop %v5323
      %v5332 = vrsqrt.pop %v5324
      %v5333 = vrsqrt.pop %v5325
      %v5334 = vrsqrt.pop %v5326
      %v5335 = vrsqrt.pop %v5327
      %v5336 = vrsqrt.pop %v5328
      %v5337 = vrsqrt.pop %v5329
      %v5338 = vmul.f32 %v5274, %v5330
      %v5339 = vmul.f32 %v5275, %v5331
      %v5340 = vmul.f32 %v5276, %v5332
      %v5341 = vmul.f32 %v5277, %v5333
      %v5342 = vmul.f32 %v5278, %v5334
      %v5343 = vmul.f32 %v5279, %v5335
      %v5344 = vmul.f32 %v5280, %v5336
      %v5345 = vmul.f32 %v5281, %v5337
      %v5346 = vlaneseq
      %v5347 = vshrl.u32 %v5346, 7
      %v5348 = vsub.s32 0, %v5347
      %v5349 = vrot.slane %v2957, %v5348
      %v5350 = vmul.f32 %v5338, %v5349
      %v5351 = vmul.f32 %v5339, %v5349
      %v5352 = vmul.f32 %v5340, %v5349
      %v5353 = vmul.f32 %v5341, %v5349
      %v5354 = vmul.f32 %v5342, %v5349
      %v5355 = vmul.f32 %v5343, %v5349
      %v5356 = vmul.f32 %v5344, %v5349
      %v5357 = vmul.f32 %v5345, %v5349
      %v5358 = vlaneseq
      %v5359 = vshrl.u32 %v5358, 7
      %v5360 = vsub.s32 1, %v5359
      %v5361 = vrot.slane %v2957, %v5360
      %v5362 = vadd.f32 %v5350, %v5361
      %v5363 = vadd.f32 %v5351, %v5361
      %v5364 = vadd.f32 %v5352, %v5361
      %v5365 = vadd.f32 %v5353, %v5361
      %v5366 = vadd.f32 %v5354, %v5361
      %v5367 = vadd.f32 %v5355, %v5361
      %v5368 = vadd.f32 %v5356, %v5361
      %v5369 = vadd.f32 %v5357, %v5361
      %v5370 = vld [vmem:[%s8] sm:$0xff]
      %v5371 = vld [vmem:[%s8 + $0x8] sm:$0xff]
      %v5372 = vld [vmem:[%s8 + $0x10] sm:$0xff]
      %v5373 = vld [vmem:[%s8 + $0x18] sm:$0xff]
      %v5374 = vlaneseq
      %v5375 = vshrl.u32 %v5374, 7
      %v5376 = vsub.s32 1, %v5375
      %v5377 = vrot.slane %v424, %v5376
      %v5379 = vsel %vm567, %v5362, 0
      %v5382 = vsel %vm567, %v5363, 0
      %v5385 = vsel %vm567, %v5364, 0
      %v5388 = vsel %vm567, %v5365, 0
      %v5391 = vsel %vm567, %v5366, 0
      %v5394 = vsel %vm567, %v5367, 0
      %v5397 = vsel %vm567, %v5368, 0
      %v5400 = vsel %vm567, %v5369, 0
      %5402 = vmatprep.subr.mxu0 0.0
      %5403 = vmatpush1.msra.mxu0 %v5370
      %5404 = vmatprep.subr.mxu0 0.0
      %5405 = vmatpush1.msra.mxu0 %v5371
      %5406 = vmatprep.subr.mxu0 0.0
      %5407 = vmatpush1.msra.mxu0 %v5372
      %5408 = vmatprep.subr.mxu0 0.0
      %5409 = vmatpush1.msra.mxu0 %v5373
      %5410 = vmatprep.subr.mxu0 0.0
      %5411 = vmatpush1.msra.mxu0 0.0
      %5412 = vmatprep.subr.mxu0 0.0
      %5413 = vmatpush1.msra.mxu0 0.0
      %5414 = vmatprep.subr.mxu0 0.0
      %5415 = vmatpush1.msra.mxu0 0.0
      %5416 = vmatprep.subr.mxu0 0.0
      %5417 = vmatpush1.msra.mxu0 0.0
      %5418 = vmatprep.subr.mxu0 0.0
      %5419 = vmatpush1.msra.mxu0 0.0
      %5420 = vmatprep.subr.mxu0 0.0
      %5421 = vmatpush1.msra.mxu0 0.0
      %5422 = vmatprep.subr.mxu0 0.0
      %5423 = vmatpush1.msra.mxu0 0.0
      %5424 = vmatprep.subr.mxu0 0.0
      %5425 = vmatpush1.msra.mxu0 0.0
      %5426 = vmatprep.subr.mxu0 0.0
      %5427 = vmatpush1.msra.mxu0 0.0
      %5428 = vmatprep.subr.mxu0 0.0
      %5429 = vmatpush1.msra.mxu0 0.0
      %5430 = vmatprep.subr.mxu0 0.0
      %5431 = vmatpush1.msra.mxu0 0.0
      %5432 = vmatprep.subr.mxu0 0.0
      %5433 = vmatpush1.msra.mxu0 0.0
      %5434 = vmatprep.subr.mxu0 0.0
      %5435 = vmatpush1.msra.mxu0 0.0
      %5436 = vmatprep.subr.mxu0 0.0
      %5437 = vmatpush1.msra.mxu0 0.0
      %5438 = vmatprep.subr.mxu0 0.0
      %5439 = vmatpush1.msra.mxu0 0.0
      %5440 = vmatprep.subr.mxu0 0.0
      %5441 = vmatpush1.msra.mxu0 0.0
      %5442 = vmatprep.subr.mxu0 0.0
      %5443 = vmatpush1.msra.mxu0 0.0
      %5444 = vmatprep.subr.mxu0 0.0
      %5445 = vmatpush1.msra.mxu0 0.0
      %5446 = vmatprep.subr.mxu0 0.0
      %5447 = vmatpush1.msra.mxu0 0.0
      %5448 = vmatprep.subr.mxu0 0.0
      %5449 = vmatpush1.msra.mxu0 0.0
      %5450 = vmatprep.subr.mxu0 0.0
      %5451 = vmatpush1.msra.mxu0 0.0
      %5452 = vmatprep.subr.mxu0 0.0
      %5453 = vmatpush1.msra.mxu0 0.0
      %5454 = vmatprep.subr.mxu0 0.0
      %5455 = vmatpush1.msra.mxu0 0.0
      %5456 = vmatprep.subr.mxu0 0.0
      %5457 = vmatpush1.msra.mxu0 0.0
      %5458 = vmatprep.subr.mxu0 0.0
      %5459 = vmatpush1.msra.mxu0 0.0
      %5460 = vmatprep.subr.mxu0 0.0
      %5461 = vmatpush1.msra.mxu0 0.0
      %5462 = vmatprep.subr.mxu0 0.0
      %5463 = vmatpush1.msra.mxu0 0.0
      %5464 = vmatprep.subr.mxu0 0.0
      %5465 = vmatpush1.msra.mxu0 0.0
      %5466 = vmatprep.mubr.f32.mxu0 0.0
      %5467 = vmatmul.mubr.f32.gmra.mrb[0].mxu0 %v5379
      %v5468 = vpop.f32.mrb[0].mxu0
      %v5469 = vadd.f32 %v5377, %v5468
      %v5470 = vpop.f32.mrb[0].mxu0
      %5471 = vmatprep.mubr.f32.mxu0 0.0
      %5472 = vmatmul.mubr.f32.gmra.mrb[0].mxu0 %v5382
      %v5473 = vpop.f32.mrb[0].mxu0
      %v5474 = vadd.f32 %v5377, %v5473
      %v5475 = vpop.f32.mrb[0].mxu0
      %5476 = vmatprep.mubr.f32.mxu0 0.0
      %5477 = vmatmul.mubr.f32.gmra.mrb[0].mxu0 %v5385
      %v5478 = vpop.f32.mrb[0].mxu0
      %v5479 = vadd.f32 %v5377, %v5478
      %v5480 = vpop.f32.mrb[0].mxu0
      %5481 = vmatprep.mubr.f32.mxu0 0.0
      %5482 = vmatmul.mubr.f32.gmra.mrb[0].mxu0 %v5388
      %v5483 = vpop.f32.mrb[0].mxu0
      %v5484 = vadd.f32 %v5377, %v5483
      %v5485 = vpop.f32.mrb[0].mxu0
      %5486 = vmatprep.mubr.f32.mxu0 0.0
      %5487 = vmatmul.mubr.f32.gmra.mrb[0].mxu0 %v5391
      %v5488 = vpop.f32.mrb[0].mxu0
      %v5489 = vadd.f32 %v5377, %v5488
      %v5490 = vpop.f32.mrb[0].mxu0
      %5491 = vmatprep.mubr.f32.mxu0 0.0
      %5492 = vmatmul.mubr.f32.gmra.mrb[0].mxu0 %v5394
      %v5493 = vpop.f32.mrb[0].mxu0
      %v5494 = vadd.f32 %v5377, %v5493
      %v5495 = vpop.f32.mrb[0].mxu0
      %5496 = vmatprep.mubr.f32.mxu0 0.0
      %5497 = vmatmul.mubr.f32.gmra.mrb[0].mxu0 %v5397
      %v5498 = vpop.f32.mrb[0].mxu0
      %v5499 = vadd.f32 %v5377, %v5498
      %v5500 = vpop.f32.mrb[0].mxu0
      %5501 = vmatprep.mubr.f32.mxu0 0.0
      %5502 = vmatmul.mubr.f32.gmra.mrb[0].mxu0 %v5400
      %v5503 = vpop.f32.mrb[0].mxu0
      %v5504 = vadd.f32 %v5377, %v5503
      %v5505 = vpop.f32.mrb[0].mxu0
      %5506 = vdwg.mxu0
      %v5507 = vmax.f32 %v5469, 0.0
      %v5508 = vmax.f32 %v5474, 0.0
      %v5509 = vmax.f32 %v5479, 0.0
      %v5510 = vmax.f32 %v5484, 0.0
      %v5511 = vmax.f32 %v5489, 0.0
      %v5512 = vmax.f32 %v5494, 0.0
      %v5513 = vmax.f32 %v5499, 0.0
      %v5514 = vmax.f32 %v5504, 0.0
      %v5515 = vld [vmem:[%s9] sm:$0xff]
      %v5516 = vld [vmem:[%s9 + $0x8] sm:$0xff]
      %v5517 = vlaneseq
      %v5518 = vshrl.u32 %v5517, 7
      %v5519 = vsub.s32 2, %v5518
      %v5520 = vrot.slane %v424, %v5519
      %v5522 = vsel %vm441, %v5507, 0
      %v5525 = vsel %vm441, %v5508, 0
      %v5528 = vsel %vm441, %v5509, 0
      %v5531 = vsel %vm441, %v5510, 0
      %v5534 = vsel %vm441, %v5511, 0
      %v5537 = vsel %vm441, %v5512, 0
      %v5540 = vsel %vm441, %v5513, 0
      %v5543 = vsel %vm441, %v5514, 0
      %5545 = vmatprep.subr.mxu0 0.0
      %5546 = vmatpush1.msra.mxu0 %v5515
      %5547 = vmatprep.subr.mxu0 0.0
      %5548 = vmatpush1.msra.mxu0 %v5516
      %5549 = vmatprep.subr.mxu0 0.0
      %5550 = vmatpush1.msra.mxu0 0.0
      %5551 = vmatprep.subr.mxu0 0.0
      %5552 = vmatpush1.msra.mxu0 0.0
      %5553 = vmatprep.subr.mxu0 0.0
      %5554 = vmatpush1.msra.mxu0 0.0
      %5555 = vmatprep.subr.mxu0 0.0
      %5556 = vmatpush1.msra.mxu0 0.0
      %5557 = vmatprep.subr.mxu0 0.0
      %5558 = vmatpush1.msra.mxu0 0.0
      %5559 = vmatprep.subr.mxu0 0.0
      %5560 = vmatpush1.msra.mxu0 0.0
      %5561 = vmatprep.subr.mxu0 0.0
      %5562 = vmatpush1.msra.mxu0 0.0
      %5563 = vmatprep.subr.mxu0 0.0
      %5564 = vmatpush1.msra.mxu0 0.0
      %5565 = vmatprep.subr.mxu0 0.0
      %5566 = vmatpush1.msra.mxu0 0.0
      %5567 = vmatprep.subr.mxu0 0.0
      %5568 = vmatpush1.msra.mxu0 0.0
      %5569 = vmatprep.subr.mxu0 0.0
      %5570 = vmatpush1.msra.mxu0 0.0
      %5571 = vmatprep.subr.mxu0 0.0
      %5572 = vmatpush1.msra.mxu0 0.0
      %5573 = vmatprep.subr.mxu0 0.0
      %5574 = vmatpush1.msra.mxu0 0.0
      %5575 = vmatprep.subr.mxu0 0.0
      %5576 = vmatpush1.msra.mxu0 0.0
      %5577 = vmatprep.subr.mxu0 0.0
      %5578 = vmatpush1.msra.mxu0 0.0
      %5579 = vmatprep.subr.mxu0 0.0
      %5580 = vmatpush1.msra.mxu0 0.0
      %5581 = vmatprep.subr.mxu0 0.0
      %5582 = vmatpush1.msra.mxu0 0.0
      %5583 = vmatprep.subr.mxu0 0.0
      %5584 = vmatpush1.msra.mxu0 0.0
      %5585 = vmatprep.subr.mxu0 0.0
      %5586 = vmatpush1.msra.mxu0 0.0
      %5587 = vmatprep.subr.mxu0 0.0
      %5588 = vmatpush1.msra.mxu0 0.0
      %5589 = vmatprep.subr.mxu0 0.0
      %5590 = vmatpush1.msra.mxu0 0.0
      %5591 = vmatprep.subr.mxu0 0.0
      %5592 = vmatpush1.msra.mxu0 0.0
      %5593 = vmatprep.subr.mxu0 0.0
      %5594 = vmatpush1.msra.mxu0 0.0
      %5595 = vmatprep.subr.mxu0 0.0
      %5596 = vmatpush1.msra.mxu0 0.0
      %5597 = vmatprep.subr.mxu0 0.0
      %5598 = vmatpush1.msra.mxu0 0.0
      %5599 = vmatprep.subr.mxu0 0.0
      %5600 = vmatpush1.msra.mxu0 0.0
      %5601 = vmatprep.subr.mxu0 0.0
      %5602 = vmatpush1.msra.mxu0 0.0
      %5603 = vmatprep.subr.mxu0 0.0
      %5604 = vmatpush1.msra.mxu0 0.0
      %5605 = vmatprep.subr.mxu0 0.0
      %5606 = vmatpush1.msra.mxu0 0.0
      %5607 = vmatprep.subr.mxu0 0.0
      %5608 = vmatpush1.msra.mxu0 0.0
      %5609 = vmatprep.mubr.f32.mxu0 0.0
      %5610 = vmatmul.mubr.f32.gmra.mrb[0].mxu0 %v5522
      %v5611 = vpop.f32.mrb[0].mxu0
      %v5612 = vadd.f32 %v5520, %v5611
      %v5613 = vpop.f32.mrb[0].mxu0
      %5614 = vmatprep.mubr.f32.mxu0 0.0
      %5615 = vmatmul.mubr.f32.gmra.mrb[0].mxu0 %v5525
      %v5616 = vpop.f32.mrb[0].mxu0
      %v5617 = vadd.f32 %v5520, %v5616
      %v5618 = vpop.f32.mrb[0].mxu0
      %5619 = vmatprep.mubr.f32.mxu0 0.0
      %5620 = vmatmul.mubr.f32.gmra.mrb[0].mxu0 %v5528
      %v5621 = vpop.f32.mrb[0].mxu0
      %v5622 = vadd.f32 %v5520, %v5621
      %v5623 = vpop.f32.mrb[0].mxu0
      %5624 = vmatprep.mubr.f32.mxu0 0.0
      %5625 = vmatmul.mubr.f32.gmra.mrb[0].mxu0 %v5531
      %v5626 = vpop.f32.mrb[0].mxu0
      %v5627 = vadd.f32 %v5520, %v5626
      %v5628 = vpop.f32.mrb[0].mxu0
      %5629 = vmatprep.mubr.f32.mxu0 0.0
      %5630 = vmatmul.mubr.f32.gmra.mrb[0].mxu0 %v5534
      %v5631 = vpop.f32.mrb[0].mxu0
      %v5632 = vadd.f32 %v5520, %v5631
      %v5633 = vpop.f32.mrb[0].mxu0
      %5634 = vmatprep.mubr.f32.mxu0 0.0
      %5635 = vmatmul.mubr.f32.gmra.mrb[0].mxu0 %v5537
      %v5636 = vpop.f32.mrb[0].mxu0
      %v5637 = vadd.f32 %v5520, %v5636
      %v5638 = vpop.f32.mrb[0].mxu0
      %5639 = vmatprep.mubr.f32.mxu0 0.0
      %5640 = vmatmul.mubr.f32.gmra.mrb[0].mxu0 %v5540
      %v5641 = vpop.f32.mrb[0].mxu0
      %v5642 = vadd.f32 %v5520, %v5641
      %v5643 = vpop.f32.mrb[0].mxu0
      %5644 = vmatprep.mubr.f32.mxu0 0.0
      %5645 = vmatmul.mubr.f32.gmra.mrb[0].mxu0 %v5543
      %v5646 = vpop.f32.mrb[0].mxu0
      %v5647 = vadd.f32 %v5520, %v5646
      %v5648 = vpop.f32.mrb[0].mxu0
      %5649 = vdwg.mxu0
      %v5650 = vmax.f32 %v5612, 0.0
      %v5651 = vmax.f32 %v5617, 0.0
      %v5652 = vmax.f32 %v5622, 0.0
      %v5653 = vmax.f32 %v5627, 0.0
      %v5654 = vmax.f32 %v5632, 0.0
      %v5655 = vmax.f32 %v5637, 0.0
      %v5656 = vmax.f32 %v5642, 0.0
      %v5657 = vmax.f32 %v5647, 0.0
      %v5658 = vld [vmem:[%s10] sm:$0xff]
      %v5659 = vlaneseq
      %v5660 = vshrl.u32 %v5659, 7
      %v5661 = vsub.s32 3, %v5660
      %v5662 = vrot.slane %v424, %v5661
      %vm5663 = vcmask 64512
      %v5665 = vsel %vm5663, %v5650, 0
      %v5668 = vsel %vm5663, %v5651, 0
      %v5671 = vsel %vm5663, %v5652, 0
      %v5674 = vsel %vm5663, %v5653, 0
      %v5677 = vsel %vm5663, %v5654, 0
      %v5680 = vsel %vm5663, %v5655, 0
      %v5683 = vsel %vm5663, %v5656, 0
      %v5686 = vsel %vm5663, %v5657, 0
      %5688 = vmatprep.subr.mxu0 0.0
      %5689 = vmatpush1.msra.mxu0 %v5658
      %5690 = vmatprep.subr.mxu0 0.0
      %5691 = vmatpush1.msra.mxu0 0.0
      %5692 = vmatprep.subr.mxu0 0.0
      %5693 = vmatpush1.msra.mxu0 0.0
      %5694 = vmatprep.subr.mxu0 0.0
      %5695 = vmatpush1.msra.mxu0 0.0
      %5696 = vmatprep.subr.mxu0 0.0
      %5697 = vmatpush1.msra.mxu0 0.0
      %5698 = vmatprep.subr.mxu0 0.0
      %5699 = vmatpush1.msra.mxu0 0.0
      %5700 = vmatprep.subr.mxu0 0.0
      %5701 = vmatpush1.msra.mxu0 0.0
      %5702 = vmatprep.subr.mxu0 0.0
      %5703 = vmatpush1.msra.mxu0 0.0
      %5704 = vmatprep.subr.mxu0 0.0
      %5705 = vmatpush1.msra.mxu0 0.0
      %5706 = vmatprep.subr.mxu0 0.0
      %5707 = vmatpush1.msra.mxu0 0.0
      %5708 = vmatprep.subr.mxu0 0.0
      %5709 = vmatpush1.msra.mxu0 0.0
      %5710 = vmatprep.subr.mxu0 0.0
      %5711 = vmatpush1.msra.mxu0 0.0
      %5712 = vmatprep.subr.mxu0 0.0
      %5713 = vmatpush1.msra.mxu0 0.0
      %5714 = vmatprep.subr.mxu0 0.0
      %5715 = vmatpush1.msra.mxu0 0.0
      %5716 = vmatprep.subr.mxu0 0.0
      %5717 = vmatpush1.msra.mxu0 0.0
      %5718 = vmatprep.subr.mxu0 0.0
      %5719 = vmatpush1.msra.mxu0 0.0
      %5720 = vmatprep.subr.mxu0 0.0
      %5721 = vmatpush1.msra.mxu0 0.0
      %5722 = vmatprep.subr.mxu0 0.0
      %5723 = vmatpush1.msra.mxu0 0.0
      %5724 = vmatprep.subr.mxu0 0.0
      %5725 = vmatpush1.msra.mxu0 0.0
      %5726 = vmatprep.subr.mxu0 0.0
      %5727 = vmatpush1.msra.mxu0 0.0
      %5728 = vmatprep.subr.mxu0 0.0
      %5729 = vmatpush1.msra.mxu0 0.0
      %5730 = vmatprep.subr.mxu0 0.0
      %5731 = vmatpush1.msra.mxu0 0.0
      %5732 = vmatprep.subr.mxu0 0.0
      %5733 = vmatpush1.msra.mxu0 0.0
      %5734 = vmatprep.subr.mxu0 0.0
      %5735 = vmatpush1.msra.mxu0 0.0
      %5736 = vmatprep.subr.mxu0 0.0
      %5737 = vmatpush1.msra.mxu0 0.0
      %5738 = vmatprep.subr.mxu0 0.0
      %5739 = vmatpush1.msra.mxu0 0.0
      %5740 = vmatprep.subr.mxu0 0.0
      %5741 = vmatpush1.msra.mxu0 0.0
      %5742 = vmatprep.subr.mxu0 0.0
      %5743 = vmatpush1.msra.mxu0 0.0
      %5744 = vmatprep.subr.mxu0 0.0
      %5745 = vmatpush1.msra.mxu0 0.0
      %5746 = vmatprep.subr.mxu0 0.0
      %5747 = vmatpush1.msra.mxu0 0.0
      %5748 = vmatprep.subr.mxu0 0.0
      %5749 = vmatpush1.msra.mxu0 0.0
      %5750 = vmatprep.subr.mxu0 0.0
      %5751 = vmatpush1.msra.mxu0 0.0
      %5752 = vmatprep.mubr.f32.mxu0 0.0
      %5753 = vmatmul.mubr.f32.gmra.mrb[0].mxu0 %v5665
      %v5754 = vpop.f32.mrb[0].mxu0
      %v5755 = vadd.f32 %v5662, %v5754
      %v5756 = vpop.f32.mrb[0].mxu0
      %5757 = vmatprep.mubr.f32.mxu0 0.0
      %5758 = vmatmul.mubr.f32.gmra.mrb[0].mxu0 %v5668
      %v5759 = vpop.f32.mrb[0].mxu0
      %v5760 = vadd.f32 %v5662, %v5759
      %v5761 = vpop.f32.mrb[0].mxu0
      %5762 = vmatprep.mubr.f32.mxu0 0.0
      %5763 = vmatmul.mubr.f32.gmra.mrb[0].mxu0 %v5671
      %v5764 = vpop.f32.mrb[0].mxu0
      %v5765 = vadd.f32 %v5662, %v5764
      %v5766 = vpop.f32.mrb[0].mxu0
      %5767 = vmatprep.mubr.f32.mxu0 0.0
      %5768 = vmatmul.mubr.f32.gmra.mrb[0].mxu0 %v5674
      %v5769 = vpop.f32.mrb[0].mxu0
      %v5770 = vadd.f32 %v5662, %v5769
      %v5771 = vpop.f32.mrb[0].mxu0
      %5772 = vmatprep.mubr.f32.mxu0 0.0
      %5773 = vmatmul.mubr.f32.gmra.mrb[0].mxu0 %v5677
      %v5774 = vpop.f32.mrb[0].mxu0
      %v5775 = vadd.f32 %v5662, %v5774
      %v5776 = vpop.f32.mrb[0].mxu0
      %5777 = vmatprep.mubr.f32.mxu0 0.0
      %5778 = vmatmul.mubr.f32.gmra.mrb[0].mxu0 %v5680
      %v5779 = vpop.f32.mrb[0].mxu0
      %v5780 = vadd.f32 %v5662, %v5779
      %v5781 = vpop.f32.mrb[0].mxu0
      %5782 = vmatprep.mubr.f32.mxu0 0.0
      %5783 = vmatmul.mubr.f32.gmra.mrb[0].mxu0 %v5683
      %v5784 = vpop.f32.mrb[0].mxu0
      %v5785 = vadd.f32 %v5662, %v5784
      %v5786 = vpop.f32.mrb[0].mxu0
      %5787 = vmatprep.mubr.f32.mxu0 0.0
      %5788 = vmatmul.mubr.f32.gmra.mrb[0].mxu0 %v5686
      %v5789 = vpop.f32.mrb[0].mxu0
      %v5790 = vadd.f32 %v5662, %v5789
      %v5791 = vpop.f32.mrb[0].mxu0
      %5792 = vdwg.mxu0
      %5793 = vst.msk [vmem:[%s406] sm:$0xff] %vm5663, %v5755
      %5794 = vst.msk [vmem:[%s406 + $0x8] sm:$0xff] %vm5663, %v5760
      %5795 = vst.msk [vmem:[%s406 + $0x10] sm:$0xff] %vm5663, %v5765
      %5796 = vst.msk [vmem:[%s406 + $0x18] sm:$0xff] %vm5663, %v5770
      %5797 = vst.msk [vmem:[%s406 + $0x20] sm:$0xff] %vm5663, %v5775
      %5798 = vst.msk [vmem:[%s406 + $0x28] sm:$0xff] %vm5663, %v5780
      %5799 = vst.msk [vmem:[%s406 + $0x30] sm:$0xff] %vm5663, %v5785
      %5800 = vst.msk [vmem:[%s406 + $0x38] sm:$0xff] %vm5663, %v5790
      %p5801 = scmp.lt.s32.totalorder %s22, 7
      %s5802 = scalar_select %p5801, %s22, 7
      %s5803 = smul.addr %s5802, 8
      %s5804 = smul.addr %s5803, 8
      %s5805 = scalar_lea.vmem %s11, %s5804
      // Predicated region
      $region65: #{tpu_custom_call.1} parent=63 // pred_check
        %p5806 = pneg %p281
      $region66: #{tpu_custom_call.1} parent=63 // pred_check_branch
        %5808 = sbr.rel (%p5806) target = $region68
      $region67: #{tpu_custom_call.1} parent=63 // pred_region
        _
      $region68: #{tpu_custom_call.1} parent=63 // pred_fallthru
        _
    $region64: #{tpu_custom_call.1} parent=5 // pred_fallthru
      _
    %p5809 = scmp.le.s32.totalorder 2, %s17
    // Predicated region
    $region69: #{tpu_custom_call.1} parent=5 // pred_check
      %p5810 = pneg %p5809
    $region70: #{tpu_custom_call.1} parent=5 // pred_check_branch
      %5812 = sbr.rel (%p5810) target = $region72
    $region71: #{tpu_custom_call.1} parent=5 // pred_region
      %s5813 = ssub.s32 %s17, 2
      // Predicated region
      $region73: #{tpu_custom_call.1} parent=71 // pred_check
        %p5814 = pneg %p287
      $region74: #{tpu_custom_call.1} parent=71 // pred_check_branch
        %5816 = sbr.rel (%p5814) target = $region76
      $region75: #{tpu_custom_call.1} parent=71 // pred_region
        %p5817 = scmp.lt.s32.totalorder %s23, 7
        %s5818 = scalar_select %p5817, %s23, 7
        %s5819 = smul.addr %s5818, 8
        %s5820 = smul.addr %s5819, 8
        %s5821 = scalar_lea.vmem %s11, %s5820
      $region76: #{tpu_custom_call.1} parent=71 // pred_fallthru
        _
    $region72: #{tpu_custom_call.1} parent=5 // pred_fallthru
      _
  $region6: #{tpu_custom_call.1} parent=0 // loop_footer
    %s21 = sadd.s32 1, %s17
  $region7: #{tpu_custom_call.1} parent=0 // loop_footer_branch
    %16 = sbr.rel target = $region3
  $region8: #{tpu_custom_call.1} parent=0 // loop_exit
    _

</llo_original>
